<compile_context>
chip_gen: v5e
topology: v5e:2x2
jax: 0.10.0
libtpu: 0.0.40
codegen_flags: <defaults>
</compile_context>

<pallas_src>
import math
import functools

import jax
import jax.numpy as jnp
from jax import lax
from jax.experimental import pallas as pl
from jax.experimental.pallas import tpu as pltpu


_PARAM_ORDER = ("wq", "wk", "wv", "bq", "bk", "bv", "wo", "bo",
                "g1", "b1", "w1", "bb1", "w2", "bb2", "g2", "b2")

_MIB = 1024 * 1024


def _layer_norm(x, gamma, beta, eps=1e-5):
    mu = jnp.mean(x, axis=-1, keepdims=True)
    var = jnp.mean((x - mu) * (x - mu), axis=-1, keepdims=True)
    return (x - mu) * lax.rsqrt(var + eps) * gamma + beta


def _vmem_capacity_bytes():
    try:
        return int(pltpu.get_tpu_info().vmem_capacity_bytes)
    except Exception:
        return 64 * _MIB          # conservative: v7x per-TensorCore VMEM


def _round_up(x, m):
    return ((x + m - 1) // m) * m


def _pick_chunk(total, cap, granule):
    """Largest divisor of `total` that is <= cap and a multiple of `granule`."""
    if total <= cap:
        return total
    c = (cap // granule) * granule
    while c >= granule:
        if total % c == 0:
            return c
        c -= granule
    # TODO(synk): pad/mask ragged lengths instead of single-pass fallback.
    return total


# -----------------------------------------------------------------------------
# Kernel: one query tile of one batch element of one cross-attention block.
# -----------------------------------------------------------------------------
def _fused_block_kernel(
    q_ref, k_ref, v_ref,                       # (TQ,E) f32, (Lk,E) bf16 x2
    wq_ref, wk_ref, wv_ref,                    # (E,E)  bf16, pre-T, scale folded
    bq_ref, bk_ref, bv_ref,                    # (1,E)  f32
    wo_ref, bo_ref,                            # (E,E)  bf16, (1,E) f32
    g1_ref, b1_ref,                            # (1,E), (1,E)
    w1_ref, bb1_ref,                           # (E,4E) bf16, (1,4E)
    w2_ref, bb2_ref,                           # (4E,E) bf16, (1,E)
    g2_ref, b2_ref,                            # (1,E), (1,E)
    o_ref,                                     # (TQ,E)
    kp_scr, vp_scr,                            # (H,Lk,Dh) bf16 scratch
    *, num_heads, lk_chunk, ffn_chunk):
    TQ, E = q_ref.shape
    Lk = k_ref.shape[0]
    H = num_heads
    Dh = E // H
    H4 = w1_ref.shape[1]
    qt = pl.program_id(2)

    # K/V projections depend only on (block, batch): compute once at the first
    # query tile, store head-split (H, Lk, Dh) in bf16 VMEM scratch so no
    # per-tile relayout is needed.  NOTE: this relies on the qt grid axis being
    # the innermost, sequentially executed ("arbitrary") axis.
    @pl.when(qt == 0)
    def _():
        kp = jnp.dot(k_ref[...], wk_ref[...],
                     preferred_element_type=jnp.float32) + bk_ref[...]
        vp = jnp.dot(v_ref[...], wv_ref[...],
                     preferred_element_type=jnp.float32) + bv_ref[...]
        kp_scr[...] = jnp.transpose(kp.reshape(Lk, H, Dh),
                                    (1, 0, 2)).astype(jnp.bfloat16)
        vp_scr[...] = jnp.transpose(vp.reshape(Lk, H, Dh),
                                    (1, 0, 2)).astype(jnp.bfloat16)

    q_in = q_ref[...]                                            # f32 residual
    # 1/sqrt(Dh) already folded into wq / bq host-side.
    qp = jnp.dot(q_in.astype(jnp.bfloat16), wq_ref[...],
                 preferred_element_type=jnp.float32) + bq_ref[...]
    q3 = jnp.transpose(qp.astype(jnp.bfloat16).reshape(TQ, H, Dh),
                       (1, 0, 2))                                # (H,TQ,Dh)

    n_kc = Lk // lk_chunk
    if n_kc == 1:
        # Single-pass softmax (small / moderate Lk).
        s = jnp.einsum("hqd,hkd->hqk", q3, kp_scr[...],
                       preferred_element_type=jnp.float32)       # (H,TQ,Lk)
        s = s - jnp.max(s, axis=-1, keepdims=True)
        p = jnp.exp(s)
        p = p * pl.reciprocal(jnp.sum(p, axis=-1, keepdims=True), approx=True)
        attn = jnp.einsum("hqk,hkd->hqd", p.astype(jnp.bfloat16), vp_scr[...],
                          preferred_element_type=jnp.float32)    # (H,TQ,Dh)
    else:
        # Flash-style online softmax over Lk chunks of the cached projections:
        # bounds live intermediates to (H, TQ, lk_chunk).
        def body(c, carry):
            m_i, l_i, acc = carry
            off = pl.multiple_of(c * lk_chunk, lk_chunk)
            k_c = kp_scr[:, pl.ds(off, lk_chunk), :]
            v_c = vp_scr[:, pl.ds(off, lk_chunk), :]
            s = jnp.einsum("hqd,hkd->hqk", q3, k_c,
                           preferred_element_type=jnp.float32)
            m_new = jnp.maximum(m_i, jnp.max(s, axis=-1, keepdims=True))
            alpha = jnp.exp(m_i - m_new)
            p = jnp.exp(s - m_new)
            l_new = alpha * l_i + jnp.sum(p, axis=-1, keepdims=True)
            acc_new = alpha * acc + jnp.einsum(
                "hqk,hkd->hqd", p.astype(jnp.bfloat16), v_c,
                preferred_element_type=jnp.float32)
            return m_new, l_new, acc_new

        m0 = jnp.full((H, TQ, 1), -jnp.inf, jnp.float32)
        l0 = jnp.zeros((H, TQ, 1), jnp.float32)
        a0 = jnp.zeros((H, TQ, Dh), jnp.float32)
        _, l_i, acc = lax.fori_loop(0, n_kc, body, (m0, l0, a0))
        attn = acc * pl.reciprocal(l_i, approx=True)

    attn = jnp.transpose(attn, (1, 0, 2)).reshape(TQ, E)
    attn_out = jnp.dot(attn.astype(jnp.bfloat16), wo_ref[...],
                       preferred_element_type=jnp.float32) + bo_ref[...]

    # dropout -> identity (eval);  residual + LayerNorm 1 (f32 math)
    x = _layer_norm(attn_out + q_in, g1_ref[...], b1_ref[...])
    x_bf = x.astype(jnp.bfloat16)

    # FFN: Linear(E,4E) -> ReLU -> Linear(4E,E); hidden dim chunked to bound
    # the (TQ, chunk) activation.  Dropouts = identity.
    n_hc = H4 // ffn_chunk
    if n_hc == 1:
        h1 = jnp.maximum(jnp.dot(x_bf, w1_ref[...],
                                 preferred_element_type=jnp.float32)
                         + bb1_ref[...], 0.0)
        ff = jnp.dot(h1.astype(jnp.bfloat16), w2_ref[...],
                     preferred_element_type=jnp.float32) + bb2_ref[...]
    else:
        def ffn_body(c, acc):
            off = pl.multiple_of(c * ffn_chunk, ffn_chunk)
            w1c = w1_ref[:, pl.ds(off, ffn_chunk)]
            b1c = bb1_ref[:, pl.ds(off, ffn_chunk)]
            h1 = jnp.maximum(jnp.dot(x_bf, w1c,
                                     preferred_element_type=jnp.float32) + b1c,
                             0.0)
            w2c = w2_ref[pl.ds(off, ffn_chunk), :]
            return acc + jnp.dot(h1.astype(jnp.bfloat16), w2c,
                                 preferred_element_type=jnp.float32)

        ff = lax.fori_loop(0, n_hc, ffn_body,
                           jnp.zeros((TQ, E), jnp.float32)) + bb2_ref[...]

    # residual + LayerNorm 2
    y = _layer_norm(x + ff, g2_ref[...], b2_ref[...])
    o_ref[...] = y.astype(o_ref.dtype)


# -----------------------------------------------------------------------------
# Host-side parameter prep: split in_proj, transpose, fold scale, cast to bf16.
# -----------------------------------------------------------------------------
def _prep_block_params(p, num_heads, compute_dtype=jnp.bfloat16):
    E = p["wo"].shape[0]
    assert E % num_heads == 0, "embed_dim must be divisible by num_heads"
    scale = 1.0 / math.sqrt(E // num_heads)
    wqkv, bqkv = p["wqkv"], p["bqkv"]
    return {
        "wq": (wqkv[0:E].T * scale).astype(compute_dtype),
        "wk": wqkv[E:2 * E].T.astype(compute_dtype),
        "wv": wqkv[2 * E:].T.astype(compute_dtype),
        "bq": (bqkv[:, 0:E] * scale).astype(jnp.float32),
        "bk": bqkv[:, E:2 * E].astype(jnp.float32),
        "bv": bqkv[:, 2 * E:].astype(jnp.float32),
        "wo": p["wo"].T.astype(compute_dtype),
        "bo": p["bo"].astype(jnp.float32),
        "g1": p["g1"].astype(jnp.float32),
        "b1": p["b1"].astype(jnp.float32),
        "w1": p["w1"].T.astype(compute_dtype),
        "bb1": p["bb1"].astype(jnp.float32),
        "w2": p["w2"].T.astype(compute_dtype),
        "bb2": p["bb2"].astype(jnp.float32),
        "g2": p["g2"].astype(jnp.float32),
        "b2": p["b2"].astype(jnp.float32),
    }


def _stack_params(plist):
    return {k: jnp.stack([p[k] for p in plist], axis=0) for k in _PARAM_ORDER}


def _pick_query_tile(Lq, E):
    """Query tile: 256 fills the 256-wide MXU (v6e/v7x); drop to 128 on
    small-VMEM chips (v7x) for large E; small Lq uses one sublane-padded tile."""
    if Lq <= 256:
        return Lq if Lq % 8 == 0 else _round_up(Lq, 8)
    if _vmem_capacity_bytes() <= 64 * _MIB and E >= 2048:
        return 128
    return 256


# -----------------------------------------------------------------------------
# Fused pallas_call over S stacked cross-attention blocks.
# -----------------------------------------------------------------------------
def _fused_cross_attention(Qs, Ks, Vs, stacked, num_heads, tq,
                           *, single_buffer_weights=True):
    S, B, Lq, E = Qs.shape          # Lq already padded to a multiple of tq
    Lk = Ks.shape[2]
    H4 = 4 * E
    Dh = E // num_heads
    n_qt = Lq // tq
    assert Lq % tq == 0

    lkc = _pick_chunk(Lk, 512, 8)        # Lk chunk for online softmax
    ffc = _pick_chunk(H4, 2048, 128)     # FFN hidden-dim chunk

    qmap = lambda s, b, qt: (s, b, qt, 0)
    kvmap = lambda s, b, qt: (s, b, 0, 0)
    wmap = lambda s, b, qt: (s, 0, 0)

    def wspec(d0, d1):
        # Weight/bias block index only changes with s -> single-buffer them
        # (halves resident weight VMEM; free when S is core-sharded on v7x).
        if single_buffer_weights:
            return pl.BlockSpec((None, d0, d1), wmap,
                                pipeline_mode=pl.Buffered(buffer_count=1))
        return pl.BlockSpec((None, d0, d1), wmap)

    in_specs = [
        pl.BlockSpec((None, None, tq, E), qmap),     # Q tile (f32)
        pl.BlockSpec((None, None, Lk, E), kvmap),    # K (bf16, resident over qt)
        pl.BlockSpec((None, None, Lk, E), kvmap),    # V (bf16, resident over qt)
        wspec(E, E), wspec(E, E), wspec(E, E),       # wq wk wv
        wspec(1, E), wspec(1, E), wspec(1, E),       # bq bk bv
        wspec(E, E), wspec(1, E),                    # out proj
        wspec(1, E), wspec(1, E),                    # layer_norm1
        wspec(E, H4), wspec(1, H4),                  # ffn linear1
        wspec(H4, E), wspec(1, E),                   # ffn linear2
        wspec(1, E), wspec(1, E),                    # layer_norm2
    ]

    # VMEM budget estimate -> scoped limit (clamped to physical capacity).
    wb = 1 if single_buffer_weights else 2
    need = (wb * 24 * E * E                 # bf16 weight blocks
            + 2 * 2 * tq * E * 4            # Q + output tiles, double-buffered
            + 2 * 2 * Lk * E * 2            # K, V blocks, double-buffered bf16
            + 2 * Lk * E * 2                # kp/vp scratch (bf16)
            + 3 * num_heads * tq * lkc * 4  # scores / probs intermediates
            + tq * ffc * 4                  # FFN hidden activation chunk
            + 8 * tq * E * 4)               # misc f32 temporaries
    cap = _vmem_capacity_bytes()
    vmem_limit = int(min(max(int(need * 1.4), 32 * _MIB), cap - 16 * _MIB))

    flops = int(S * B * (20 * Lq * E * E + 4 * Lk * E * E + 4 * Lq * Lk * E))
    transc = int(S * B * (num_heads * Lq * Lk + 4 * Lq))
    bytes_acc = int(S * B * (2 * Lq * E * 4 + 2 * Lk * E * 2)
                    + S * 26 * E * E * 2)

    kernel = functools.partial(_fused_block_kernel, num_heads=num_heads,
                               lk_chunk=lkc, ffn_chunk=ffc)

    return pl.pallas_call(
        kernel,
        out_shape=jax.ShapeDtypeStruct((S, B, Lq, E), Qs.dtype),
        grid_spec=pltpu.PrefetchScalarGridSpec(
            num_scalar_prefetch=0,
            # qt MUST stay innermost + "arbitrary": K/V scratch caching relies
            # on sequential execution of query tiles within each (s, b).
            grid=(S, B, n_qt),
            in_specs=in_specs,
            out_specs=pl.BlockSpec((None, None, tq, E), qmap),
            scratch_shapes=[pltpu.VMEM((num_heads, Lk, Dh), jnp.bfloat16),
                            pltpu.VMEM((num_heads, Lk, Dh), jnp.bfloat16)],
        ),
        compiler_params=pltpu.CompilerParams(
            dimension_semantics=("parallel", "parallel", "arbitrary"),
            vmem_limit_bytes=vmem_limit,
        ),
        cost_estimate=pl.CostEstimate(
            flops=flops, transcendentals=transc, bytes_accessed=bytes_acc),
    )(Qs, Ks, Vs, *(stacked[k] for k in _PARAM_ORDER))


def _run_fused(Qs, Ks, Vs, plist, num_heads):
    """Qs/Ks/Vs: (S,B,L,E) float32; plist: prepped per-block params."""
    S, B, Lq, E = Qs.shape
    tq = _pick_query_tile(Lq, E)
    pad = (-Lq) % tq
    if pad:
        # Query rows are independent (attention/LN/FFN are per-row over Lq),
        # so zero-padding + slicing is exact.
        Qs = jnp.pad(Qs, ((0, 0), (0, 0), (0, pad), (0, 0)))
    # K/V only feed bf16 MXU matmuls -> ship them bf16 (halves DMA + VMEM,
    # numerically identical to the previous in-kernel cast).
    Ks = Ks.astype(jnp.bfloat16)
    Vs = Vs.astype(jnp.bfloat16)
    stacked = _stack_params(plist)
    try:
        out = _fused_cross_attention(Qs, Ks, Vs, stacked, num_heads, tq,
                                     single_buffer_weights=True)
    except Exception:
        # pipeline_mode=pl.Buffered(...) not supported -> default buffering.
        out = _fused_cross_attention(Qs, Ks, Vs, stacked, num_heads, tq,
                                     single_buffer_weights=False)
    return out[:, :, :Lq, :] if pad else out


def cross_attention_block(Q, K, V, params, num_heads):
    """Single CrossAttentionBlock (eval mode) via the fused kernel (S=1)."""
    prep = _prep_block_params(params, num_heads)
    out = _run_fused(Q[None], K[None], V[None], [prep], num_heads)
    return out[0]


def two_cross_attention(Q1, K1, V1, Q2, K2, V2, params1, params2,
                        num_heads_1, num_heads_2):
    """x1 = block1(Q1, K2, V2), x2 = block2(Q2, K1, V1)."""
    fusable = (num_heads_1 == num_heads_2
               and Q1.shape == Q2.shape
               and K1.shape == K2.shape == V1.shape == V2.shape
               and Q1.shape[-1] == K1.shape[-1])
    if fusable:
        p1 = _prep_block_params(params1, num_heads_1)
        p2 = _prep_block_params(params2, num_heads_2)
        Qs = jnp.stack([Q1, Q2], axis=0)
        Ks = jnp.stack([K2, K1], axis=0)
        Vs = jnp.stack([V2, V1], axis=0)
        out = _run_fused(Qs, Ks, Vs, [p1, p2], num_heads_1)
        return out[0], out[1]
    x1 = cross_attention_block(Q1, K2, V2, params1, num_heads_1)
    x2 = cross_attention_block(Q2, K1, V1, params2, num_heads_2)
    return x1, x2


# -----------------------------------------------------------------------------
# Deterministic parameter init + pure-JAX reference.
# -----------------------------------------------------------------------------
def init_block_params(key, embed_dim):
    E = embed_dim
    ks = jax.random.split(key, 6)
    s = 0.02
    return {
        "wqkv": (jax.random.normal(ks[0], (3 * E, E), jnp.float32) * s),
        "bqkv": (jax.random.normal(ks[1], (1, 3 * E), jnp.float32) * s),
        "wo":   (jax.random.normal(ks[2], (E, E), jnp.float32) * s),
        "bo":   (jax.random.normal(ks[3], (1, E), jnp.float32) * s),
        "g1":   jnp.ones((1, E), jnp.float32),
        "b1":   jnp.zeros((1, E), jnp.float32),
        "w1":   (jax.random.normal(ks[4], (4 * E, E), jnp.float32) * s),
        "bb1":  jnp.zeros((1, 4 * E), jnp.float32),
        "w2":   (jax.random.normal(ks[5], (E, 4 * E), jnp.float32) * s),
        "bb2":  jnp.zeros((1, E), jnp.float32),
        "g2":   jnp.ones((1, E), jnp.float32),
        "b2":   jnp.zeros((1, E), jnp.float32),
    }


def ref_block(Q, K, V, p, num_heads):
    """Pure-JAX (f32) reference of CrossAttentionBlock (eval mode)."""
    E = Q.shape[-1]
    Dh = E // num_heads
    wqkv, bqkv = p["wqkv"], p["bqkv"][0]
    qp = Q @ wqkv[0:E].T + bqkv[0:E]
    kp = K @ wqkv[E:2 * E].T + bqkv[E:2 * E]
    vp = V @ wqkv[2 * E:].T + bqkv[2 * E:]

    def split(x):  # (B, L, E) -> (B, H, L, Dh)
        B, L, _ = x.shape
        return x.reshape(B, L, num_heads, Dh).transpose(0, 2, 1, 3)

    qh, kh, vh = split(qp), split(kp), split(vp)
    s = jnp.einsum("bhqd,bhkd->bhqk", qh, kh) / math.sqrt(Dh)
    pw = jax.nn.softmax(s, axis=-1)
    a = jnp.einsum("bhqk,bhkd->bhqd", pw, vh)
    a = a.transpose(0, 2, 1, 3).reshape(Q.shape)
    attn_out = a @ p["wo"].T + p["bo"][0]

    def ln(x, g, b, eps=1e-5):
        mu = x.mean(-1, keepdims=True)
        var = ((x - mu) ** 2).mean(-1, keepdims=True)
        return (x - mu) / jnp.sqrt(var + eps) * g[0] + b[0]

    x = ln(attn_out + Q, p["g1"], p["b1"])
    ff = jnp.maximum(x @ p["w1"].T + p["bb1"][0], 0.0) @ p["w2"].T + p["bb2"][0]
    return ln(x + ff, p["g2"], p["b2"])


if __name__ == "__main__":
    B = 2
    L = 8              # sequence length
    E = 32             # embed_dim_1 == embed_dim_2
    H1, H2 = 4, 4      # num_heads

    key = jax.random.PRNGKey(0)
    kq1, kk1, kv1, kq2, kk2, kv2, kp1, kp2 = jax.random.split(key, 8)

    Q1 = jax.random.normal(kq1, (B, L, E), jnp.float32)
    K1 = jax.random.normal(kk1, (B, L, E), jnp.float32)
    V1 = jax.random.normal(kv1, (B, L, E), jnp.float32)
    Q2 = jax.random.normal(kq2, (B, L, E), jnp.float32)
    K2 = jax.random.normal(kk2, (B, L, E), jnp.float32)
    V2 = jax.random.normal(kv2, (B, L, E), jnp.float32)

    params1 = init_block_params(kp1, E)
    params2 = init_block_params(kp2, E)

    x1, x2 = two_cross_attention(Q1, K1, V1, Q2, K2, V2,
                                 params1, params2, H1, H2)
    x1 = jax.block_until_ready(x1)
    x2 = jax.block_until_ready(x2)

    # Verify against pure-JAX f32 reference (bf16 matmuls + approx reciprocal
    # => relaxed tolerance).
    r1 = ref_block(Q1, K2, V2, params1, H1)
    r2 = ref_block(Q2, K1, V1, params2, H2)
    assert jnp.allclose(x1, r1, atol=2e-2, rtol=2e-2), "block1 mismatch"
    assert jnp.allclose(x2, r2, atol=2e-2, rtol=2e-2), "block2 mismatch"

    print("KERNEL_OK")
</pallas_src>

<mosaic_0001>
module attributes {stable_mosaic.version = 11 : i64} {
  func.func @_fused_block_kernel(%arg0: i32, %arg1: i32, %arg2: i32, %arg3: memref<1x1x8x32xf32, #tpu.memory_space<vmem>>, %arg4: memref<1x1x8x32xbf16, #tpu.memory_space<vmem>>, %arg5: memref<1x1x8x32xbf16, #tpu.memory_space<vmem>>, %arg6: memref<1x32x32xbf16, #tpu.memory_space<vmem>>, %arg7: memref<1x32x32xbf16, #tpu.memory_space<vmem>>, %arg8: memref<1x32x32xbf16, #tpu.memory_space<vmem>>, %arg9: memref<1x1x32xf32, #tpu.memory_space<vmem>>, %arg10: memref<1x1x32xf32, #tpu.memory_space<vmem>>, %arg11: memref<1x1x32xf32, #tpu.memory_space<vmem>>, %arg12: memref<1x32x32xbf16, #tpu.memory_space<vmem>>, %arg13: memref<1x1x32xf32, #tpu.memory_space<vmem>>, %arg14: memref<1x1x32xf32, #tpu.memory_space<vmem>>, %arg15: memref<1x1x32xf32, #tpu.memory_space<vmem>>, %arg16: memref<1x32x128xbf16, #tpu.memory_space<vmem>>, %arg17: memref<1x1x128xf32, #tpu.memory_space<vmem>>, %arg18: memref<1x128x32xbf16, #tpu.memory_space<vmem>>, %arg19: memref<1x1x32xf32, #tpu.memory_space<vmem>>, %arg20: memref<1x1x32xf32, #tpu.memory_space<vmem>>, %arg21: memref<1x1x32xf32, #tpu.memory_space<vmem>>, %arg22: memref<1x1x8x32xf32, #tpu.memory_space<vmem>>, %arg23: memref<4x8x8xbf16, #tpu.memory_space<vmem>>, %arg24: memref<4x8x8xbf16, #tpu.memory_space<vmem>>) attributes {dimension_semantics = [#tpu.dimension_semantics<parallel>, #tpu.dimension_semantics<parallel>, #tpu.dimension_semantics<arbitrary>], iteration_bounds = array<i64: 2, 2, 1>, scalar_prefetch = 0 : i64, scratch_operands = 2 : i64, tpu.core_type = #tpu.core_type<tc>, window_params = [{transform_indices = @transform_0, window_bounds = array<i64: 1, 1, 8, 32>}, {transform_indices = @transform_1, window_bounds = array<i64: 1, 1, 8, 32>}, {transform_indices = @transform_2, window_bounds = array<i64: 1, 1, 8, 32>}, {pipeline_mode = #tpu.pipeline_mode<synchronous>, transform_indices = @transform_3, window_bounds = array<i64: 1, 32, 32>}, {pipeline_mode = #tpu.pipeline_mode<synchronous>, transform_indices = @transform_4, window_bounds = array<i64: 1, 32, 32>}, {pipeline_mode = #tpu.pipeline_mode<synchronous>, transform_indices = @transform_5, window_bounds = array<i64: 1, 32, 32>}, {pipeline_mode = #tpu.pipeline_mode<synchronous>, transform_indices = @transform_6, window_bounds = array<i64: 1, 1, 32>}, {pipeline_mode = #tpu.pipeline_mode<synchronous>, transform_indices = @transform_7, window_bounds = array<i64: 1, 1, 32>}, {pipeline_mode = #tpu.pipeline_mode<synchronous>, transform_indices = @transform_8, window_bounds = array<i64: 1, 1, 32>}, {pipeline_mode = #tpu.pipeline_mode<synchronous>, transform_indices = @transform_9, window_bounds = array<i64: 1, 32, 32>}, {pipeline_mode = #tpu.pipeline_mode<synchronous>, transform_indices = @transform_10, window_bounds = array<i64: 1, 1, 32>}, {pipeline_mode = #tpu.pipeline_mode<synchronous>, transform_indices = @transform_11, window_bounds = array<i64: 1, 1, 32>}, {pipeline_mode = #tpu.pipeline_mode<synchronous>, transform_indices = @transform_12, window_bounds = array<i64: 1, 1, 32>}, {pipeline_mode = #tpu.pipeline_mode<synchronous>, transform_indices = @transform_13, window_bounds = array<i64: 1, 32, 128>}, {pipeline_mode = #tpu.pipeline_mode<synchronous>, transform_indices = @transform_14, window_bounds = array<i64: 1, 1, 128>}, {pipeline_mode = #tpu.pipeline_mode<synchronous>, transform_indices = @transform_15, window_bounds = array<i64: 1, 128, 32>}, {pipeline_mode = #tpu.pipeline_mode<synchronous>, transform_indices = @transform_16, window_bounds = array<i64: 1, 1, 32>}, {pipeline_mode = #tpu.pipeline_mode<synchronous>, transform_indices = @transform_17, window_bounds = array<i64: 1, 1, 32>}, {pipeline_mode = #tpu.pipeline_mode<synchronous>, transform_indices = @transform_18, window_bounds = array<i64: 1, 1, 32>}, {transform_indices = @transform_19, window_bounds = array<i64: 1, 1, 8, 32>}]} {
    %c0_i32 = arith.constant 0 : i32
    %0 = arith.cmpi eq, %arg2, %c0_i32 : i32
    %1 = arith.extui %0 : i1 to i32
    %c0_i32_0 = arith.constant 0 : i32
    %2 = arith.cmpi ne, %1, %c0_i32_0 : i32
    scf.if %2 {
      %c0_68 = arith.constant 0 : index
      %c0_69 = arith.constant 0 : index
      %c0_70 = arith.constant 0 : index
      %c0_71 = arith.constant 0 : index
      %120 = vector.load %arg4[%c0_68, %c0_69, %c0_70, %c0_71] : memref<1x1x8x32xbf16, #tpu.memory_space<vmem>>, vector<1x1x8x32xbf16>
      %121 = vector.shape_cast %120 : vector<1x1x8x32xbf16> to vector<8x32xbf16>
      %c0_72 = arith.constant 0 : index
      %c0_73 = arith.constant 0 : index
      %c0_74 = arith.constant 0 : index
      %122 = vector.load %arg7[%c0_72, %c0_73, %c0_74] : memref<1x32x32xbf16, #tpu.memory_space<vmem>>, vector<1x32x32xbf16>
      %123 = vector.shape_cast %122 : vector<1x32x32xbf16> to vector<32x32xbf16>
      %cst_75 = arith.constant dense<0.000000e+00> : vector<8x32xf32>
      %124 = tpu.matmul %121, %123, %cst_75 {dimension_numbers = #tpu.dot_dimension_numbers<[1], [0], [0], [1], [0, 0, 1, 1], [], []>} : vector<8x32xbf16>, vector<32x32xbf16>, vector<8x32xf32> -> vector<8x32xf32>
      %c0_76 = arith.constant 0 : index
      %c0_77 = arith.constant 0 : index
      %c0_78 = arith.constant 0 : index
      %125 = vector.load %arg10[%c0_76, %c0_77, %c0_78] : memref<1x1x32xf32, #tpu.memory_space<vmem>>, vector<1x1x32xf32>
      %126 = vector.shape_cast %125 : vector<1x1x32xf32> to vector<1x32xf32>
      %127 = vector.broadcast %126 : vector<1x32xf32> to vector<8x32xf32>
      %128 = arith.addf %124, %127 : vector<8x32xf32>
      %c0_79 = arith.constant 0 : index
      %c0_80 = arith.constant 0 : index
      %c0_81 = arith.constant 0 : index
      %c0_82 = arith.constant 0 : index
      %129 = vector.load %arg5[%c0_79, %c0_80, %c0_81, %c0_82] : memref<1x1x8x32xbf16, #tpu.memory_space<vmem>>, vector<1x1x8x32xbf16>
      %130 = vector.shape_cast %129 : vector<1x1x8x32xbf16> to vector<8x32xbf16>
      %c0_83 = arith.constant 0 : index
      %c0_84 = arith.constant 0 : index
      %c0_85 = arith.constant 0 : index
      %131 = vector.load %arg8[%c0_83, %c0_84, %c0_85] : memref<1x32x32xbf16, #tpu.memory_space<vmem>>, vector<1x32x32xbf16>
      %132 = vector.shape_cast %131 : vector<1x32x32xbf16> to vector<32x32xbf16>
      %cst_86 = arith.constant dense<0.000000e+00> : vector<8x32xf32>
      %133 = tpu.matmul %130, %132, %cst_86 {dimension_numbers = #tpu.dot_dimension_numbers<[1], [0], [0], [1], [0, 0, 1, 1], [], []>} : vector<8x32xbf16>, vector<32x32xbf16>, vector<8x32xf32> -> vector<8x32xf32>
      %c0_87 = arith.constant 0 : index
      %c0_88 = arith.constant 0 : index
      %c0_89 = arith.constant 0 : index
      %134 = vector.load %arg11[%c0_87, %c0_88, %c0_89] : memref<1x1x32xf32, #tpu.memory_space<vmem>>, vector<1x1x32xf32>
      %135 = vector.shape_cast %134 : vector<1x1x32xf32> to vector<1x32xf32>
      %136 = vector.broadcast %135 : vector<1x32xf32> to vector<8x32xf32>
      %137 = arith.addf %133, %136 : vector<8x32xf32>
      %138 = vector.shape_cast %128 : vector<8x32xf32> to vector<8x4x8xf32>
      %139 = tpu.transpose %138, [1, 0, 2] : vector<8x4x8xf32> -> vector<4x8x8xf32>
      %140 = arith.truncf %139 : vector<4x8x8xf32> to vector<4x8x8xbf16>
      %c0_90 = arith.constant 0 : index
      %c0_91 = arith.constant 0 : index
      %c0_92 = arith.constant 0 : index
      %141 = vector.load %arg23[%c0_90, %c0_91, %c0_92] : memref<4x8x8xbf16, #tpu.memory_space<vmem>>, vector<4x8x8xbf16>
      tpu.vector_store %arg23[%c0_90, %c0_91, %c0_92], %140 {strides = array<i32>} : memref<4x8x8xbf16, #tpu.memory_space<vmem>>, vector<4x8x8xbf16>,
      %142 = vector.shape_cast %137 : vector<8x32xf32> to vector<8x4x8xf32>
      %143 = tpu.transpose %142, [1, 0, 2] : vector<8x4x8xf32> -> vector<4x8x8xf32>
      %144 = arith.truncf %143 : vector<4x8x8xf32> to vector<4x8x8xbf16>
      %c0_93 = arith.constant 0 : index
      %c0_94 = arith.constant 0 : index
      %c0_95 = arith.constant 0 : index
      %145 = vector.load %arg24[%c0_93, %c0_94, %c0_95] : memref<4x8x8xbf16, #tpu.memory_space<vmem>>, vector<4x8x8xbf16>
      tpu.vector_store %arg24[%c0_93, %c0_94, %c0_95], %144 {strides = array<i32>} : memref<4x8x8xbf16, #tpu.memory_space<vmem>>, vector<4x8x8xbf16>,
    } else {
    }
    %c0 = arith.constant 0 : index
    %c0_1 = arith.constant 0 : index
    %c0_2 = arith.constant 0 : index
    %c0_3 = arith.constant 0 : index
    %3 = vector.load %arg3[%c0, %c0_1, %c0_2, %c0_3] : memref<1x1x8x32xf32, #tpu.memory_space<vmem>>, vector<1x1x8x32xf32>
    %4 = vector.shape_cast %3 : vector<1x1x8x32xf32> to vector<8x32xf32>
    %5 = arith.truncf %4 : vector<8x32xf32> to vector<8x32xbf16>
    %c0_4 = arith.constant 0 : index
    %c0_5 = arith.constant 0 : index
    %c0_6 = arith.constant 0 : index
    %6 = vector.load %arg6[%c0_4, %c0_5, %c0_6] : memref<1x32x32xbf16, #tpu.memory_space<vmem>>, vector<1x32x32xbf16>
    %7 = vector.shape_cast %6 : vector<1x32x32xbf16> to vector<32x32xbf16>
    %cst = arith.constant dense<0.000000e+00> : vector<8x32xf32>
    %8 = tpu.matmul %5, %7, %cst {dimension_numbers = #tpu.dot_dimension_numbers<[1], [0], [0], [1], [0, 0, 1, 1], [], []>} : vector<8x32xbf16>, vector<32x32xbf16>, vector<8x32xf32> -> vector<8x32xf32>
    %c0_7 = arith.constant 0 : index
    %c0_8 = arith.constant 0 : index
    %c0_9 = arith.constant 0 : index
    %9 = vector.load %arg9[%c0_7, %c0_8, %c0_9] : memref<1x1x32xf32, #tpu.memory_space<vmem>>, vector<1x1x32xf32>
    %10 = vector.shape_cast %9 : vector<1x1x32xf32> to vector<1x32xf32>
    %11 = vector.broadcast %10 : vector<1x32xf32> to vector<8x32xf32>
    %12 = arith.addf %8, %11 : vector<8x32xf32>
    %13 = arith.truncf %12 : vector<8x32xf32> to vector<8x32xbf16>
    %14 = vector.shape_cast %13 : vector<8x32xbf16> to vector<8x4x8xbf16>
    %15 = tpu.transpose %14, [1, 0, 2] : vector<8x4x8xbf16> -> vector<4x8x8xbf16>
    %c0_10 = arith.constant 0 : index
    %c0_11 = arith.constant 0 : index
    %c0_12 = arith.constant 0 : index
    %16 = vector.load %arg23[%c0_10, %c0_11, %c0_12] : memref<4x8x8xbf16, #tpu.memory_space<vmem>>, vector<4x8x8xbf16>
    "tpu.trace_start"() <{level = 10 : i32, message = "hqd,hkd->hqk"}> : () -> ()
    %cst_13 = arith.constant dense<0.000000e+00> : vector<4x8x8xf32>
    %17 = tpu.matmul %15, %16, %cst_13 {dimension_numbers = #tpu.dot_dimension_numbers<[2], [2], [1], [1], [0, 0, 0, 1, 1, 1], [0], [0]>} : vector<4x8x8xbf16>, vector<4x8x8xbf16>, vector<4x8x8xf32> -> vector<4x8x8xf32>
    "tpu.trace_stop"() : () -> ()
    %cst_14 = arith.constant dense<0xFF800000> : vector<4x8xf32>
    %18 = vector.multi_reduction <maximumf>, %17, %cst_14 [2] : vector<4x8x8xf32> to vector<4x8xf32>
    %19 = vector.shape_cast %18 : vector<4x8xf32> to vector<4x8x1xf32>
    %20 = vector.broadcast %19 : vector<4x8x1xf32> to vector<4x8x8xf32>
    %21 = arith.subf %17, %20 : vector<4x8x8xf32>
    %22 = math.exp %21 : vector<4x8x8xf32>
    %cst_15 = arith.constant dense<0.000000e+00> : vector<4x8xf32>
    %23 = vector.multi_reduction <add>, %22, %cst_15 [2] : vector<4x8x8xf32> to vector<4x8xf32>
    %24 = vector.shape_cast %23 : vector<4x8xf32> to vector<4x8x1xf32>
    %25 = tpu.reciprocal %24 {approx = true} : vector<4x8x1xf32> -> vector<4x8x1xf32>
    %26 = vector.broadcast %25 : vector<4x8x1xf32> to vector<4x8x8xf32>
    %27 = arith.mulf %22, %26 : vector<4x8x8xf32>
    %28 = arith.truncf %27 : vector<4x8x8xf32> to vector<4x8x8xbf16>
    %c0_16 = arith.constant 0 : index
    %c0_17 = arith.constant 0 : index
    %c0_18 = arith.constant 0 : index
    %29 = vector.load %arg24[%c0_16, %c0_17, %c0_18] : memref<4x8x8xbf16, #tpu.memory_space<vmem>>, vector<4x8x8xbf16>
    "tpu.trace_start"() <{level = 10 : i32, message = "hqk,hkd->hqd"}> : () -> ()
    %cst_19 = arith.constant dense<0.000000e+00> : vector<4x8x8xf32>
    %30 = tpu.matmul %28, %29, %cst_19 {dimension_numbers = #tpu.dot_dimension_numbers<[2], [1], [1], [2], [0, 0, 0, 1, 1, 2], [0], [0]>} : vector<4x8x8xbf16>, vector<4x8x8xbf16>, vector<4x8x8xf32> -> vector<4x8x8xf32>
    "tpu.trace_stop"() : () -> ()
    %31 = tpu.transpose %30, [1, 0, 2] : vector<4x8x8xf32> -> vector<8x4x8xf32>
    %32 = vector.shape_cast %31 : vector<8x4x8xf32> to vector<8x32xf32>
    %33 = arith.truncf %32 : vector<8x32xf32> to vector<8x32xbf16>
    %c0_20 = arith.constant 0 : index
    %c0_21 = arith.constant 0 : index
    %c0_22 = arith.constant 0 : index
    %34 = vector.load %arg12[%c0_20, %c0_21, %c0_22] : memref<1x32x32xbf16, #tpu.memory_space<vmem>>, vector<1x32x32xbf16>
    %35 = vector.shape_cast %34 : vector<1x32x32xbf16> to vector<32x32xbf16>
    %cst_23 = arith.constant dense<0.000000e+00> : vector<8x32xf32>
    %36 = tpu.matmul %33, %35, %cst_23 {dimension_numbers = #tpu.dot_dimension_numbers<[1], [0], [0], [1], [0, 0, 1, 1], [], []>} : vector<8x32xbf16>, vector<32x32xbf16>, vector<8x32xf32> -> vector<8x32xf32>
    %c0_24 = arith.constant 0 : index
    %c0_25 = arith.constant 0 : index
    %c0_26 = arith.constant 0 : index
    %37 = vector.load %arg13[%c0_24, %c0_25, %c0_26] : memref<1x1x32xf32, #tpu.memory_space<vmem>>, vector<1x1x32xf32>
    %38 = vector.shape_cast %37 : vector<1x1x32xf32> to vector<1x32xf32>
    %39 = vector.broadcast %38 : vector<1x32xf32> to vector<8x32xf32>
    %40 = arith.addf %36, %39 : vector<8x32xf32>
    %41 = arith.addf %40, %4 : vector<8x32xf32>
    %c0_27 = arith.constant 0 : index
    %c0_28 = arith.constant 0 : index
    %c0_29 = arith.constant 0 : index
    %42 = vector.load %arg14[%c0_27, %c0_28, %c0_29] : memref<1x1x32xf32, #tpu.memory_space<vmem>>, vector<1x1x32xf32>
    %43 = vector.shape_cast %42 : vector<1x1x32xf32> to vector<1x32xf32>
    %c0_30 = arith.constant 0 : index
    %c0_31 = arith.constant 0 : index
    %c0_32 = arith.constant 0 : index
    %44 = vector.load %arg15[%c0_30, %c0_31, %c0_32] : memref<1x1x32xf32, #tpu.memory_space<vmem>>, vector<1x1x32xf32>
    %45 = vector.shape_cast %44 : vector<1x1x32xf32> to vector<1x32xf32>
    %cst_33 = arith.constant dense<0.000000e+00> : vector<8xf32>
    %46 = vector.multi_reduction <add>, %41, %cst_33 [1] : vector<8x32xf32> to vector<8xf32>
    %47 = vector.shape_cast %46 : vector<8xf32> to vector<8x1xf32>
    %cst_34 = arith.constant 3.200000e+01 : f32
    %48 = vector.broadcast %cst_34 : f32 to vector<8x1xf32>
    %49 = arith.divf %47, %48 : vector<8x1xf32>
    %50 = vector.broadcast %49 : vector<8x1xf32> to vector<8x32xf32>
    %51 = arith.subf %41, %50 : vector<8x32xf32>
    %52 = vector.broadcast %49 : vector<8x1xf32> to vector<8x32xf32>
    %53 = arith.subf %41, %52 : vector<8x32xf32>
    %54 = arith.mulf %51, %53 : vector<8x32xf32>
    %cst_35 = arith.constant dense<0.000000e+00> : vector<8xf32>
    %55 = vector.multi_reduction <add>, %54, %cst_35 [1] : vector<8x32xf32> to vector<8xf32>
    %56 = vector.shape_cast %55 : vector<8xf32> to vector<8x1xf32>
    %cst_36 = arith.constant 3.200000e+01 : f32
    %57 = vector.broadcast %cst_36 : f32 to vector<8x1xf32>
    %58 = arith.divf %56, %57 : vector<8x1xf32>
    %59 = vector.broadcast %49 : vector<8x1xf32> to vector<8x32xf32>
    %60 = arith.subf %41, %59 : vector<8x32xf32>
    %cst_37 = arith.constant 9.99999974E-6 : f32
    %61 = vector.broadcast %cst_37 : f32 to vector<8x1xf32>
    %62 = arith.addf %58, %61 : vector<8x1xf32>
    %63 = math.rsqrt %62 : vector<8x1xf32>
    %64 = vector.broadcast %63 : vector<8x1xf32> to vector<8x32xf32>
    %65 = arith.mulf %60, %64 : vector<8x32xf32>
    %66 = vector.broadcast %43 : vector<1x32xf32> to vector<8x32xf32>
    %67 = arith.mulf %65, %66 : vector<8x32xf32>
    %68 = vector.broadcast %45 : vector<1x32xf32> to vector<8x32xf32>
    %69 = arith.addf %67, %68 : vector<8x32xf32>
    %70 = arith.truncf %69 : vector<8x32xf32> to vector<8x32xbf16>
    %c0_38 = arith.constant 0 : index
    %c0_39 = arith.constant 0 : index
    %c0_40 = arith.constant 0 : index
    %71 = vector.load %arg16[%c0_38, %c0_39, %c0_40] : memref<1x32x128xbf16, #tpu.memory_space<vmem>>, vector<1x32x128xbf16>
    %72 = vector.shape_cast %71 : vector<1x32x128xbf16> to vector<32x128xbf16>
    %cst_41 = arith.constant dense<0.000000e+00> : vector<8x128xf32>
    %73 = tpu.matmul %70, %72, %cst_41 {dimension_numbers = #tpu.dot_dimension_numbers<[1], [0], [0], [1], [0, 0, 1, 1], [], []>} : vector<8x32xbf16>, vector<32x128xbf16>, vector<8x128xf32> -> vector<8x128xf32>
    %c0_42 = arith.constant 0 : index
    %c0_43 = arith.constant 0 : index
    %c0_44 = arith.constant 0 : index
    %74 = vector.load %arg17[%c0_42, %c0_43, %c0_44] : memref<1x1x128xf32, #tpu.memory_space<vmem>>, vector<1x1x128xf32>
    %75 = vector.shape_cast %74 : vector<1x1x128xf32> to vector<1x128xf32>
    %76 = vector.broadcast %75 : vector<1x128xf32> to vector<8x128xf32>
    %77 = arith.addf %73, %76 : vector<8x128xf32>
    %cst_45 = arith.constant 0.000000e+00 : f32
    %78 = vector.broadcast %cst_45 : f32 to vector<8x128xf32>
    %79 = arith.maximumf %77, %78 : vector<8x128xf32>
    %80 = arith.truncf %79 : vector<8x128xf32> to vector<8x128xbf16>
    %c0_46 = arith.constant 0 : index
    %c0_47 = arith.constant 0 : index
    %c0_48 = arith.constant 0 : index
    %81 = vector.load %arg18[%c0_46, %c0_47, %c0_48] : memref<1x128x32xbf16, #tpu.memory_space<vmem>>, vector<1x128x32xbf16>
    %82 = vector.shape_cast %81 : vector<1x128x32xbf16> to vector<128x32xbf16>
    %cst_49 = arith.constant dense<0.000000e+00> : vector<8x32xf32>
    %83 = tpu.matmul %80, %82, %cst_49 {dimension_numbers = #tpu.dot_dimension_numbers<[1], [0], [0], [1], [0, 0, 1, 1], [], []>} : vector<8x128xbf16>, vector<128x32xbf16>, vector<8x32xf32> -> vector<8x32xf32>
    %c0_50 = arith.constant 0 : index
    %c0_51 = arith.constant 0 : index
    %c0_52 = arith.constant 0 : index
    %84 = vector.load %arg19[%c0_50, %c0_51, %c0_52] : memref<1x1x32xf32, #tpu.memory_space<vmem>>, vector<1x1x32xf32>
    %85 = vector.shape_cast %84 : vector<1x1x32xf32> to vector<1x32xf32>
    %86 = vector.broadcast %85 : vector<1x32xf32> to vector<8x32xf32>
    %87 = arith.addf %83, %86 : vector<8x32xf32>
    %88 = arith.addf %69, %87 : vector<8x32xf32>
    %c0_53 = arith.constant 0 : index
    %c0_54 = arith.constant 0 : index
    %c0_55 = arith.constant 0 : index
    %89 = vector.load %arg20[%c0_53, %c0_54, %c0_55] : memref<1x1x32xf32, #tpu.memory_space<vmem>>, vector<1x1x32xf32>
    %90 = vector.shape_cast %89 : vector<1x1x32xf32> to vector<1x32xf32>
    %c0_56 = arith.constant 0 : index
    %c0_57 = arith.constant 0 : index
    %c0_58 = arith.constant 0 : index
    %91 = vector.load %arg21[%c0_56, %c0_57, %c0_58] : memref<1x1x32xf32, #tpu.memory_space<vmem>>, vector<1x1x32xf32>
    %92 = vector.shape_cast %91 : vector<1x1x32xf32> to vector<1x32xf32>
    %cst_59 = arith.constant dense<0.000000e+00> : vector<8xf32>
    %93 = vector.multi_reduction <add>, %88, %cst_59 [1] : vector<8x32xf32> to vector<8xf32>
    %94 = vector.shape_cast %93 : vector<8xf32> to vector<8x1xf32>
    %cst_60 = arith.constant 3.200000e+01 : f32
    %95 = vector.broadcast %cst_60 : f32 to vector<8x1xf32>
    %96 = arith.divf %94, %95 : vector<8x1xf32>
    %97 = vector.broadcast %96 : vector<8x1xf32> to vector<8x32xf32>
    %98 = arith.subf %88, %97 : vector<8x32xf32>
    %99 = vector.broadcast %96 : vector<8x1xf32> to vector<8x32xf32>
    %100 = arith.subf %88, %99 : vector<8x32xf32>
    %101 = arith.mulf %98, %100 : vector<8x32xf32>
    %cst_61 = arith.constant dense<0.000000e+00> : vector<8xf32>
    %102 = vector.multi_reduction <add>, %101, %cst_61 [1] : vector<8x32xf32> to vector<8xf32>
    %103 = vector.shape_cast %102 : vector<8xf32> to vector<8x1xf32>
    %cst_62 = arith.constant 3.200000e+01 : f32
    %104 = vector.broadcast %cst_62 : f32 to vector<8x1xf32>
    %105 = arith.divf %103, %104 : vector<8x1xf32>
    %106 = vector.broadcast %96 : vector<8x1xf32> to vector<8x32xf32>
    %107 = arith.subf %88, %106 : vector<8x32xf32>
    %cst_63 = arith.constant 9.99999974E-6 : f32
    %108 = vector.broadcast %cst_63 : f32 to vector<8x1xf32>
    %109 = arith.addf %105, %108 : vector<8x1xf32>
    %110 = math.rsqrt %109 : vector<8x1xf32>
    %111 = vector.broadcast %110 : vector<8x1xf32> to vector<8x32xf32>
    %112 = arith.mulf %107, %111 : vector<8x32xf32>
    %113 = vector.broadcast %90 : vector<1x32xf32> to vector<8x32xf32>
    %114 = arith.mulf %112, %113 : vector<8x32xf32>
    %115 = vector.broadcast %92 : vector<1x32xf32> to vector<8x32xf32>
    %116 = arith.addf %114, %115 : vector<8x32xf32>
    %c0_64 = arith.constant 0 : index
    %c0_65 = arith.constant 0 : index
    %c0_66 = arith.constant 0 : index
    %c0_67 = arith.constant 0 : index
    %117 = vector.load %arg22[%c0_64, %c0_65, %c0_66, %c0_67] : memref<1x1x8x32xf32, #tpu.memory_space<vmem>>, vector<1x1x8x32xf32>
    %118 = vector.shape_cast %117 : vector<1x1x8x32xf32> to vector<8x32xf32>
    %119 = vector.shape_cast %116 : vector<8x32xf32> to vector<1x1x8x32xf32>
    tpu.vector_store %arg22[%c0_64, %c0_65, %c0_66, %c0_67], %119 {strides = array<i32>} : memref<1x1x8x32xf32, #tpu.memory_space<vmem>>, vector<1x1x8x32xf32>,
    return
  }
  func.func @transform_0(%arg0: i32, %arg1: i32, %arg2: i32) -> (i32, i32, i32, i32) {
    %c0_i32 = arith.constant 0 : i32
    %c0_i32_0 = arith.constant 0 : i32
    return %arg0, %arg1, %arg2, %c0_i32 : i32, i32, i32, i32
  }
  func.func @transform_1(%arg0: i32, %arg1: i32, %arg2: i32) -> (i32, i32, i32, i32) {
    %c0_i32 = arith.constant 0 : i32
    %c0_i32_0 = arith.constant 0 : i32
    %c0_i32_1 = arith.constant 0 : i32
    return %arg0, %arg1, %c0_i32, %c0_i32_0 : i32, i32, i32, i32
  }
  func.func @transform_2(%arg0: i32, %arg1: i32, %arg2: i32) -> (i32, i32, i32, i32) {
    %c0_i32 = arith.constant 0 : i32
    %c0_i32_0 = arith.constant 0 : i32
    %c0_i32_1 = arith.constant 0 : i32
    return %arg0, %arg1, %c0_i32, %c0_i32_0 : i32, i32, i32, i32
  }
  func.func @transform_3(%arg0: i32, %arg1: i32, %arg2: i32) -> (i32, i32, i32) {
    %c0_i32 = arith.constant 0 : i32
    %c0_i32_0 = arith.constant 0 : i32
    %c0_i32_1 = arith.constant 0 : i32
    return %arg0, %c0_i32, %c0_i32_0 : i32, i32, i32
  }
  func.func @transform_4(%arg0: i32, %arg1: i32, %arg2: i32) -> (i32, i32, i32) {
    %c0_i32 = arith.constant 0 : i32
    %c0_i32_0 = arith.constant 0 : i32
    %c0_i32_1 = arith.constant 0 : i32
    return %arg0, %c0_i32, %c0_i32_0 : i32, i32, i32
  }
  func.func @transform_5(%arg0: i32, %arg1: i32, %arg2: i32) -> (i32, i32, i32) {
    %c0_i32 = arith.constant 0 : i32
    %c0_i32_0 = arith.constant 0 : i32
    %c0_i32_1 = arith.constant 0 : i32
    return %arg0, %c0_i32, %c0_i32_0 : i32, i32, i32
  }
  func.func @transform_6(%arg0: i32, %arg1: i32, %arg2: i32) -> (i32, i32, i32) {
    %c0_i32 = arith.constant 0 : i32
    %c0_i32_0 = arith.constant 0 : i32
    %c0_i32_1 = arith.constant 0 : i32
    return %arg0, %c0_i32, %c0_i32_0 : i32, i32, i32
  }
  func.func @transform_7(%arg0: i32, %arg1: i32, %arg2: i32) -> (i32, i32, i32) {
    %c0_i32 = arith.constant 0 : i32
    %c0_i32_0 = arith.constant 0 : i32
    %c0_i32_1 = arith.constant 0 : i32
    return %arg0, %c0_i32, %c0_i32_0 : i32, i32, i32
  }
  func.func @transform_8(%arg0: i32, %arg1: i32, %arg2: i32) -> (i32, i32, i32) {
    %c0_i32 = arith.constant 0 : i32
    %c0_i32_0 = arith.constant 0 : i32
    %c0_i32_1 = arith.constant 0 : i32
    return %arg0, %c0_i32, %c0_i32_0 : i32, i32, i32
  }
  func.func @transform_9(%arg0: i32, %arg1: i32, %arg2: i32) -> (i32, i32, i32) {
    %c0_i32 = arith.constant 0 : i32
    %c0_i32_0 = arith.constant 0 : i32
    %c0_i32_1 = arith.constant 0 : i32
    return %arg0, %c0_i32, %c0_i32_0 : i32, i32, i32
  }
  func.func @transform_10(%arg0: i32, %arg1: i32, %arg2: i32) -> (i32, i32, i32) {
    %c0_i32 = arith.constant 0 : i32
    %c0_i32_0 = arith.constant 0 : i32
    %c0_i32_1 = arith.constant 0 : i32
    return %arg0, %c0_i32, %c0_i32_0 : i32, i32, i32
  }
  func.func @transform_11(%arg0: i32, %arg1: i32, %arg2: i32) -> (i32, i32, i32) {
    %c0_i32 = arith.constant 0 : i32
    %c0_i32_0 = arith.constant 0 : i32
    %c0_i32_1 = arith.constant 0 : i32
    return %arg0, %c0_i32, %c0_i32_0 : i32, i32, i32
  }
  func.func @transform_12(%arg0: i32, %arg1: i32, %arg2: i32) -> (i32, i32, i32) {
    %c0_i32 = arith.constant 0 : i32
    %c0_i32_0 = arith.constant 0 : i32
    %c0_i32_1 = arith.constant 0 : i32
    return %arg0, %c0_i32, %c0_i32_0 : i32, i32, i32
  }
  func.func @transform_13(%arg0: i32, %arg1: i32, %arg2: i32) -> (i32, i32, i32) {
    %c0_i32 = arith.constant 0 : i32
    %c0_i32_0 = arith.constant 0 : i32
    %c0_i32_1 = arith.constant 0 : i32
    return %arg0, %c0_i32, %c0_i32_0 : i32, i32, i32
  }
  func.func @transform_14(%arg0: i32, %arg1: i32, %arg2: i32) -> (i32, i32, i32) {
    %c0_i32 = arith.constant 0 : i32
    %c0_i32_0 = arith.constant 0 : i32
    %c0_i32_1 = arith.constant 0 : i32
    return %arg0, %c0_i32, %c0_i32_0 : i32, i32, i32
  }
  func.func @transform_15(%arg0: i32, %arg1: i32, %arg2: i32) -> (i32, i32, i32) {
    %c0_i32 = arith.constant 0 : i32
    %c0_i32_0 = arith.constant 0 : i32
    %c0_i32_1 = arith.constant 0 : i32
    return %arg0, %c0_i32, %c0_i32_0 : i32, i32, i32
  }
  func.func @transform_16(%arg0: i32, %arg1: i32, %arg2: i32) -> (i32, i32, i32) {
    %c0_i32 = arith.constant 0 : i32
    %c0_i32_0 = arith.constant 0 : i32
    %c0_i32_1 = arith.constant 0 : i32
    return %arg0, %c0_i32, %c0_i32_0 : i32, i32, i32
  }
  func.func @transform_17(%arg0: i32, %arg1: i32, %arg2: i32) -> (i32, i32, i32) {
    %c0_i32 = arith.constant 0 : i32
    %c0_i32_0 = arith.constant 0 : i32
    %c0_i32_1 = arith.constant 0 : i32
    return %arg0, %c0_i32, %c0_i32_0 : i32, i32, i32
  }
  func.func @transform_18(%arg0: i32, %arg1: i32, %arg2: i32) -> (i32, i32, i32) {
    %c0_i32 = arith.constant 0 : i32
    %c0_i32_0 = arith.constant 0 : i32
    %c0_i32_1 = arith.constant 0 : i32
    return %arg0, %c0_i32, %c0_i32_0 : i32, i32, i32
  }
  func.func @transform_19(%arg0: i32, %arg1: i32, %arg2: i32) -> (i32, i32, i32, i32) {
    %c0_i32 = arith.constant 0 : i32
    %c0_i32_0 = arith.constant 0 : i32
    return %arg0, %arg1, %arg2, %c0_i32 : i32, i32, i32, i32
  }
}

module attributes {stable_mosaic.version = 11 : i64} {
  func.func @_fused_block_kernel(%arg0: i32, %arg1: i32, %arg2: i32, %arg3: memref<1x1x8x32xf32, #tpu.memory_space<vmem>>, %arg4: memref<1x1x8x32xbf16, #tpu.memory_space<vmem>>, %arg5: memref<1x1x8x32xbf16, #tpu.memory_space<vmem>>, %arg6: memref<1x32x32xbf16, #tpu.memory_space<vmem>>, %arg7: memref<1x32x32xbf16, #tpu.memory_space<vmem>>, %arg8: memref<1x32x32xbf16, #tpu.memory_space<vmem>>, %arg9: memref<1x1x32xf32, #tpu.memory_space<vmem>>, %arg10: memref<1x1x32xf32, #tpu.memory_space<vmem>>, %arg11: memref<1x1x32xf32, #tpu.memory_space<vmem>>, %arg12: memref<1x32x32xbf16, #tpu.memory_space<vmem>>, %arg13: memref<1x1x32xf32, #tpu.memory_space<vmem>>, %arg14: memref<1x1x32xf32, #tpu.memory_space<vmem>>, %arg15: memref<1x1x32xf32, #tpu.memory_space<vmem>>, %arg16: memref<1x32x128xbf16, #tpu.memory_space<vmem>>, %arg17: memref<1x1x128xf32, #tpu.memory_space<vmem>>, %arg18: memref<1x128x32xbf16, #tpu.memory_space<vmem>>, %arg19: memref<1x1x32xf32, #tpu.memory_space<vmem>>, %arg20: memref<1x1x32xf32, #tpu.memory_space<vmem>>, %arg21: memref<1x1x32xf32, #tpu.memory_space<vmem>>, %arg22: memref<1x1x8x32xf32, #tpu.memory_space<vmem>>, %arg23: memref<4x8x8xbf16, #tpu.memory_space<vmem>>, %arg24: memref<4x8x8xbf16, #tpu.memory_space<vmem>>) attributes {dimension_semantics = [#tpu.dimension_semantics<parallel>, #tpu.dimension_semantics<parallel>, #tpu.dimension_semantics<arbitrary>], iteration_bounds = array<i64: 2, 2, 1>, scalar_prefetch = 0 : i64, scratch_operands = 2 : i64, tpu.core_type = #tpu.core_type<tc>, window_params = [{transform_indices = @transform_0, window_bounds = array<i64: 1, 1, 8, 32>}, {transform_indices = @transform_1, window_bounds = array<i64: 1, 1, 8, 32>}, {transform_indices = @transform_2, window_bounds = array<i64: 1, 1, 8, 32>}, {transform_indices = @transform_3, window_bounds = array<i64: 1, 32, 32>}, {transform_indices = @transform_4, window_bounds = array<i64: 1, 32, 32>}, {transform_indices = @transform_5, window_bounds = array<i64: 1, 32, 32>}, {transform_indices = @transform_6, window_bounds = array<i64: 1, 1, 32>}, {transform_indices = @transform_7, window_bounds = array<i64: 1, 1, 32>}, {transform_indices = @transform_8, window_bounds = array<i64: 1, 1, 32>}, {transform_indices = @transform_9, window_bounds = array<i64: 1, 32, 32>}, {transform_indices = @transform_10, window_bounds = array<i64: 1, 1, 32>}, {transform_indices = @transform_11, window_bounds = array<i64: 1, 1, 32>}, {transform_indices = @transform_12, window_bounds = array<i64: 1, 1, 32>}, {transform_indices = @transform_13, window_bounds = array<i64: 1, 32, 128>}, {transform_indices = @transform_14, window_bounds = array<i64: 1, 1, 128>}, {transform_indices = @transform_15, window_bounds = array<i64: 1, 128, 32>}, {transform_indices = @transform_16, window_bounds = array<i64: 1, 1, 32>}, {transform_indices = @transform_17, window_bounds = array<i64: 1, 1, 32>}, {transform_indices = @transform_18, window_bounds = array<i64: 1, 1, 32>}, {transform_indices = @transform_19, window_bounds = array<i64: 1, 1, 8, 32>}]} {
    %c0_i32 = arith.constant 0 : i32
    %0 = arith.cmpi eq, %arg2, %c0_i32 : i32
    %1 = arith.extui %0 : i1 to i32
    %c0_i32_0 = arith.constant 0 : i32
    %2 = arith.cmpi ne, %1, %c0_i32_0 : i32
    scf.if %2 {
      %c0_68 = arith.constant 0 : index
      %c0_69 = arith.constant 0 : index
      %c0_70 = arith.constant 0 : index
      %c0_71 = arith.constant 0 : index
      %120 = vector.load %arg4[%c0_68, %c0_69, %c0_70, %c0_71] : memref<1x1x8x32xbf16, #tpu.memory_space<vmem>>, vector<1x1x8x32xbf16>
      %121 = vector.shape_cast %120 : vector<1x1x8x32xbf16> to vector<8x32xbf16>
      %c0_72 = arith.constant 0 : index
      %c0_73 = arith.constant 0 : index
      %c0_74 = arith.constant 0 : index
      %122 = vector.load %arg7[%c0_72, %c0_73, %c0_74] : memref<1x32x32xbf16, #tpu.memory_space<vmem>>, vector<1x32x32xbf16>
      %123 = vector.shape_cast %122 : vector<1x32x32xbf16> to vector<32x32xbf16>
      %cst_75 = arith.constant dense<0.000000e+00> : vector<8x32xf32>
      %124 = tpu.matmul %121, %123, %cst_75 {dimension_numbers = #tpu.dot_dimension_numbers<[1], [0], [0], [1], [0, 0, 1, 1], [], []>} : vector<8x32xbf16>, vector<32x32xbf16>, vector<8x32xf32> -> vector<8x32xf32>
      %c0_76 = arith.constant 0 : index
      %c0_77 = arith.constant 0 : index
      %c0_78 = arith.constant 0 : index
      %125 = vector.load %arg10[%c0_76, %c0_77, %c0_78] : memref<1x1x32xf32, #tpu.memory_space<vmem>>, vector<1x1x32xf32>
      %126 = vector.shape_cast %125 : vector<1x1x32xf32> to vector<1x32xf32>
      %127 = vector.broadcast %126 : vector<1x32xf32> to vector<8x32xf32>
      %128 = arith.addf %124, %127 : vector<8x32xf32>
      %c0_79 = arith.constant 0 : index
      %c0_80 = arith.constant 0 : index
      %c0_81 = arith.constant 0 : index
      %c0_82 = arith.constant 0 : index
      %129 = vector.load %arg5[%c0_79, %c0_80, %c0_81, %c0_82] : memref<1x1x8x32xbf16, #tpu.memory_space<vmem>>, vector<1x1x8x32xbf16>
      %130 = vector.shape_cast %129 : vector<1x1x8x32xbf16> to vector<8x32xbf16>
      %c0_83 = arith.constant 0 : index
      %c0_84 = arith.constant 0 : index
      %c0_85 = arith.constant 0 : index
      %131 = vector.load %arg8[%c0_83, %c0_84, %c0_85] : memref<1x32x32xbf16, #tpu.memory_space<vmem>>, vector<1x32x32xbf16>
      %132 = vector.shape_cast %131 : vector<1x32x32xbf16> to vector<32x32xbf16>
      %cst_86 = arith.constant dense<0.000000e+00> : vector<8x32xf32>
      %133 = tpu.matmul %130, %132, %cst_86 {dimension_numbers = #tpu.dot_dimension_numbers<[1], [0], [0], [1], [0, 0, 1, 1], [], []>} : vector<8x32xbf16>, vector<32x32xbf16>, vector<8x32xf32> -> vector<8x32xf32>
      %c0_87 = arith.constant 0 : index
      %c0_88 = arith.constant 0 : index
      %c0_89 = arith.constant 0 : index
      %134 = vector.load %arg11[%c0_87, %c0_88, %c0_89] : memref<1x1x32xf32, #tpu.memory_space<vmem>>, vector<1x1x32xf32>
      %135 = vector.shape_cast %134 : vector<1x1x32xf32> to vector<1x32xf32>
      %136 = vector.broadcast %135 : vector<1x32xf32> to vector<8x32xf32>
      %137 = arith.addf %133, %136 : vector<8x32xf32>
      %138 = vector.shape_cast %128 : vector<8x32xf32> to vector<8x4x8xf32>
      %139 = tpu.transpose %138, [1, 0, 2] : vector<8x4x8xf32> -> vector<4x8x8xf32>
      %140 = arith.truncf %139 : vector<4x8x8xf32> to vector<4x8x8xbf16>
      %c0_90 = arith.constant 0 : index
      %c0_91 = arith.constant 0 : index
      %c0_92 = arith.constant 0 : index
      %141 = vector.load %arg23[%c0_90, %c0_91, %c0_92] : memref<4x8x8xbf16, #tpu.memory_space<vmem>>, vector<4x8x8xbf16>
      tpu.vector_store %arg23[%c0_90, %c0_91, %c0_92], %140 {strides = array<i32>} : memref<4x8x8xbf16, #tpu.memory_space<vmem>>, vector<4x8x8xbf16>,
      %142 = vector.shape_cast %137 : vector<8x32xf32> to vector<8x4x8xf32>
      %143 = tpu.transpose %142, [1, 0, 2] : vector<8x4x8xf32> -> vector<4x8x8xf32>
      %144 = arith.truncf %143 : vector<4x8x8xf32> to vector<4x8x8xbf16>
      %c0_93 = arith.constant 0 : index
      %c0_94 = arith.constant 0 : index
      %c0_95 = arith.constant 0 : index
      %145 = vector.load %arg24[%c0_93, %c0_94, %c0_95] : memref<4x8x8xbf16, #tpu.memory_space<vmem>>, vector<4x8x8xbf16>
      tpu.vector_store %arg24[%c0_93, %c0_94, %c0_95], %144 {strides = array<i32>} : memref<4x8x8xbf16, #tpu.memory_space<vmem>>, vector<4x8x8xbf16>,
    } else {
    }
    %c0 = arith.constant 0 : index
    %c0_1 = arith.constant 0 : index
    %c0_2 = arith.constant 0 : index
    %c0_3 = arith.constant 0 : index
    %3 = vector.load %arg3[%c0, %c0_1, %c0_2, %c0_3] : memref<1x1x8x32xf32, #tpu.memory_space<vmem>>, vector<1x1x8x32xf32>
    %4 = vector.shape_cast %3 : vector<1x1x8x32xf32> to vector<8x32xf32>
    %5 = arith.truncf %4 : vector<8x32xf32> to vector<8x32xbf16>
    %c0_4 = arith.constant 0 : index
    %c0_5 = arith.constant 0 : index
    %c0_6 = arith.constant 0 : index
    %6 = vector.load %arg6[%c0_4, %c0_5, %c0_6] : memref<1x32x32xbf16, #tpu.memory_space<vmem>>, vector<1x32x32xbf16>
    %7 = vector.shape_cast %6 : vector<1x32x32xbf16> to vector<32x32xbf16>
    %cst = arith.constant dense<0.000000e+00> : vector<8x32xf32>
    %8 = tpu.matmul %5, %7, %cst {dimension_numbers = #tpu.dot_dimension_numbers<[1], [0], [0], [1], [0, 0, 1, 1], [], []>} : vector<8x32xbf16>, vector<32x32xbf16>, vector<8x32xf32> -> vector<8x32xf32>
    %c0_7 = arith.constant 0 : index
    %c0_8 = arith.constant 0 : index
    %c0_9 = arith.constant 0 : index
    %9 = vector.load %arg9[%c0_7, %c0_8, %c0_9] : memref<1x1x32xf32, #tpu.memory_space<vmem>>, vector<1x1x32xf32>
    %10 = vector.shape_cast %9 : vector<1x1x32xf32> to vector<1x32xf32>
    %11 = vector.broadcast %10 : vector<1x32xf32> to vector<8x32xf32>
    %12 = arith.addf %8, %11 : vector<8x32xf32>
    %13 = arith.truncf %12 : vector<8x32xf32> to vector<8x32xbf16>
    %14 = vector.shape_cast %13 : vector<8x32xbf16> to vector<8x4x8xbf16>
    %15 = tpu.transpose %14, [1, 0, 2] : vector<8x4x8xbf16> -> vector<4x8x8xbf16>
    %c0_10 = arith.constant 0 : index
    %c0_11 = arith.constant 0 : index
    %c0_12 = arith.constant 0 : index
    %16 = vector.load %arg23[%c0_10, %c0_11, %c0_12] : memref<4x8x8xbf16, #tpu.memory_space<vmem>>, vector<4x8x8xbf16>
    "tpu.trace_start"() <{level = 10 : i32, message = "hqd,hkd->hqk"}> : () -> ()
    %cst_13 = arith.constant dense<0.000000e+00> : vector<4x8x8xf32>
    %17 = tpu.matmul %15, %16, %cst_13 {dimension_numbers = #tpu.dot_dimension_numbers<[2], [2], [1], [1], [0, 0, 0, 1, 1, 1], [0], [0]>} : vector<4x8x8xbf16>, vector<4x8x8xbf16>, vector<4x8x8xf32> -> vector<4x8x8xf32>
    "tpu.trace_stop"() : () -> ()
    %cst_14 = arith.constant dense<0xFF800000> : vector<4x8xf32>
    %18 = vector.multi_reduction <maximumf>, %17, %cst_14 [2] : vector<4x8x8xf32> to vector<4x8xf32>
    %19 = vector.shape_cast %18 : vector<4x8xf32> to vector<4x8x1xf32>
    %20 = vector.broadcast %19 : vector<4x8x1xf32> to vector<4x8x8xf32>
    %21 = arith.subf %17, %20 : vector<4x8x8xf32>
    %22 = math.exp %21 : vector<4x8x8xf32>
    %cst_15 = arith.constant dense<0.000000e+00> : vector<4x8xf32>
    %23 = vector.multi_reduction <add>, %22, %cst_15 [2] : vector<4x8x8xf32> to vector<4x8xf32>
    %24 = vector.shape_cast %23 : vector<4x8xf32> to vector<4x8x1xf32>
    %25 = tpu.reciprocal %24 {approx = true} : vector<4x8x1xf32> -> vector<4x8x1xf32>
    %26 = vector.broadcast %25 : vector<4x8x1xf32> to vector<4x8x8xf32>
    %27 = arith.mulf %22, %26 : vector<4x8x8xf32>
    %28 = arith.truncf %27 : vector<4x8x8xf32> to vector<4x8x8xbf16>
    %c0_16 = arith.constant 0 : index
    %c0_17 = arith.constant 0 : index
    %c0_18 = arith.constant 0 : index
    %29 = vector.load %arg24[%c0_16, %c0_17, %c0_18] : memref<4x8x8xbf16, #tpu.memory_space<vmem>>, vector<4x8x8xbf16>
    "tpu.trace_start"() <{level = 10 : i32, message = "hqk,hkd->hqd"}> : () -> ()
    %cst_19 = arith.constant dense<0.000000e+00> : vector<4x8x8xf32>
    %30 = tpu.matmul %28, %29, %cst_19 {dimension_numbers = #tpu.dot_dimension_numbers<[2], [1], [1], [2], [0, 0, 0, 1, 1, 2], [0], [0]>} : vector<4x8x8xbf16>, vector<4x8x8xbf16>, vector<4x8x8xf32> -> vector<4x8x8xf32>
    "tpu.trace_stop"() : () -> ()
    %31 = tpu.transpose %30, [1, 0, 2] : vector<4x8x8xf32> -> vector<8x4x8xf32>
    %32 = vector.shape_cast %31 : vector<8x4x8xf32> to vector<8x32xf32>
    %33 = arith.truncf %32 : vector<8x32xf32> to vector<8x32xbf16>
    %c0_20 = arith.constant 0 : index
    %c0_21 = arith.constant 0 : index
    %c0_22 = arith.constant 0 : index
    %34 = vector.load %arg12[%c0_20, %c0_21, %c0_22] : memref<1x32x32xbf16, #tpu.memory_space<vmem>>, vector<1x32x32xbf16>
    %35 = vector.shape_cast %34 : vector<1x32x32xbf16> to vector<32x32xbf16>
    %cst_23 = arith.constant dense<0.000000e+00> : vector<8x32xf32>
    %36 = tpu.matmul %33, %35, %cst_23 {dimension_numbers = #tpu.dot_dimension_numbers<[1], [0], [0], [1], [0, 0, 1, 1], [], []>} : vector<8x32xbf16>, vector<32x32xbf16>, vector<8x32xf32> -> vector<8x32xf32>
    %c0_24 = arith.constant 0 : index
    %c0_25 = arith.constant 0 : index
    %c0_26 = arith.constant 0 : index
    %37 = vector.load %arg13[%c0_24, %c0_25, %c0_26] : memref<1x1x32xf32, #tpu.memory_space<vmem>>, vector<1x1x32xf32>
    %38 = vector.shape_cast %37 : vector<1x1x32xf32> to vector<1x32xf32>
    %39 = vector.broadcast %38 : vector<1x32xf32> to vector<8x32xf32>
    %40 = arith.addf %36, %39 : vector<8x32xf32>
    %41 = arith.addf %40, %4 : vector<8x32xf32>
    %c0_27 = arith.constant 0 : index
    %c0_28 = arith.constant 0 : index
    %c0_29 = arith.constant 0 : index
    %42 = vector.load %arg14[%c0_27, %c0_28, %c0_29] : memref<1x1x32xf32, #tpu.memory_space<vmem>>, vector<1x1x32xf32>
    %43 = vector.shape_cast %42 : vector<1x1x32xf32> to vector<1x32xf32>
    %c0_30 = arith.constant 0 : index
    %c0_31 = arith.constant 0 : index
    %c0_32 = arith.constant 0 : index
    %44 = vector.load %arg15[%c0_30, %c0_31, %c0_32] : memref<1x1x32xf32, #tpu.memory_space<vmem>>, vector<1x1x32xf32>
    %45 = vector.shape_cast %44 : vector<1x1x32xf32> to vector<1x32xf32>
    %cst_33 = arith.constant dense<0.000000e+00> : vector<8xf32>
    %46 = vector.multi_reduction <add>, %41, %cst_33 [1] : vector<8x32xf32> to vector<8xf32>
    %47 = vector.shape_cast %46 : vector<8xf32> to vector<8x1xf32>
    %cst_34 = arith.constant 3.200000e+01 : f32
    %48 = vector.broadcast %cst_34 : f32 to vector<8x1xf32>
    %49 = arith.divf %47, %48 : vector<8x1xf32>
    %50 = vector.broadcast %49 : vector<8x1xf32> to vector<8x32xf32>
    %51 = arith.subf %41, %50 : vector<8x32xf32>
    %52 = vector.broadcast %49 : vector<8x1xf32> to vector<8x32xf32>
    %53 = arith.subf %41, %52 : vector<8x32xf32>
    %54 = arith.mulf %51, %53 : vector<8x32xf32>
    %cst_35 = arith.constant dense<0.000000e+00> : vector<8xf32>
    %55 = vector.multi_reduction <add>, %54, %cst_35 [1] : vector<8x32xf32> to vector<8xf32>
    %56 = vector.shape_cast %55 : vector<8xf32> to vector<8x1xf32>
    %cst_36 = arith.constant 3.200000e+01 : f32
    %57 = vector.broadcast %cst_36 : f32 to vector<8x1xf32>
    %58 = arith.divf %56, %57 : vector<8x1xf32>
    %59 = vector.broadcast %49 : vector<8x1xf32> to vector<8x32xf32>
    %60 = arith.subf %41, %59 : vector<8x32xf32>
    %cst_37 = arith.constant 9.99999974E-6 : f32
    %61 = vector.broadcast %cst_37 : f32 to vector<8x1xf32>
    %62 = arith.addf %58, %61 : vector<8x1xf32>
    %63 = math.rsqrt %62 : vector<8x1xf32>
    %64 = vector.broadcast %63 : vector<8x1xf32> to vector<8x32xf32>
    %65 = arith.mulf %60, %64 : vector<8x32xf32>
    %66 = vector.broadcast %43 : vector<1x32xf32> to vector<8x32xf32>
    %67 = arith.mulf %65, %66 : vector<8x32xf32>
    %68 = vector.broadcast %45 : vector<1x32xf32> to vector<8x32xf32>
    %69 = arith.addf %67, %68 : vector<8x32xf32>
    %70 = arith.truncf %69 : vector<8x32xf32> to vector<8x32xbf16>
    %c0_38 = arith.constant 0 : index
    %c0_39 = arith.constant 0 : index
    %c0_40 = arith.constant 0 : index
    %71 = vector.load %arg16[%c0_38, %c0_39, %c0_40] : memref<1x32x128xbf16, #tpu.memory_space<vmem>>, vector<1x32x128xbf16>
    %72 = vector.shape_cast %71 : vector<1x32x128xbf16> to vector<32x128xbf16>
    %cst_41 = arith.constant dense<0.000000e+00> : vector<8x128xf32>
    %73 = tpu.matmul %70, %72, %cst_41 {dimension_numbers = #tpu.dot_dimension_numbers<[1], [0], [0], [1], [0, 0, 1, 1], [], []>} : vector<8x32xbf16>, vector<32x128xbf16>, vector<8x128xf32> -> vector<8x128xf32>
    %c0_42 = arith.constant 0 : index
    %c0_43 = arith.constant 0 : index
    %c0_44 = arith.constant 0 : index
    %74 = vector.load %arg17[%c0_42, %c0_43, %c0_44] : memref<1x1x128xf32, #tpu.memory_space<vmem>>, vector<1x1x128xf32>
    %75 = vector.shape_cast %74 : vector<1x1x128xf32> to vector<1x128xf32>
    %76 = vector.broadcast %75 : vector<1x128xf32> to vector<8x128xf32>
    %77 = arith.addf %73, %76 : vector<8x128xf32>
    %cst_45 = arith.constant 0.000000e+00 : f32
    %78 = vector.broadcast %cst_45 : f32 to vector<8x128xf32>
    %79 = arith.maximumf %77, %78 : vector<8x128xf32>
    %80 = arith.truncf %79 : vector<8x128xf32> to vector<8x128xbf16>
    %c0_46 = arith.constant 0 : index
    %c0_47 = arith.constant 0 : index
    %c0_48 = arith.constant 0 : index
    %81 = vector.load %arg18[%c0_46, %c0_47, %c0_48] : memref<1x128x32xbf16, #tpu.memory_space<vmem>>, vector<1x128x32xbf16>
    %82 = vector.shape_cast %81 : vector<1x128x32xbf16> to vector<128x32xbf16>
    %cst_49 = arith.constant dense<0.000000e+00> : vector<8x32xf32>
    %83 = tpu.matmul %80, %82, %cst_49 {dimension_numbers = #tpu.dot_dimension_numbers<[1], [0], [0], [1], [0, 0, 1, 1], [], []>} : vector<8x128xbf16>, vector<128x32xbf16>, vector<8x32xf32> -> vector<8x32xf32>
    %c0_50 = arith.constant 0 : index
    %c0_51 = arith.constant 0 : index
    %c0_52 = arith.constant 0 : index
    %84 = vector.load %arg19[%c0_50, %c0_51, %c0_52] : memref<1x1x32xf32, #tpu.memory_space<vmem>>, vector<1x1x32xf32>
    %85 = vector.shape_cast %84 : vector<1x1x32xf32> to vector<1x32xf32>
    %86 = vector.broadcast %85 : vector<1x32xf32> to vector<8x32xf32>
    %87 = arith.addf %83, %86 : vector<8x32xf32>
    %88 = arith.addf %69, %87 : vector<8x32xf32>
    %c0_53 = arith.constant 0 : index
    %c0_54 = arith.constant 0 : index
    %c0_55 = arith.constant 0 : index
    %89 = vector.load %arg20[%c0_53, %c0_54, %c0_55] : memref<1x1x32xf32, #tpu.memory_space<vmem>>, vector<1x1x32xf32>
    %90 = vector.shape_cast %89 : vector<1x1x32xf32> to vector<1x32xf32>
    %c0_56 = arith.constant 0 : index
    %c0_57 = arith.constant 0 : index
    %c0_58 = arith.constant 0 : index
    %91 = vector.load %arg21[%c0_56, %c0_57, %c0_58] : memref<1x1x32xf32, #tpu.memory_space<vmem>>, vector<1x1x32xf32>
    %92 = vector.shape_cast %91 : vector<1x1x32xf32> to vector<1x32xf32>
    %cst_59 = arith.constant dense<0.000000e+00> : vector<8xf32>
    %93 = vector.multi_reduction <add>, %88, %cst_59 [1] : vector<8x32xf32> to vector<8xf32>
    %94 = vector.shape_cast %93 : vector<8xf32> to vector<8x1xf32>
    %cst_60 = arith.constant 3.200000e+01 : f32
    %95 = vector.broadcast %cst_60 : f32 to vector<8x1xf32>
    %96 = arith.divf %94, %95 : vector<8x1xf32>
    %97 = vector.broadcast %96 : vector<8x1xf32> to vector<8x32xf32>
    %98 = arith.subf %88, %97 : vector<8x32xf32>
    %99 = vector.broadcast %96 : vector<8x1xf32> to vector<8x32xf32>
    %100 = arith.subf %88, %99 : vector<8x32xf32>
    %101 = arith.mulf %98, %100 : vector<8x32xf32>
    %cst_61 = arith.constant dense<0.000000e+00> : vector<8xf32>
    %102 = vector.multi_reduction <add>, %101, %cst_61 [1] : vector<8x32xf32> to vector<8xf32>
    %103 = vector.shape_cast %102 : vector<8xf32> to vector<8x1xf32>
    %cst_62 = arith.constant 3.200000e+01 : f32
    %104 = vector.broadcast %cst_62 : f32 to vector<8x1xf32>
    %105 = arith.divf %103, %104 : vector<8x1xf32>
    %106 = vector.broadcast %96 : vector<8x1xf32> to vector<8x32xf32>
    %107 = arith.subf %88, %106 : vector<8x32xf32>
    %cst_63 = arith.constant 9.99999974E-6 : f32
    %108 = vector.broadcast %cst_63 : f32 to vector<8x1xf32>
    %109 = arith.addf %105, %108 : vector<8x1xf32>
    %110 = math.rsqrt %109 : vector<8x1xf32>
    %111 = vector.broadcast %110 : vector<8x1xf32> to vector<8x32xf32>
    %112 = arith.mulf %107, %111 : vector<8x32xf32>
    %113 = vector.broadcast %90 : vector<1x32xf32> to vector<8x32xf32>
    %114 = arith.mulf %112, %113 : vector<8x32xf32>
    %115 = vector.broadcast %92 : vector<1x32xf32> to vector<8x32xf32>
    %116 = arith.addf %114, %115 : vector<8x32xf32>
    %c0_64 = arith.constant 0 : index
    %c0_65 = arith.constant 0 : index
    %c0_66 = arith.constant 0 : index
    %c0_67 = arith.constant 0 : index
    %117 = vector.load %arg22[%c0_64, %c0_65, %c0_66, %c0_67] : memref<1x1x8x32xf32, #tpu.memory_space<vmem>>, vector<1x1x8x32xf32>
    %118 = vector.shape_cast %117 : vector<1x1x8x32xf32> to vector<8x32xf32>
    %119 = vector.shape_cast %116 : vector<8x32xf32> to vector<1x1x8x32xf32>
    tpu.vector_store %arg22[%c0_64, %c0_65, %c0_66, %c0_67], %119 {strides = array<i32>} : memref<1x1x8x32xf32, #tpu.memory_space<vmem>>, vector<1x1x8x32xf32>,
    return
  }
  func.func @transform_0(%arg0: i32, %arg1: i32, %arg2: i32) -> (i32, i32, i32, i32) {
    %c0_i32 = arith.constant 0 : i32
    %c0_i32_0 = arith.constant 0 : i32
    return %arg0, %arg1, %arg2, %c0_i32 : i32, i32, i32, i32
  }
  func.func @transform_1(%arg0: i32, %arg1: i32, %arg2: i32) -> (i32, i32, i32, i32) {
    %c0_i32 = arith.constant 0 : i32
    %c0_i32_0 = arith.constant 0 : i32
    %c0_i32_1 = arith.constant 0 : i32
    return %arg0, %arg1, %c0_i32, %c0_i32_0 : i32, i32, i32, i32
  }
  func.func @transform_2(%arg0: i32, %arg1: i32, %arg2: i32) -> (i32, i32, i32, i32) {
    %c0_i32 = arith.constant 0 : i32
    %c0_i32_0 = arith.constant 0 : i32
    %c0_i32_1 = arith.constant 0 : i32
    return %arg0, %arg1, %c0_i32, %c0_i32_0 : i32, i32, i32, i32
  }
  func.func @transform_3(%arg0: i32, %arg1: i32, %arg2: i32) -> (i32, i32, i32) {
    %c0_i32 = arith.constant 0 : i32
    %c0_i32_0 = arith.constant 0 : i32
    %c0_i32_1 = arith.constant 0 : i32
    return %arg0, %c0_i32, %c0_i32_0 : i32, i32, i32
  }
  func.func @transform_4(%arg0: i32, %arg1: i32, %arg2: i32) -> (i32, i32, i32) {
    %c0_i32 = arith.constant 0 : i32
    %c0_i32_0 = arith.constant 0 : i32
    %c0_i32_1 = arith.constant 0 : i32
    return %arg0, %c0_i32, %c0_i32_0 : i32, i32, i32
  }
  func.func @transform_5(%arg0: i32, %arg1: i32, %arg2: i32) -> (i32, i32, i32) {
    %c0_i32 = arith.constant 0 : i32
    %c0_i32_0 = arith.constant 0 : i32
    %c0_i32_1 = arith.constant 0 : i32
    return %arg0, %c0_i32, %c0_i32_0 : i32, i32, i32
  }
  func.func @transform_6(%arg0: i32, %arg1: i32, %arg2: i32) -> (i32, i32, i32) {
    %c0_i32 = arith.constant 0 : i32
    %c0_i32_0 = arith.constant 0 : i32
    %c0_i32_1 = arith.constant 0 : i32
    return %arg0, %c0_i32, %c0_i32_0 : i32, i32, i32
  }
  func.func @transform_7(%arg0: i32, %arg1: i32, %arg2: i32) -> (i32, i32, i32) {
    %c0_i32 = arith.constant 0 : i32
    %c0_i32_0 = arith.constant 0 : i32
    %c0_i32_1 = arith.constant 0 : i32
    return %arg0, %c0_i32, %c0_i32_0 : i32, i32, i32
  }
  func.func @transform_8(%arg0: i32, %arg1: i32, %arg2: i32) -> (i32, i32, i32) {
    %c0_i32 = arith.constant 0 : i32
    %c0_i32_0 = arith.constant 0 : i32
    %c0_i32_1 = arith.constant 0 : i32
    return %arg0, %c0_i32, %c0_i32_0 : i32, i32, i32
  }
  func.func @transform_9(%arg0: i32, %arg1: i32, %arg2: i32) -> (i32, i32, i32) {
    %c0_i32 = arith.constant 0 : i32
    %c0_i32_0 = arith.constant 0 : i32
    %c0_i32_1 = arith.constant 0 : i32
    return %arg0, %c0_i32, %c0_i32_0 : i32, i32, i32
  }
  func.func @transform_10(%arg0: i32, %arg1: i32, %arg2: i32) -> (i32, i32, i32) {
    %c0_i32 = arith.constant 0 : i32
    %c0_i32_0 = arith.constant 0 : i32
    %c0_i32_1 = arith.constant 0 : i32
    return %arg0, %c0_i32, %c0_i32_0 : i32, i32, i32
  }
  func.func @transform_11(%arg0: i32, %arg1: i32, %arg2: i32) -> (i32, i32, i32) {
    %c0_i32 = arith.constant 0 : i32
    %c0_i32_0 = arith.constant 0 : i32
    %c0_i32_1 = arith.constant 0 : i32
    return %arg0, %c0_i32, %c0_i32_0 : i32, i32, i32
  }
  func.func @transform_12(%arg0: i32, %arg1: i32, %arg2: i32) -> (i32, i32, i32) {
    %c0_i32 = arith.constant 0 : i32
    %c0_i32_0 = arith.constant 0 : i32
    %c0_i32_1 = arith.constant 0 : i32
    return %arg0, %c0_i32, %c0_i32_0 : i32, i32, i32
  }
  func.func @transform_13(%arg0: i32, %arg1: i32, %arg2: i32) -> (i32, i32, i32) {
    %c0_i32 = arith.constant 0 : i32
    %c0_i32_0 = arith.constant 0 : i32
    %c0_i32_1 = arith.constant 0 : i32
    return %arg0, %c0_i32, %c0_i32_0 : i32, i32, i32
  }
  func.func @transform_14(%arg0: i32, %arg1: i32, %arg2: i32) -> (i32, i32, i32) {
    %c0_i32 = arith.constant 0 : i32
    %c0_i32_0 = arith.constant 0 : i32
    %c0_i32_1 = arith.constant 0 : i32
    return %arg0, %c0_i32, %c0_i32_0 : i32, i32, i32
  }
  func.func @transform_15(%arg0: i32, %arg1: i32, %arg2: i32) -> (i32, i32, i32) {
    %c0_i32 = arith.constant 0 : i32
    %c0_i32_0 = arith.constant 0 : i32
    %c0_i32_1 = arith.constant 0 : i32
    return %arg0, %c0_i32, %c0_i32_0 : i32, i32, i32
  }
  func.func @transform_16(%arg0: i32, %arg1: i32, %arg2: i32) -> (i32, i32, i32) {
    %c0_i32 = arith.constant 0 : i32
    %c0_i32_0 = arith.constant 0 : i32
    %c0_i32_1 = arith.constant 0 : i32
    return %arg0, %c0_i32, %c0_i32_0 : i32, i32, i32
  }
  func.func @transform_17(%arg0: i32, %arg1: i32, %arg2: i32) -> (i32, i32, i32) {
    %c0_i32 = arith.constant 0 : i32
    %c0_i32_0 = arith.constant 0 : i32
    %c0_i32_1 = arith.constant 0 : i32
    return %arg0, %c0_i32, %c0_i32_0 : i32, i32, i32
  }
  func.func @transform_18(%arg0: i32, %arg1: i32, %arg2: i32) -> (i32, i32, i32) {
    %c0_i32 = arith.constant 0 : i32
    %c0_i32_0 = arith.constant 0 : i32
    %c0_i32_1 = arith.constant 0 : i32
    return %arg0, %c0_i32, %c0_i32_0 : i32, i32, i32
  }
  func.func @transform_19(%arg0: i32, %arg1: i32, %arg2: i32) -> (i32, i32, i32, i32) {
    %c0_i32 = arith.constant 0 : i32
    %c0_i32_0 = arith.constant 0 : i32
    return %arg0, %arg1, %arg2, %c0_i32 : i32, i32, i32, i32
  }
}

</mosaic_0001>

<llo_original>
// kernel: tpu_custom_call.1
$region0: #{tpu_custom_call.1}
  #allocation0 [shape = 'u32[]', space=smem, size = 0x4, offset = 0x4, fixed_abs, tag = 'smem constant byte address 0x4 - core index']
  #allocation1 [shape = 'u32[72,128]{1,0:T(1,128)}', space=vmem, size = 0x9000, scoped, tag = 'internal scratch']
  #allocation2 [shape = 'bf16[4,8,8]{2,1,0:T(8,128)(2,1)}', space=vmem, size = 0x2000, scoped, tag = 'scratch operand']
  #allocation3 [shape = 'bf16[4,8,8]{2,1,0:T(8,128)(2,1)}', space=vmem, size = 0x2000, scoped, tag = 'scratch operand']
  %s0 = inlined_call_operand.vmem [shape: f32[2,2,8,32], index: 0, kind: input, shape index: {}]
  %s1 = inlined_call_operand.hbm [shape: bf16[2,2,8,32], index: 1, kind: input, shape index: {}]
  %s2 = inlined_call_operand.hbm [shape: bf16[2,2,8,32], index: 2, kind: input, shape index: {}]
  %s3 = inlined_call_operand.vmem [shape: bf16[2,32,32], index: 3, kind: input, shape index: {}]
  %s4 = inlined_call_operand.vmem [shape: bf16[2,32,32], index: 4, kind: input, shape index: {}]
  %s5 = inlined_call_operand.vmem [shape: bf16[2,32,32], index: 5, kind: input, shape index: {}]
  %s6 = inlined_call_operand.vmem [shape: f32[2,1,32], index: 6, kind: input, shape index: {}]
  %s7 = inlined_call_operand.vmem [shape: f32[2,1,32], index: 7, kind: input, shape index: {}]
  %s8 = inlined_call_operand.vmem [shape: f32[2,1,32], index: 8, kind: input, shape index: {}]
  %s9 = inlined_call_operand.vmem [shape: bf16[2,32,32], index: 9, kind: input, shape index: {}]
  %s10 = inlined_call_operand.vmem [shape: f32[2,1,32], index: 10, kind: input, shape index: {}]
  %s11 = inlined_call_operand.hbm [shape: f32[2,1,32], index: 11, kind: input, shape index: {}]
  %s12 = inlined_call_operand.vmem [shape: f32[2,1,32], index: 12, kind: input, shape index: {}]
  %s13 = inlined_call_operand.hbm [shape: bf16[2,32,128], index: 13, kind: input, shape index: {}]
  %s14 = inlined_call_operand.vmem [shape: f32[2,1,128], index: 14, kind: input, shape index: {}]
  %s15 = inlined_call_operand.vmem [shape: bf16[2,128,32], index: 15, kind: input, shape index: {}]
  %s16 = inlined_call_operand.vmem [shape: f32[2,1,32], index: 16, kind: input, shape index: {}]
  %s17 = inlined_call_operand.hbm [shape: f32[2,1,32], index: 17, kind: input, shape index: {}]
  %s18 = inlined_call_operand.vmem [shape: f32[2,1,32], index: 18, kind: input, shape index: {}]
  %s19 = inlined_call_operand.hbm [shape: f32[2,2,8,32], index: 19, kind: output, shape index: {}]
  %s20 = sld [smem:[#allocation0]]
  $region133: #{tpu_custom_call.1} parent=0
    _
  %s22 = ssub.s32 1, %s20
  %s23 = scalar_select 0, %s22, %s20
  $region1: #{tpu_custom_call.1} parent=0
    #allocation4 [shape = 'u8[4096]{0}', space=vmem, size = 0x1000, scoped, tag = 'input window, operand 1']
    #allocation5 [shape = 's32[2]{0}', space=sflag, size = 0x8, scoped, tag = 'scoped memory for tpu_custom_call.1']
    #allocation6 [shape = 's32[2]{0}', space=sflag, size = 0x8, scoped, tag = 'scoped memory for tpu_custom_call.1']
    #allocation7 [shape = 'u8[4096]{0}', space=vmem, size = 0x1000, scoped, tag = 'input window, operand 2']
    #allocation8 [shape = 's32[2]{0}', space=sflag, size = 0x8, scoped, tag = 'scoped memory for tpu_custom_call.1']
    #allocation9 [shape = 'u8[512]{0}', space=vmem, size = 0x400, scoped, tag = 'input window, operand 11, single buffered']
    #allocation10 [shape = 'u8[8192]{0}', space=vmem, size = 0x2000, scoped, tag = 'input window, operand 13, single buffered']
    #allocation11 [shape = 's32[1]{0}', space=sflag, size = 0x4, scoped, tag = 'scoped memory for tpu_custom_call.1']
    #allocation12 [shape = 'u8[512]{0}', space=vmem, size = 0x400, scoped, tag = 'input window, operand 17, single buffered']
    #allocation13 [shape = 'u8[8192]{0}', space=vmem, size = 0x2000, scoped, tag = 'output window, operand 0']
    %24 = vsyncpa [#allocation5], 0
    %s25 = scalar_lea.sflag [#allocation5], 1
    %26 = vsyncpa %s25, 0
    %27 = vsyncpa [#allocation8], 0
    %s28 = scalar_lea.sflag [#allocation8], 1
    %29 = vsyncpa %s28, 0
    %30 = vsyncpa [#allocation11], 0
    %31 = vsyncpa [#allocation6], 0
    %s32 = scalar_lea.sflag [#allocation6], 1
    %33 = vsyncpa %s32, 0
    loop: start=0, step=1, limit=6
    $region2: #{tpu_custom_call.1} parent=1 // loop_pre_header
      _
    $region3: #{tpu_custom_call.1} parent=1 // loop_header
      %s35 = sphi 0, %s39
      %p36 = scmp.ge.s32.totalorder %s35, 6
      %s42 = sphi 0, %s61
      %s43 = sphi 0, %s57
      %s44 = sphi 0, %s53
      %s45 = sphi 0, %s42
      %s46 = sphi 0, %s43
      %s47 = sphi 0, %s44
      %s48 = sphi 0, %s45
      %s49 = sphi 0, %s46
      %s50 = sphi 0, %s47
      %s68 = sphi 0, %s70
      %s71 = sphi 0, %s68
      %s72 = sphi 0, %s71
      %s88 = sphi 0, %s72
      %s96 = sphi 0, %s98
      %s99 = sphi 0, %s96
      %s100 = sphi 0, %s99
      %s116 = sphi 0, %s100
      %s124 = sphi 0, %s126
      %s127 = sphi 0, %s124
      %s128 = sphi 0, %s127
      %s144 = sphi 0, %s128
      %s150 = sphi 0, %s152
      %s153 = sphi 0, %s150
      %s154 = sphi 0, %s153
      %s170 = sphi 0, %s154
      %s176 = sphi 0, %s178
      %s179 = sphi 0, %s176
      %s180 = sphi 0, %s179
      %s196 = sphi 0, %s180
      %s202 = sphi 0, %s204
      %s205 = sphi 0, %s202
      %s206 = sphi 0, %s205
      %s222 = sphi 0, %s206
      %s228 = sphi 0, %s230
      %s231 = sphi 0, %s228
      %s232 = sphi 0, %s231
      %s248 = sphi 0, %s232
      %s254 = sphi 0, %s256
      %s257 = sphi 0, %s254
      %s258 = sphi 0, %s257
      %s274 = sphi 0, %s258
      %s280 = sphi 0, %s282
      %s283 = sphi 0, %s280
      %s284 = sphi 0, %s283
      %s300 = sphi 0, %s284
      %s306 = sphi 0, %s308
      %s309 = sphi 0, %s306
      %s310 = sphi 0, %s309
      %s326 = sphi 0, %s310
      %s332 = sphi 0, %s334
      %s335 = sphi 0, %s332
      %s336 = sphi 0, %s335
      %s352 = sphi 0, %s336
      %s358 = sphi 0, %s360
      %s361 = sphi 0, %s358
      %s362 = sphi 0, %s361
      %s378 = sphi 0, %s362
      %s384 = sphi 0, %s386
      %s387 = sphi 0, %s384
      %s388 = sphi 0, %s387
      %s404 = sphi 0, %s388
      %s410 = sphi 0, %s412
      %s413 = sphi 0, %s410
      %s414 = sphi 0, %s413
      %s430 = sphi 0, %s414
      %s436 = sphi 0, %s438
      %s439 = sphi 0, %s436
      %s440 = sphi 0, %s439
      %s456 = sphi 0, %s440
      %s462 = sphi 0, %s464
      %s465 = sphi 0, %s462
      %s466 = sphi 0, %s465
      %s482 = sphi 0, %s466
      %s488 = sphi 0, %s490
      %s491 = sphi 0, %s488
      %s492 = sphi 0, %s491
      %s508 = sphi 0, %s492
      %s514 = sphi 0, %s516
      %s517 = sphi 0, %s514
      %s518 = sphi 0, %s517
      %s534 = sphi 0, %s518
      %s540 = sphi 0, %s542
      %s543 = sphi 0, %s540
      %s544 = sphi 0, %s543
      %s560 = sphi 0, %s544
      %s570 = sphi 0, %s572
      %s573 = sphi 0, %s570
      %s574 = sphi 0, %s573
      %s590 = sphi 0, %s574
    $region4: #{tpu_custom_call.1} parent=1 // loop_header_branch
      %38 = sbr.rel (%p36) target = $region8
    $region5: #{tpu_custom_call.1} parent=1 // loop_body
      %s40 = ssub.s32 %s35, 1
      %s41 = ssub.s32 %s35, 2
      %s51 = sadd.s32 1, %s44
      %p52 = scmp.ge.s32.totalorder %s51, 1
      %s53 = scalar_select %p52, 0, %s51
      %s54 = sadd.s32 1, %s43
      %s55 = scalar_select %p52, %s54, %s43
      %p56 = scmp.ge.s32.totalorder %s55, 2
      %s57 = scalar_select %p56, 0, %s55
      %s58 = sadd.s32 1, %s42
      %s59 = scalar_select %p56, %s58, %s42
      %p60 = scmp.ge.s32.totalorder %s59, 2
      %s61 = scalar_select %p60, 0, %s59
      %s62 = ssub.s32 %s42, %s61
      %s63 = ssub.s32 %s43, %s57
      %s64 = sor.u32 %s62, %s63
      %s65 = ssub.s32 %s44, %s53
      %s66 = sor.u32 %s64, %s65
      %p67 = scmp.eq.s32.totalorder %s66, 0
      %s69 = sadd.s32 %s68, 1
      %s70 = scalar_select %p67, %s68, %s69
      %p73 = pneg %p67
      %p74 = scmp.eq.s32.totalorder %s35, 3
      %p75 = por %p73, %p74
      %p76 = scmp.ne.s32.totalorder %s68, %s71
      %p77 = scmp.eq.s32.totalorder %s35, 0
      %p78 = por %p76, %p77
      %p79 = scmp.ne.s32.totalorder %s68, %s71
      %p80 = scmp.eq.s32.totalorder %s40, 3
      %p81 = por %p79, %p80
      %p82 = scmp.ne.s32.totalorder %s71, %s72
      %p83 = scmp.eq.s32.totalorder %s40, 0
      %p84 = por %p82, %p83
      %p85 = scmp.ne.s32.totalorder %s71, %s72
      %p86 = scmp.eq.s32.totalorder %s41, 3
      %p87 = por %p85, %p86
      %p89 = scmp.ne.s32.totalorder %s72, %s88
      %p90 = scmp.eq.s32.totalorder %s41, 0
      %p91 = por %p89, %p90
      %s92 = ssub.s32 %s42, %s61
      %s93 = ssub.s32 %s43, %s57
      %s94 = sor.u32 %s92, %s93
      %p95 = scmp.eq.s32.totalorder %s94, 0
      %s97 = sadd.s32 %s96, 1
      %s98 = scalar_select %p95, %s96, %s97
      %p101 = pneg %p95
      %p102 = scmp.eq.s32.totalorder %s35, 3
      %p103 = por %p101, %p102
      %p104 = scmp.ne.s32.totalorder %s96, %s99
      %p105 = scmp.eq.s32.totalorder %s35, 0
      %p106 = por %p104, %p105
      %p107 = scmp.ne.s32.totalorder %s96, %s99
      %p108 = scmp.eq.s32.totalorder %s40, 3
      %p109 = por %p107, %p108
      %p110 = scmp.ne.s32.totalorder %s99, %s100
      %p111 = scmp.eq.s32.totalorder %s40, 0
      %p112 = por %p110, %p111
      %p113 = scmp.ne.s32.totalorder %s99, %s100
      %p114 = scmp.eq.s32.totalorder %s41, 3
      %p115 = por %p113, %p114
      %p117 = scmp.ne.s32.totalorder %s100, %s116
      %p118 = scmp.eq.s32.totalorder %s41, 0
      %p119 = por %p117, %p118
      %s120 = ssub.s32 %s42, %s61
      %s121 = ssub.s32 %s43, %s57
      %s122 = sor.u32 %s120, %s121
      %p123 = scmp.eq.s32.totalorder %s122, 0
      %s125 = sadd.s32 %s124, 1
      %s126 = scalar_select %p123, %s124, %s125
      %p129 = pneg %p123
      %p130 = scmp.eq.s32.totalorder %s35, 3
      %p131 = por %p129, %p130
      %p132 = scmp.ne.s32.totalorder %s124, %s127
      %p133 = scmp.eq.s32.totalorder %s35, 0
      %p134 = por %p132, %p133
      %p135 = scmp.ne.s32.totalorder %s124, %s127
      %p136 = scmp.eq.s32.totalorder %s40, 3
      %p137 = por %p135, %p136
      %p138 = scmp.ne.s32.totalorder %s127, %s128
      %p139 = scmp.eq.s32.totalorder %s40, 0
      %p140 = por %p138, %p139
      %p141 = scmp.ne.s32.totalorder %s127, %s128
      %p142 = scmp.eq.s32.totalorder %s41, 3
      %p143 = por %p141, %p142
      %p145 = scmp.ne.s32.totalorder %s128, %s144
      %p146 = scmp.eq.s32.totalorder %s41, 0
      %p147 = por %p145, %p146
      %s148 = ssub.s32 %s42, %s61
      %p149 = scmp.eq.s32.totalorder %s148, 0
      %s151 = sadd.s32 %s150, 1
      %s152 = scalar_select %p149, %s150, %s151
      %p155 = pneg %p149
      %p156 = scmp.eq.s32.totalorder %s35, 3
      %p157 = por %p155, %p156
      %p158 = scmp.ne.s32.totalorder %s150, %s153
      %p159 = scmp.eq.s32.totalorder %s35, 0
      %p160 = por %p158, %p159
      %p161 = scmp.ne.s32.totalorder %s150, %s153
      %p162 = scmp.eq.s32.totalorder %s40, 3
      %p163 = por %p161, %p162
      %p164 = scmp.ne.s32.totalorder %s153, %s154
      %p165 = scmp.eq.s32.totalorder %s40, 0
      %p166 = por %p164, %p165
      %p167 = scmp.ne.s32.totalorder %s153, %s154
      %p168 = scmp.eq.s32.totalorder %s41, 3
      %p169 = por %p167, %p168
      %p171 = scmp.ne.s32.totalorder %s154, %s170
      %p172 = scmp.eq.s32.totalorder %s41, 0
      %p173 = por %p171, %p172
      %s174 = ssub.s32 %s42, %s61
      %p175 = scmp.eq.s32.totalorder %s174, 0
      %s177 = sadd.s32 %s176, 1
      %s178 = scalar_select %p175, %s176, %s177
      %p181 = pneg %p175
      %p182 = scmp.eq.s32.totalorder %s35, 3
      %p183 = por %p181, %p182
      %p184 = scmp.ne.s32.totalorder %s176, %s179
      %p185 = scmp.eq.s32.totalorder %s35, 0
      %p186 = por %p184, %p185
      %p187 = scmp.ne.s32.totalorder %s176, %s179
      %p188 = scmp.eq.s32.totalorder %s40, 3
      %p189 = por %p187, %p188
      %p190 = scmp.ne.s32.totalorder %s179, %s180
      %p191 = scmp.eq.s32.totalorder %s40, 0
      %p192 = por %p190, %p191
      %p193 = scmp.ne.s32.totalorder %s179, %s180
      %p194 = scmp.eq.s32.totalorder %s41, 3
      %p195 = por %p193, %p194
      %p197 = scmp.ne.s32.totalorder %s180, %s196
      %p198 = scmp.eq.s32.totalorder %s41, 0
      %p199 = por %p197, %p198
      %s200 = ssub.s32 %s42, %s61
      %p201 = scmp.eq.s32.totalorder %s200, 0
      %s203 = sadd.s32 %s202, 1
      %s204 = scalar_select %p201, %s202, %s203
      %p207 = pneg %p201
      %p208 = scmp.eq.s32.totalorder %s35, 3
      %p209 = por %p207, %p208
      %p210 = scmp.ne.s32.totalorder %s202, %s205
      %p211 = scmp.eq.s32.totalorder %s35, 0
      %p212 = por %p210, %p211
      %p213 = scmp.ne.s32.totalorder %s202, %s205
      %p214 = scmp.eq.s32.totalorder %s40, 3
      %p215 = por %p213, %p214
      %p216 = scmp.ne.s32.totalorder %s205, %s206
      %p217 = scmp.eq.s32.totalorder %s40, 0
      %p218 = por %p216, %p217
      %p219 = scmp.ne.s32.totalorder %s205, %s206
      %p220 = scmp.eq.s32.totalorder %s41, 3
      %p221 = por %p219, %p220
      %p223 = scmp.ne.s32.totalorder %s206, %s222
      %p224 = scmp.eq.s32.totalorder %s41, 0
      %p225 = por %p223, %p224
      %s226 = ssub.s32 %s42, %s61
      %p227 = scmp.eq.s32.totalorder %s226, 0
      %s229 = sadd.s32 %s228, 1
      %s230 = scalar_select %p227, %s228, %s229
      %p233 = pneg %p227
      %p234 = scmp.eq.s32.totalorder %s35, 3
      %p235 = por %p233, %p234
      %p236 = scmp.ne.s32.totalorder %s228, %s231
      %p237 = scmp.eq.s32.totalorder %s35, 0
      %p238 = por %p236, %p237
      %p239 = scmp.ne.s32.totalorder %s228, %s231
      %p240 = scmp.eq.s32.totalorder %s40, 3
      %p241 = por %p239, %p240
      %p242 = scmp.ne.s32.totalorder %s231, %s232
      %p243 = scmp.eq.s32.totalorder %s40, 0
      %p244 = por %p242, %p243
      %p245 = scmp.ne.s32.totalorder %s231, %s232
      %p246 = scmp.eq.s32.totalorder %s41, 3
      %p247 = por %p245, %p246
      %p249 = scmp.ne.s32.totalorder %s232, %s248
      %p250 = scmp.eq.s32.totalorder %s41, 0
      %p251 = por %p249, %p250
      %s252 = ssub.s32 %s42, %s61
      %p253 = scmp.eq.s32.totalorder %s252, 0
      %s255 = sadd.s32 %s254, 1
      %s256 = scalar_select %p253, %s254, %s255
      %p259 = pneg %p253
      %p260 = scmp.eq.s32.totalorder %s35, 3
      %p261 = por %p259, %p260
      %p262 = scmp.ne.s32.totalorder %s254, %s257
      %p263 = scmp.eq.s32.totalorder %s35, 0
      %p264 = por %p262, %p263
      %p265 = scmp.ne.s32.totalorder %s254, %s257
      %p266 = scmp.eq.s32.totalorder %s40, 3
      %p267 = por %p265, %p266
      %p268 = scmp.ne.s32.totalorder %s257, %s258
      %p269 = scmp.eq.s32.totalorder %s40, 0
      %p270 = por %p268, %p269
      %p271 = scmp.ne.s32.totalorder %s257, %s258
      %p272 = scmp.eq.s32.totalorder %s41, 3
      %p273 = por %p271, %p272
      %p275 = scmp.ne.s32.totalorder %s258, %s274
      %p276 = scmp.eq.s32.totalorder %s41, 0
      %p277 = por %p275, %p276
      %s278 = ssub.s32 %s42, %s61
      %p279 = scmp.eq.s32.totalorder %s278, 0
      %s281 = sadd.s32 %s280, 1
      %s282 = scalar_select %p279, %s280, %s281
      %p285 = pneg %p279
      %p286 = scmp.eq.s32.totalorder %s35, 3
      %p287 = por %p285, %p286
      %p288 = scmp.ne.s32.totalorder %s280, %s283
      %p289 = scmp.eq.s32.totalorder %s35, 0
      %p290 = por %p288, %p289
      %p291 = scmp.ne.s32.totalorder %s280, %s283
      %p292 = scmp.eq.s32.totalorder %s40, 3
      %p293 = por %p291, %p292
      %p294 = scmp.ne.s32.totalorder %s283, %s284
      %p295 = scmp.eq.s32.totalorder %s40, 0
      %p296 = por %p294, %p295
      %p297 = scmp.ne.s32.totalorder %s283, %s284
      %p298 = scmp.eq.s32.totalorder %s41, 3
      %p299 = por %p297, %p298
      %p301 = scmp.ne.s32.totalorder %s284, %s300
      %p302 = scmp.eq.s32.totalorder %s41, 0
      %p303 = por %p301, %p302
      %s304 = ssub.s32 %s42, %s61
      %p305 = scmp.eq.s32.totalorder %s304, 0
      %s307 = sadd.s32 %s306, 1
      %s308 = scalar_select %p305, %s306, %s307
      %p311 = pneg %p305
      %p312 = scmp.eq.s32.totalorder %s35, 3
      %p313 = por %p311, %p312
      %p314 = scmp.ne.s32.totalorder %s306, %s309
      %p315 = scmp.eq.s32.totalorder %s35, 0
      %p316 = por %p314, %p315
      %p317 = scmp.ne.s32.totalorder %s306, %s309
      %p318 = scmp.eq.s32.totalorder %s40, 3
      %p319 = por %p317, %p318
      %p320 = scmp.ne.s32.totalorder %s309, %s310
      %p321 = scmp.eq.s32.totalorder %s40, 0
      %p322 = por %p320, %p321
      %p323 = scmp.ne.s32.totalorder %s309, %s310
      %p324 = scmp.eq.s32.totalorder %s41, 3
      %p325 = por %p323, %p324
      %p327 = scmp.ne.s32.totalorder %s310, %s326
      %p328 = scmp.eq.s32.totalorder %s41, 0
      %p329 = por %p327, %p328
      %s330 = ssub.s32 %s42, %s61
      %p331 = scmp.eq.s32.totalorder %s330, 0
      %s333 = sadd.s32 %s332, 1
      %s334 = scalar_select %p331, %s332, %s333
      %p337 = pneg %p331
      %p338 = scmp.eq.s32.totalorder %s35, 3
      %p339 = por %p337, %p338
      %p340 = scmp.ne.s32.totalorder %s332, %s335
      %p341 = scmp.eq.s32.totalorder %s35, 0
      %p342 = por %p340, %p341
      %p343 = scmp.ne.s32.totalorder %s332, %s335
      %p344 = scmp.eq.s32.totalorder %s40, 3
      %p345 = por %p343, %p344
      %p346 = scmp.ne.s32.totalorder %s335, %s336
      %p347 = scmp.eq.s32.totalorder %s40, 0
      %p348 = por %p346, %p347
      %p349 = scmp.ne.s32.totalorder %s335, %s336
      %p350 = scmp.eq.s32.totalorder %s41, 3
      %p351 = por %p349, %p350
      %p353 = scmp.ne.s32.totalorder %s336, %s352
      %p354 = scmp.eq.s32.totalorder %s41, 0
      %p355 = por %p353, %p354
      %s356 = ssub.s32 %s42, %s61
      %p357 = scmp.eq.s32.totalorder %s356, 0
      %s359 = sadd.s32 %s358, 1
      %s360 = scalar_select %p357, %s358, %s359
      %p363 = pneg %p357
      %p364 = scmp.eq.s32.totalorder %s35, 3
      %p365 = por %p363, %p364
      %p366 = scmp.ne.s32.totalorder %s358, %s361
      %p367 = scmp.eq.s32.totalorder %s35, 0
      %p368 = por %p366, %p367
      %p369 = scmp.ne.s32.totalorder %s358, %s361
      %p370 = scmp.eq.s32.totalorder %s40, 3
      %p371 = por %p369, %p370
      %p372 = scmp.ne.s32.totalorder %s361, %s362
      %p373 = scmp.eq.s32.totalorder %s40, 0
      %p374 = por %p372, %p373
      %p375 = scmp.ne.s32.totalorder %s361, %s362
      %p376 = scmp.eq.s32.totalorder %s41, 3
      %p377 = por %p375, %p376
      %p379 = scmp.ne.s32.totalorder %s362, %s378
      %p380 = scmp.eq.s32.totalorder %s41, 0
      %p381 = por %p379, %p380
      %s382 = ssub.s32 %s42, %s61
      %p383 = scmp.eq.s32.totalorder %s382, 0
      %s385 = sadd.s32 %s384, 1
      %s386 = scalar_select %p383, %s384, %s385
      %p389 = pneg %p383
      %p390 = scmp.eq.s32.totalorder %s35, 3
      %p391 = por %p389, %p390
      %p392 = scmp.ne.s32.totalorder %s384, %s387
      %p393 = scmp.eq.s32.totalorder %s35, 0
      %p394 = por %p392, %p393
      %p395 = scmp.ne.s32.totalorder %s384, %s387
      %p396 = scmp.eq.s32.totalorder %s40, 3
      %p397 = por %p395, %p396
      %p398 = scmp.ne.s32.totalorder %s387, %s388
      %p399 = scmp.eq.s32.totalorder %s40, 0
      %p400 = por %p398, %p399
      %p401 = scmp.ne.s32.totalorder %s387, %s388
      %p402 = scmp.eq.s32.totalorder %s41, 3
      %p403 = por %p401, %p402
      %p405 = scmp.ne.s32.totalorder %s388, %s404
      %p406 = scmp.eq.s32.totalorder %s41, 0
      %p407 = por %p405, %p406
      %s408 = ssub.s32 %s42, %s61
      %p409 = scmp.eq.s32.totalorder %s408, 0
      %s411 = sadd.s32 %s410, 1
      %s412 = scalar_select %p409, %s410, %s411
      %p415 = pneg %p409
      %p416 = scmp.eq.s32.totalorder %s35, 3
      %p417 = por %p415, %p416
      %p418 = scmp.ne.s32.totalorder %s410, %s413
      %p419 = scmp.eq.s32.totalorder %s35, 0
      %p420 = por %p418, %p419
      %p421 = scmp.ne.s32.totalorder %s410, %s413
      %p422 = scmp.eq.s32.totalorder %s40, 3
      %p423 = por %p421, %p422
      %p424 = scmp.ne.s32.totalorder %s413, %s414
      %p425 = scmp.eq.s32.totalorder %s40, 0
      %p426 = por %p424, %p425
      %p427 = scmp.ne.s32.totalorder %s413, %s414
      %p428 = scmp.eq.s32.totalorder %s41, 3
      %p429 = por %p427, %p428
      %p431 = scmp.ne.s32.totalorder %s414, %s430
      %p432 = scmp.eq.s32.totalorder %s41, 0
      %p433 = por %p431, %p432
      %s434 = ssub.s32 %s42, %s61
      %p435 = scmp.eq.s32.totalorder %s434, 0
      %s437 = sadd.s32 %s436, 1
      %s438 = scalar_select %p435, %s436, %s437
      %p441 = pneg %p435
      %p442 = scmp.eq.s32.totalorder %s35, 3
      %p443 = por %p441, %p442
      %p444 = scmp.ne.s32.totalorder %s436, %s439
      %p445 = scmp.eq.s32.totalorder %s35, 0
      %p446 = por %p444, %p445
      %p447 = scmp.ne.s32.totalorder %s436, %s439
      %p448 = scmp.eq.s32.totalorder %s40, 3
      %p449 = por %p447, %p448
      %p450 = scmp.ne.s32.totalorder %s439, %s440
      %p451 = scmp.eq.s32.totalorder %s40, 0
      %p452 = por %p450, %p451
      %p453 = scmp.ne.s32.totalorder %s439, %s440
      %p454 = scmp.eq.s32.totalorder %s41, 3
      %p455 = por %p453, %p454
      %p457 = scmp.ne.s32.totalorder %s440, %s456
      %p458 = scmp.eq.s32.totalorder %s41, 0
      %p459 = por %p457, %p458
      %s460 = ssub.s32 %s42, %s61
      %p461 = scmp.eq.s32.totalorder %s460, 0
      %s463 = sadd.s32 %s462, 1
      %s464 = scalar_select %p461, %s462, %s463
      %p467 = pneg %p461
      %p468 = scmp.eq.s32.totalorder %s35, 3
      %p469 = por %p467, %p468
      %p470 = scmp.ne.s32.totalorder %s462, %s465
      %p471 = scmp.eq.s32.totalorder %s35, 0
      %p472 = por %p470, %p471
      %p473 = scmp.ne.s32.totalorder %s462, %s465
      %p474 = scmp.eq.s32.totalorder %s40, 3
      %p475 = por %p473, %p474
      %p476 = scmp.ne.s32.totalorder %s465, %s466
      %p477 = scmp.eq.s32.totalorder %s40, 0
      %p478 = por %p476, %p477
      %p479 = scmp.ne.s32.totalorder %s465, %s466
      %p480 = scmp.eq.s32.totalorder %s41, 3
      %p481 = por %p479, %p480
      %p483 = scmp.ne.s32.totalorder %s466, %s482
      %p484 = scmp.eq.s32.totalorder %s41, 0
      %p485 = por %p483, %p484
      %s486 = ssub.s32 %s42, %s61
      %p487 = scmp.eq.s32.totalorder %s486, 0
      %s489 = sadd.s32 %s488, 1
      %s490 = scalar_select %p487, %s488, %s489
      %p493 = pneg %p487
      %p494 = scmp.eq.s32.totalorder %s35, 3
      %p495 = por %p493, %p494
      %p496 = scmp.ne.s32.totalorder %s488, %s491
      %p497 = scmp.eq.s32.totalorder %s35, 0
      %p498 = por %p496, %p497
      %p499 = scmp.ne.s32.totalorder %s488, %s491
      %p500 = scmp.eq.s32.totalorder %s40, 3
      %p501 = por %p499, %p500
      %p502 = scmp.ne.s32.totalorder %s491, %s492
      %p503 = scmp.eq.s32.totalorder %s40, 0
      %p504 = por %p502, %p503
      %p505 = scmp.ne.s32.totalorder %s491, %s492
      %p506 = scmp.eq.s32.totalorder %s41, 3
      %p507 = por %p505, %p506
      %p509 = scmp.ne.s32.totalorder %s492, %s508
      %p510 = scmp.eq.s32.totalorder %s41, 0
      %p511 = por %p509, %p510
      %s512 = ssub.s32 %s42, %s61
      %p513 = scmp.eq.s32.totalorder %s512, 0
      %s515 = sadd.s32 %s514, 1
      %s516 = scalar_select %p513, %s514, %s515
      %p519 = pneg %p513
      %p520 = scmp.eq.s32.totalorder %s35, 3
      %p521 = por %p519, %p520
      %p522 = scmp.ne.s32.totalorder %s514, %s517
      %p523 = scmp.eq.s32.totalorder %s35, 0
      %p524 = por %p522, %p523
      %p525 = scmp.ne.s32.totalorder %s514, %s517
      %p526 = scmp.eq.s32.totalorder %s40, 3
      %p527 = por %p525, %p526
      %p528 = scmp.ne.s32.totalorder %s517, %s518
      %p529 = scmp.eq.s32.totalorder %s40, 0
      %p530 = por %p528, %p529
      %p531 = scmp.ne.s32.totalorder %s517, %s518
      %p532 = scmp.eq.s32.totalorder %s41, 3
      %p533 = por %p531, %p532
      %p535 = scmp.ne.s32.totalorder %s518, %s534
      %p536 = scmp.eq.s32.totalorder %s41, 0
      %p537 = por %p535, %p536
      %s538 = ssub.s32 %s42, %s61
      %p539 = scmp.eq.s32.totalorder %s538, 0
      %s541 = sadd.s32 %s540, 1
      %s542 = scalar_select %p539, %s540, %s541
      %p545 = pneg %p539
      %p546 = scmp.eq.s32.totalorder %s35, 3
      %p547 = por %p545, %p546
      %p548 = scmp.ne.s32.totalorder %s540, %s543
      %p549 = scmp.eq.s32.totalorder %s35, 0
      %p550 = por %p548, %p549
      %p551 = scmp.ne.s32.totalorder %s540, %s543
      %p552 = scmp.eq.s32.totalorder %s40, 3
      %p553 = por %p551, %p552
      %p554 = scmp.ne.s32.totalorder %s543, %s544
      %p555 = scmp.eq.s32.totalorder %s40, 0
      %p556 = por %p554, %p555
      %p557 = scmp.ne.s32.totalorder %s543, %s544
      %p558 = scmp.eq.s32.totalorder %s41, 3
      %p559 = por %p557, %p558
      %p561 = scmp.ne.s32.totalorder %s544, %s560
      %p562 = scmp.eq.s32.totalorder %s41, 0
      %p563 = por %p561, %p562
      %s564 = ssub.s32 %s42, %s61
      %s565 = ssub.s32 %s43, %s57
      %s566 = sor.u32 %s564, %s565
      %s567 = ssub.s32 %s44, %s53
      %s568 = sor.u32 %s566, %s567
      %p569 = scmp.eq.s32.totalorder %s568, 0
      %s571 = sadd.s32 %s570, 1
      %s572 = scalar_select %p569, %s570, %s571
      %p575 = pneg %p569
      %p576 = scmp.eq.s32.totalorder %s35, 3
      %p577 = por %p575, %p576
      %p578 = scmp.ne.s32.totalorder %s570, %s573
      %p579 = scmp.eq.s32.totalorder %s35, 0
      %p580 = por %p578, %p579
      %p581 = scmp.ne.s32.totalorder %s570, %s573
      %p582 = scmp.eq.s32.totalorder %s40, 3
      %p583 = por %p581, %p582
      %p584 = scmp.ne.s32.totalorder %s573, %s574
      %p585 = scmp.eq.s32.totalorder %s40, 0
      %p586 = por %p584, %p585
      %p587 = scmp.ne.s32.totalorder %s573, %s574
      %p588 = scmp.eq.s32.totalorder %s41, 3
      %p589 = por %p587, %p588
      %p591 = scmp.ne.s32.totalorder %s574, %s590
      %p592 = scmp.eq.s32.totalorder %s41, 0
      %p593 = por %p591, %p592
      %p594 = scmp.le.s32.totalorder 1, %s35
      %p595 = scmp.lt.s32.totalorder %s35, 5
      %p596 = pnand %p594, %p595
      %p597 = pneg %p596
      // Predicated region
      $region9: #{tpu_custom_call.1} parent=5 // pred_check
        _
      $region10: #{tpu_custom_call.1} parent=5 // pred_check_branch
        %599 = sbr.rel (%p596) target = $region12
      $region11: #{tpu_custom_call.1} parent=5 // pred_region
        %s600 = ssub.s32 %s35, 1
        // Predicated region
        $region13: #{tpu_custom_call.1} parent=11 // pred_check
          %p601 = pneg %p166
        $region14: #{tpu_custom_call.1} parent=11 // pred_check_branch
          %603 = sbr.rel (%p601) target = $region16
        $region15: #{tpu_custom_call.1} parent=11 // pred_region
          %p604 = scmp.lt.s32.totalorder %s45, 1
          %s605 = scalar_select %p604, %s45, 1
          %s606 = smul.addr %s605, 4
          %s607 = smul.addr %s606, 4
          %s608 = scalar_lea.vmem %s3, %s607
        $region16: #{tpu_custom_call.1} parent=11 // pred_fallthru
          _
        // Predicated region
        $region17: #{tpu_custom_call.1} parent=11 // pred_check
          %p609 = pneg %p192
        $region18: #{tpu_custom_call.1} parent=11 // pred_check_branch
          %611 = sbr.rel (%p609) target = $region20
        $region19: #{tpu_custom_call.1} parent=11 // pred_region
          %p612 = scmp.lt.s32.totalorder %s45, 1
          %s613 = scalar_select %p612, %s45, 1
          %s614 = smul.addr %s613, 4
          %s615 = smul.addr %s614, 4
          %s616 = scalar_lea.vmem %s4, %s615
        $region20: #{tpu_custom_call.1} parent=11 // pred_fallthru
          _
        // Predicated region
        $region21: #{tpu_custom_call.1} parent=11 // pred_check
          %p617 = pneg %p218
        $region22: #{tpu_custom_call.1} parent=11 // pred_check_branch
          %619 = sbr.rel (%p617) target = $region24
        $region23: #{tpu_custom_call.1} parent=11 // pred_region
          %p620 = scmp.lt.s32.totalorder %s45, 1
          %s621 = scalar_select %p620, %s45, 1
          %s622 = smul.addr %s621, 4
          %s623 = smul.addr %s622, 4
          %s624 = scalar_lea.vmem %s5, %s623
        $region24: #{tpu_custom_call.1} parent=11 // pred_fallthru
          _
        // Predicated region
        $region25: #{tpu_custom_call.1} parent=11 // pred_check
          %p625 = pneg %p244
        $region26: #{tpu_custom_call.1} parent=11 // pred_check_branch
          %627 = sbr.rel (%p625) target = $region28
        $region27: #{tpu_custom_call.1} parent=11 // pred_region
          %p628 = scmp.lt.s32.totalorder %s45, 1
          %s629 = scalar_select %p628, %s45, 1
          %s630 = scalar_lea.vmem %s6, %s629
        $region28: #{tpu_custom_call.1} parent=11 // pred_fallthru
          _
        // Predicated region
        $region29: #{tpu_custom_call.1} parent=11 // pred_check
          %p631 = pneg %p270
        $region30: #{tpu_custom_call.1} parent=11 // pred_check_branch
          %633 = sbr.rel (%p631) target = $region32
        $region31: #{tpu_custom_call.1} parent=11 // pred_region
          %p634 = scmp.lt.s32.totalorder %s45, 1
          %s635 = scalar_select %p634, %s45, 1
          %s636 = scalar_lea.vmem %s7, %s635
        $region32: #{tpu_custom_call.1} parent=11 // pred_fallthru
          _
        // Predicated region
        $region33: #{tpu_custom_call.1} parent=11 // pred_check
          %p637 = pneg %p296
        $region34: #{tpu_custom_call.1} parent=11 // pred_check_branch
          %639 = sbr.rel (%p637) target = $region36
        $region35: #{tpu_custom_call.1} parent=11 // pred_region
          %p640 = scmp.lt.s32.totalorder %s45, 1
          %s641 = scalar_select %p640, %s45, 1
          %s642 = scalar_lea.vmem %s8, %s641
        $region36: #{tpu_custom_call.1} parent=11 // pred_fallthru
          _
        // Predicated region
        $region37: #{tpu_custom_call.1} parent=11 // pred_check
          %p643 = pneg %p322
        $region38: #{tpu_custom_call.1} parent=11 // pred_check_branch
          %645 = sbr.rel (%p643) target = $region40
        $region39: #{tpu_custom_call.1} parent=11 // pred_region
          %p646 = scmp.lt.s32.totalorder %s45, 1
          %s647 = scalar_select %p646, %s45, 1
          %s648 = smul.addr %s647, 4
          %s649 = smul.addr %s648, 4
          %s650 = scalar_lea.vmem %s9, %s649
        $region40: #{tpu_custom_call.1} parent=11 // pred_fallthru
          _
        // Predicated region
        $region41: #{tpu_custom_call.1} parent=11 // pred_check
          %p651 = pneg %p348
        $region42: #{tpu_custom_call.1} parent=11 // pred_check_branch
          %653 = sbr.rel (%p651) target = $region44
        $region43: #{tpu_custom_call.1} parent=11 // pred_region
          %p654 = scmp.lt.s32.totalorder %s45, 1
          %s655 = scalar_select %p654, %s45, 1
          %s656 = scalar_lea.vmem %s10, %s655
        $region44: #{tpu_custom_call.1} parent=11 // pred_fallthru
          _
        // Predicated region
        $region45: #{tpu_custom_call.1} parent=11 // pred_check
          %p657 = pneg %p374
        $region46: #{tpu_custom_call.1} parent=11 // pred_check_branch
          %659 = sbr.rel (%p657) target = $region48
        $region47: #{tpu_custom_call.1} parent=11 // pred_region
          %661 = vsyncadd [#allocation8], 0
          %s662 = scalar_lea.hbm %s11, %s45
          %s664 = sshll.u32 %s662, 4
          %s665 = int_to_ptr.hbm [resolvable:$true] %s664
          %s666 = sshll.u32 [#allocation9], 4
          %s667 = int_to_ptr.vmem [resolvable:$true] %s666
          %669 = dma.hbm_to_vmem [thread:$0]  %s665, 16, %s667, [#allocation8]
        $region48: #{tpu_custom_call.1} parent=11 // pred_fallthru
          _
        // Predicated region
        $region49: #{tpu_custom_call.1} parent=11 // pred_check
          %p670 = pneg %p400
        $region50: #{tpu_custom_call.1} parent=11 // pred_check_branch
          %672 = sbr.rel (%p670) target = $region52
        $region51: #{tpu_custom_call.1} parent=11 // pred_region
          %p673 = scmp.lt.s32.totalorder %s45, 1
          %s674 = scalar_select %p673, %s45, 1
          %s675 = scalar_lea.vmem %s12, %s674
        $region52: #{tpu_custom_call.1} parent=11 // pred_fallthru
          _
        // Predicated region
        $region53: #{tpu_custom_call.1} parent=11 // pred_check
          %p676 = pneg %p426
        $region54: #{tpu_custom_call.1} parent=11 // pred_check_branch
          %678 = sbr.rel (%p676) target = $region56
        $region55: #{tpu_custom_call.1} parent=11 // pred_region
          %680 = vsyncadd [#allocation11], 0
          %s681 = smul.addr %s45, 4
          %s682 = smul.addr %s681, 4
          %s683 = scalar_lea.hbm %s13, %s682
          %s684 = sshll.u32 %s683, 4
          %s685 = int_to_ptr.hbm [resolvable:$true] %s684
          %s686 = sshll.u32 [#allocation10], 4
          %s687 = int_to_ptr.vmem [resolvable:$true] %s686
          %692 = dma.hbm_to_vmem [thread:$0]  %s685, 256, %s687, [#allocation11], 64, 64, 4
        $region56: #{tpu_custom_call.1} parent=11 // pred_fallthru
          _
        // Predicated region
        $region57: #{tpu_custom_call.1} parent=11 // pred_check
          %p693 = pneg %p452
        $region58: #{tpu_custom_call.1} parent=11 // pred_check_branch
          %695 = sbr.rel (%p693) target = $region60
        $region59: #{tpu_custom_call.1} parent=11 // pred_region
          %p696 = scmp.lt.s32.totalorder %s45, 1
          %s697 = scalar_select %p696, %s45, 1
          %s698 = scalar_lea.vmem %s14, %s697
        $region60: #{tpu_custom_call.1} parent=11 // pred_fallthru
          _
        // Predicated region
        $region61: #{tpu_custom_call.1} parent=11 // pred_check
          %p699 = pneg %p478
        $region62: #{tpu_custom_call.1} parent=11 // pred_check_branch
          %701 = sbr.rel (%p699) target = $region64
        $region63: #{tpu_custom_call.1} parent=11 // pred_region
          %p702 = scmp.lt.s32.totalorder %s45, 1
          %s703 = scalar_select %p702, %s45, 1
          %s704 = smul.addr %s703, 16
          %s705 = smul.addr %s704, 4
          %s706 = scalar_lea.vmem %s15, %s705
        $region64: #{tpu_custom_call.1} parent=11 // pred_fallthru
          _
        // Predicated region
        $region65: #{tpu_custom_call.1} parent=11 // pred_check
          %p707 = pneg %p504
        $region66: #{tpu_custom_call.1} parent=11 // pred_check_branch
          %709 = sbr.rel (%p707) target = $region68
        $region67: #{tpu_custom_call.1} parent=11 // pred_region
          %p710 = scmp.lt.s32.totalorder %s45, 1
          %s711 = scalar_select %p710, %s45, 1
          %s712 = scalar_lea.vmem %s16, %s711
        $region68: #{tpu_custom_call.1} parent=11 // pred_fallthru
          _
        // Predicated region
        $region69: #{tpu_custom_call.1} parent=11 // pred_check
          %p713 = pneg %p530
        $region70: #{tpu_custom_call.1} parent=11 // pred_check_branch
          %715 = sbr.rel (%p713) target = $region72
        $region71: #{tpu_custom_call.1} parent=11 // pred_region
          %717 = vsyncadd [#allocation11], 0
          %s718 = scalar_lea.hbm %s17, %s45
          %s720 = sshll.u32 %s718, 4
          %s721 = int_to_ptr.hbm [resolvable:$true] %s720
          %s722 = sshll.u32 [#allocation12], 4
          %s723 = int_to_ptr.vmem [resolvable:$true] %s722
          %725 = dma.hbm_to_vmem [thread:$0]  %s721, 16, %s723, [#allocation11]
        $region72: #{tpu_custom_call.1} parent=11 // pred_fallthru
          _
        // Predicated region
        $region73: #{tpu_custom_call.1} parent=11 // pred_check
          %p726 = pneg %p556
        $region74: #{tpu_custom_call.1} parent=11 // pred_check_branch
          %728 = sbr.rel (%p726) target = $region76
        $region75: #{tpu_custom_call.1} parent=11 // pred_region
          %p729 = scmp.lt.s32.totalorder %s45, 1
          %s730 = scalar_select %p729, %s45, 1
          %s731 = scalar_lea.vmem %s18, %s730
        $region76: #{tpu_custom_call.1} parent=11 // pred_fallthru
          _
      $region12: #{tpu_custom_call.1} parent=5 // pred_fallthru
        _
      %p732 = scmp.lt.s32.totalorder %s35, 4
      // Predicated region
      $region77: #{tpu_custom_call.1} parent=5 // pred_check
        %p733 = pneg %p732
      $region78: #{tpu_custom_call.1} parent=5 // pred_check_branch
        %735 = sbr.rel (%p733) target = $region80
      $region79: #{tpu_custom_call.1} parent=5 // pred_region
        // Predicated region
        $region81: #{tpu_custom_call.1} parent=79 // pred_check
          %p736 = pneg %p78
        $region82: #{tpu_custom_call.1} parent=79 // pred_check_branch
          %738 = sbr.rel (%p736) target = $region84
        $region83: #{tpu_custom_call.1} parent=79 // pred_region
          %p739 = scmp.lt.s32.totalorder %s42, 1
          %s740 = scalar_select %p739, %s42, 1
          %p741 = scmp.lt.s32.totalorder %s43, 1
          %s742 = scalar_select %p741, %s43, 1
          %p743 = scmp.lt.s32.totalorder %s44, 0
          %s744 = scalar_select %p743, %s44, 0
          %s745 = sadd.s32 %s744, %s742
          %s746 = smul.addr %s740, 2
          %s747 = sadd.s32 %s745, %s746
          %s748 = smul.addr %s747, 8
          %s749 = scalar_lea.vmem %s0, %s748
        $region84: #{tpu_custom_call.1} parent=79 // pred_fallthru
          _
        // Predicated region
        $region85: #{tpu_custom_call.1} parent=79 // pred_check
          %p750 = pneg %p106
        $region86: #{tpu_custom_call.1} parent=79 // pred_check_branch
          %752 = sbr.rel (%p750) target = $region88
        $region87: #{tpu_custom_call.1} parent=79 // pred_region
          %s753 = sand.u32 %s96, 1
          %s754 = scalar_lea.sflag [#allocation5], %s753
          %s755 = sand.u32 %s96, 1
          %s756 = smul.addr %s755, 4
          %s757 = scalar_lea.vmem [#allocation4], %s756
          %759 = vsyncadd %s754, 0
          %s760 = smul.addr %s42, 2
          %s761 = sadd.s32 %s43, %s760
          %s762 = smul.addr %s761, 4
          %s763 = scalar_lea.hbm %s1, %s762
          %s765 = sshll.u32 %s763, 4
          %s766 = int_to_ptr.hbm [resolvable:$true] %s765
          %s767 = sshll.u32 %s757, 4
          %s768 = int_to_ptr.vmem [resolvable:$true] %s767
          %770 = dma.hbm_to_vmem [thread:$0]  %s766, 64, %s768, %s754
        $region88: #{tpu_custom_call.1} parent=79 // pred_fallthru
          _
        // Predicated region
        $region89: #{tpu_custom_call.1} parent=79 // pred_check
          %p771 = pneg %p134
        $region90: #{tpu_custom_call.1} parent=79 // pred_check_branch
          %773 = sbr.rel (%p771) target = $region92
        $region91: #{tpu_custom_call.1} parent=79 // pred_region
          %s774 = sand.u32 %s35, 1
          %s775 = scalar_lea.sflag [#allocation8], %s774
          %s776 = sand.u32 %s124, 1
          %s777 = smul.addr %s776, 4
          %s778 = scalar_lea.vmem [#allocation7], %s777
          %780 = vsyncadd %s775, 0
          %s781 = smul.addr %s42, 2
          %s782 = sadd.s32 %s43, %s781
          %s783 = smul.addr %s782, 4
          %s784 = scalar_lea.hbm %s2, %s783
          %s786 = sshll.u32 %s784, 4
          %s787 = int_to_ptr.hbm [resolvable:$true] %s786
          %s788 = sshll.u32 %s778, 4
          %s789 = int_to_ptr.vmem [resolvable:$true] %s788
          %791 = dma.hbm_to_vmem [thread:$0]  %s787, 64, %s789, %s775
        $region92: #{tpu_custom_call.1} parent=79 // pred_fallthru
          _
      $region80: #{tpu_custom_call.1} parent=5 // pred_fallthru
        _
      %p792 = scmp.le.s32.totalorder 1, %s35
      %p793 = scmp.lt.s32.totalorder %s35, 5
      %p794 = pnand %p792, %p793
      %p795 = pneg %p794
      // Predicated region
      $region93: #{tpu_custom_call.1} parent=5 // pred_check
        _
      $region94: #{tpu_custom_call.1} parent=5 // pred_check_branch
        %797 = sbr.rel (%p794) target = $region96
      $region95: #{tpu_custom_call.1} parent=5 // pred_region
        %s798 = ssub.s32 %s35, 1
        %s799 = sand.u32 %s99, 1
        %s800 = scalar_lea.sflag [#allocation5], %s799
        %s801 = sand.u32 %s99, 1
        %s802 = smul.addr %s801, 4
        %s803 = scalar_lea.vmem [#allocation4], %s802
        // Predicated region
        $region97: #{tpu_custom_call.1} parent=95 // pred_check
          %p804 = pneg %p112
        $region98: #{tpu_custom_call.1} parent=95 // pred_check_branch
          %806 = sbr.rel (%p804) target = $region100
        $region99: #{tpu_custom_call.1} parent=95 // pred_region
          %808 = dma.done %s800, 64
        $region100: #{tpu_custom_call.1} parent=95 // pred_fallthru
          _
        %s809 = sand.u32 %s40, 1
        %s810 = scalar_lea.sflag [#allocation8], %s809
        %s811 = sand.u32 %s127, 1
        %s812 = smul.addr %s811, 4
        %s813 = scalar_lea.vmem [#allocation7], %s812
        // Predicated region
        $region101: #{tpu_custom_call.1} parent=95 // pred_check
          %p814 = pneg %p140
        $region102: #{tpu_custom_call.1} parent=95 // pred_check_branch
          %816 = sbr.rel (%p814) target = $region104
        $region103: #{tpu_custom_call.1} parent=95 // pred_region
          %818 = dma.done %s810, 64
        $region104: #{tpu_custom_call.1} parent=95 // pred_fallthru
          _
        // Predicated region
        $region105: #{tpu_custom_call.1} parent=95 // pred_check
          %p819 = pneg %p374
        $region106: #{tpu_custom_call.1} parent=95 // pred_check_branch
          %821 = sbr.rel (%p819) target = $region108
        $region107: #{tpu_custom_call.1} parent=95 // pred_region
          %823 = dma.done [#allocation8], 16
        $region108: #{tpu_custom_call.1} parent=95 // pred_fallthru
          _
        // Predicated region
        $region109: #{tpu_custom_call.1} parent=95 // pred_check
          %p824 = pneg %p426
        $region110: #{tpu_custom_call.1} parent=95 // pred_check_branch
          %826 = sbr.rel (%p824) target = $region112
        $region111: #{tpu_custom_call.1} parent=95 // pred_region
          %828 = dma.done [#allocation11], 256
        $region112: #{tpu_custom_call.1} parent=95 // pred_fallthru
          _
        // Predicated region
        $region113: #{tpu_custom_call.1} parent=95 // pred_check
          %p829 = pneg %p530
        $region114: #{tpu_custom_call.1} parent=95 // pred_check_branch
          %831 = sbr.rel (%p829) target = $region116
        $region115: #{tpu_custom_call.1} parent=95 // pred_region
          %833 = dma.done [#allocation11], 16
        $region116: #{tpu_custom_call.1} parent=95 // pred_fallthru
          _
        %p834 = scmp.lt.s32.totalorder %s45, 1
        %s835 = scalar_select %p834, %s45, 1
        %p836 = scmp.lt.s32.totalorder %s46, 1
        %s837 = scalar_select %p836, %s46, 1
        %p838 = scmp.lt.s32.totalorder %s47, 0
        %s839 = scalar_select %p838, %s47, 0
        %s840 = sadd.s32 %s839, %s837
        %s841 = smul.addr %s835, 2
        %s842 = sadd.s32 %s840, %s841
        %s843 = smul.addr %s842, 8
        %s844 = scalar_lea.vmem %s0, %s843
        %p845 = pneg %p84
        %p846 = pneg %p81
        %s847 = sand.u32 %s99, 1
        %s848 = scalar_lea.sflag [#allocation5], %s847
        %s849 = sand.u32 %s99, 1
        %s850 = smul.addr %s849, 4
        %s851 = scalar_lea.vmem [#allocation4], %s850
        %p852 = pneg %p112
        %p853 = pneg %p109
        %s854 = sand.u32 %s40, 1
        %s855 = scalar_lea.sflag [#allocation8], %s854
        %s856 = sand.u32 %s127, 1
        %s857 = smul.addr %s856, 4
        %s858 = scalar_lea.vmem [#allocation7], %s857
        %p859 = pneg %p140
        %p860 = pneg %p137
        %p861 = scmp.lt.s32.totalorder %s45, 1
        %s862 = scalar_select %p861, %s45, 1
        %s863 = smul.addr %s862, 4
        %s864 = smul.addr %s863, 4
        %s865 = scalar_lea.vmem %s3, %s864
        %p866 = pneg %p166
        %p867 = pneg %p163
        %p868 = scmp.lt.s32.totalorder %s45, 1
        %s869 = scalar_select %p868, %s45, 1
        %s870 = smul.addr %s869, 4
        %s871 = smul.addr %s870, 4
        %s872 = scalar_lea.vmem %s4, %s871
        %p873 = pneg %p192
        %p874 = pneg %p189
        %p875 = scmp.lt.s32.totalorder %s45, 1
        %s876 = scalar_select %p875, %s45, 1
        %s877 = smul.addr %s876, 4
        %s878 = smul.addr %s877, 4
        %s879 = scalar_lea.vmem %s5, %s878
        %p880 = pneg %p218
        %p881 = pneg %p215
        %p882 = scmp.lt.s32.totalorder %s45, 1
        %s883 = scalar_select %p882, %s45, 1
        %s884 = scalar_lea.vmem %s6, %s883
        %p885 = pneg %p244
        %p886 = pneg %p241
        %p887 = scmp.lt.s32.totalorder %s45, 1
        %s888 = scalar_select %p887, %s45, 1
        %s889 = scalar_lea.vmem %s7, %s888
        %p890 = pneg %p270
        %p891 = pneg %p267
        %p892 = scmp.lt.s32.totalorder %s45, 1
        %s893 = scalar_select %p892, %s45, 1
        %s894 = scalar_lea.vmem %s8, %s893
        %p895 = pneg %p296
        %p896 = pneg %p293
        %p897 = scmp.lt.s32.totalorder %s45, 1
        %s898 = scalar_select %p897, %s45, 1
        %s899 = smul.addr %s898, 4
        %s900 = smul.addr %s899, 4
        %s901 = scalar_lea.vmem %s9, %s900
        %p902 = pneg %p322
        %p903 = pneg %p319
        %p904 = scmp.lt.s32.totalorder %s45, 1
        %s905 = scalar_select %p904, %s45, 1
        %s906 = scalar_lea.vmem %s10, %s905
        %p907 = pneg %p348
        %p908 = pneg %p345
        %p909 = pneg %p374
        %p910 = pneg %p371
        %p911 = scmp.lt.s32.totalorder %s45, 1
        %s912 = scalar_select %p911, %s45, 1
        %s913 = scalar_lea.vmem %s12, %s912
        %p914 = pneg %p400
        %p915 = pneg %p397
        %p916 = pneg %p426
        %p917 = pneg %p423
        %p918 = scmp.lt.s32.totalorder %s45, 1
        %s919 = scalar_select %p918, %s45, 1
        %s920 = scalar_lea.vmem %s14, %s919
        %p921 = pneg %p452
        %p922 = pneg %p449
        %p923 = scmp.lt.s32.totalorder %s45, 1
        %s924 = scalar_select %p923, %s45, 1
        %s925 = smul.addr %s924, 16
        %s926 = smul.addr %s925, 4
        %s927 = scalar_lea.vmem %s15, %s926
        %p928 = pneg %p478
        %p929 = pneg %p475
        %p930 = scmp.lt.s32.totalorder %s45, 1
        %s931 = scalar_select %p930, %s45, 1
        %s932 = scalar_lea.vmem %s16, %s931
        %p933 = pneg %p504
        %p934 = pneg %p501
        %p935 = pneg %p530
        %p936 = pneg %p527
        %p937 = scmp.lt.s32.totalorder %s45, 1
        %s938 = scalar_select %p937, %s45, 1
        %s939 = scalar_lea.vmem %s18, %s938
        %p940 = pneg %p556
        %p941 = pneg %p553
        %p942 = pneg %p586
        %p943 = pneg %p583
        %s944 = sand.u32 %s573, 1
        %s945 = scalar_lea.sflag [#allocation6], %s944
        %s946 = sand.u32 %s573, 1
        %s947 = smul.addr %s946, 8
        %s948 = scalar_lea.vmem [#allocation13], %s947
        %p949 = scmp.lt.s32.totalorder %s45, 1
        %s950 = scalar_select %p949, %s45, 1
        %p951 = scmp.lt.s32.totalorder %s46, 1
        %s952 = scalar_select %p951, %s46, 1
        %p953 = scmp.lt.s32.totalorder %s47, 0
        %s954 = scalar_select %p953, %s47, 0
        %s955 = sadd.s32 %s954, %s952
        %s956 = smul.addr %s950, 2
        %s957 = sadd.s32 %s955, %s956
        %s958 = smul.addr %s957, 8
        %s959 = scalar_lea.vmem %s0, %s958
        %p960 = scmp.lt.s32.totalorder %s45, 1
        %s961 = scalar_select %p960, %s45, 1
        %s962 = smul.addr %s961, 4
        %s963 = smul.addr %s962, 4
        %s964 = scalar_lea.vmem %s3, %s963
        %p965 = scmp.lt.s32.totalorder %s45, 1
        %s966 = scalar_select %p965, %s45, 1
        %s967 = smul.addr %s966, 4
        %s968 = smul.addr %s967, 4
        %s969 = scalar_lea.vmem %s4, %s968
        %p970 = scmp.lt.s32.totalorder %s45, 1
        %s971 = scalar_select %p970, %s45, 1
        %s972 = smul.addr %s971, 4
        %s973 = smul.addr %s972, 4
        %s974 = scalar_lea.vmem %s5, %s973
        %p975 = scmp.lt.s32.totalorder %s45, 1
        %s976 = scalar_select %p975, %s45, 1
        %s977 = scalar_lea.vmem %s6, %s976
        %p978 = scmp.lt.s32.totalorder %s45, 1
        %s979 = scalar_select %p978, %s45, 1
        %s980 = scalar_lea.vmem %s7, %s979
        %p981 = scmp.lt.s32.totalorder %s45, 1
        %s982 = scalar_select %p981, %s45, 1
        %s983 = scalar_lea.vmem %s8, %s982
        %p984 = scmp.lt.s32.totalorder %s45, 1
        %s985 = scalar_select %p984, %s45, 1
        %s986 = smul.addr %s985, 4
        %s987 = smul.addr %s986, 4
        %s988 = scalar_lea.vmem %s9, %s987
        %p989 = scmp.lt.s32.totalorder %s45, 1
        %s990 = scalar_select %p989, %s45, 1
        %s991 = scalar_lea.vmem %s10, %s990
        %p992 = scmp.lt.s32.totalorder %s45, 1
        %s993 = scalar_select %p992, %s45, 1
        %s994 = scalar_lea.vmem %s12, %s993
        %p995 = scmp.lt.s32.totalorder %s45, 1
        %s996 = scalar_select %p995, %s45, 1
        %s997 = scalar_lea.vmem %s14, %s996
        %p998 = scmp.lt.s32.totalorder %s45, 1
        %s999 = scalar_select %p998, %s45, 1
        %s1000 = smul.addr %s999, 16
        %s1001 = smul.addr %s1000, 4
        %s1002 = scalar_lea.vmem %s15, %s1001
        %p1003 = scmp.lt.s32.totalorder %s45, 1
        %s1004 = scalar_select %p1003, %s45, 1
        %s1005 = scalar_lea.vmem %s16, %s1004
        %p1006 = scmp.lt.s32.totalorder %s45, 1
        %s1007 = scalar_select %p1006, %s45, 1
        %s1008 = scalar_lea.vmem %s18, %s1007
        %p1010 = scmp.eq.s32.totalorder %s47, 0
        // Predicated region
        $region117: #{tpu_custom_call.1} parent=95 // pred_check
          %p1011 = pneg %p1010
        $region118: #{tpu_custom_call.1} parent=95 // pred_check_branch
          %1013 = sbr.rel (%p1011) target = $region120
        $region119: #{tpu_custom_call.1} parent=95 // pred_region
          %v1014 = vld [vmem:[%s803] sm:$0xf]
          %v1015 = vld [vmem:[%s969] sm:$0xf]
          %v1016 = vld [vmem:[%s969 + $0x4] sm:$0xf]
          %v1017 = vld [vmem:[%s969 + $0x8] sm:$0xf]
          %v1018 = vld [vmem:[%s969 + $0xc] sm:$0xf]
          %v1019 = vld [vmem:[%s980] sm:$0x1]
          %v1021 = vperm.slane %v1019, 0
          %v1027 = vunpack.c.l.b16 %v1015
          %v1028 = vunpack.c.l.b16 %v1016
          %v1029 = vunpack.c.l.b16 %v1017
          %v1030 = vunpack.c.l.b16 %v1018
          %v1031 = vpack.c.b16 %v1028, %v1027
          %v1032 = vpack.c.b16 %v1030, %v1029
          %vm1035 = vcmask 261120
          %v1037 = vsel %vm1035, %v1014, 0
          %1039 = vmatpush.bf16.msra.mxu0 0
          %1040 = vmatpush.bf16.msra.mxu0 0
          %1041 = vmatpush.bf16.msra.mxu0 0
          %1042 = vmatpush.bf16.msra.mxu0 0
          %1043 = vmatpush.bf16.msra.mxu0 0
          %1044 = vmatpush.bf16.msra.mxu0 0
          %1045 = vmatpush.bf16.msra.mxu0 %v1032
          %1046 = vmatpush.bf16.msra.mxu0 %v1031
          %1047 = vmatmul.bf16.gmra.mxu0 %v1037
          %v1048 = vpop.f32.mrf.mxu0
          %v1049 = vadd.f32 %v1021, %v1048
          %v1050 = vpop.f32.mrf.mxu0
          %1051 = vdwg.mxu0
          %v1052 = vld [vmem:[%s813] sm:$0xf]
          %v1053 = vld [vmem:[%s974] sm:$0xf]
          %v1054 = vld [vmem:[%s974 + $0x4] sm:$0xf]
          %v1055 = vld [vmem:[%s974 + $0x8] sm:$0xf]
          %v1056 = vld [vmem:[%s974 + $0xc] sm:$0xf]
          %v1057 = vld [vmem:[%s983] sm:$0x1]
          %v1059 = vperm.slane %v1057, 0
          %v1065 = vunpack.c.l.b16 %v1053
          %v1066 = vunpack.c.l.b16 %v1054
          %v1067 = vunpack.c.l.b16 %v1055
          %v1068 = vunpack.c.l.b16 %v1056
          %v1069 = vpack.c.b16 %v1066, %v1065
          %v1070 = vpack.c.b16 %v1068, %v1067
          %v1074 = vsel %vm1035, %v1052, 0
          %1076 = vmatpush.bf16.msra.mxu0 0
          %1077 = vmatpush.bf16.msra.mxu0 0
          %1078 = vmatpush.bf16.msra.mxu0 0
          %1079 = vmatpush.bf16.msra.mxu0 0
          %1080 = vmatpush.bf16.msra.mxu0 0
          %1081 = vmatpush.bf16.msra.mxu0 0
          %1082 = vmatpush.bf16.msra.mxu0 %v1070
          %1083 = vmatpush.bf16.msra.mxu0 %v1069
          %1084 = vmatmul.bf16.gmra.mxu0 %v1074
          %v1085 = vpop.f32.mrf.mxu0
          %v1086 = vadd.f32 %v1059, %v1085
          %v1087 = vpop.f32.mrf.mxu0
          %1088 = vdwg.mxu0
          %1090 = vrot.lane.b32.xlu0 %v1049, 120
          %v1091 = vpop.permute.xlu0 %1090
          %1093 = vrot.lane.b32.xlu0 %v1049, 112
          %v1094 = vpop.permute.xlu0 %1093
          %1096 = vrot.lane.b32.xlu0 %v1049, 104
          %v1097 = vpop.permute.xlu0 %1096
          %v1099 = vrot.slane %v1094, 4
          %vm1100 = vcmask 1047556
          %v1101 = vsel %vm1100, %v1099, %v1049
          %v1102 = vrot.slane %v1049, 4
          %v1103 = vsel %vm1100, %v1094, %v1102
          %v1105 = vunpack.c.l.s4 1983009808
          %v1106 = vunpack.c.0.s8 %v1105
          %v1107 = vperm.slane %v1101, %v1106
          %v1109 = vunpack.c.l.s4 1983009808
          %v1110 = vunpack.c.0.s8 %v1109
          %v1111 = vperm.slane %v1103, %v1110
          %v1112 = vrot.slane %v1097, 4
          %v1113 = vsel %vm1100, %v1112, %v1091
          %v1114 = vrot.slane %v1091, 4
          %v1115 = vsel %vm1100, %v1097, %v1114
          %v1117 = vunpack.c.l.s4 1983009808
          %v1118 = vunpack.c.0.s8 %v1117
          %v1119 = vperm.slane %v1113, %v1118
          %v1121 = vunpack.c.l.s4 1983009808
          %v1122 = vunpack.c.0.s8 %v1121
          %v1123 = vperm.slane %v1115, %v1122
          %v1124 = vrot.slane %v1119, 4
          %v1125 = vsel %vm1100, %v1124, %v1107
          %v1126 = vrot.slane %v1107, 4
          %v1127 = vsel %vm1100, %v1119, %v1126
          %v1129 = vunpack.c.l.s4 1934713408
          %v1130 = vunpack.c.0.s8 %v1129
          %v1131 = vperm.slane %v1125, %v1130
          %v1133 = vunpack.c.l.s4 1934713408
          %v1134 = vunpack.c.0.s8 %v1133
          %v1135 = vperm.slane %v1127, %v1134
          %v1136 = vrot.slane %v1123, 4
          %v1137 = vsel %vm1100, %v1136, %v1111
          %v1138 = vrot.slane %v1111, 4
          %v1139 = vsel %vm1100, %v1123, %v1138
          %v1141 = vunpack.c.l.s4 1934713408
          %v1142 = vunpack.c.0.s8 %v1141
          %v1143 = vperm.slane %v1137, %v1142
          %v1145 = vunpack.c.l.s4 1934713408
          %v1146 = vunpack.c.0.s8 %v1145
          %v1147 = vperm.slane %v1139, %v1146
          %v1148 = vrot.slane %v1131, 4
          %v1149 = vsel %vm1100, 0.0, %v1148
          %v1150 = vrot.slane %v1135, 4
          %v1151 = vsel %vm1100, 0.0, %v1150
          %v1152 = vrot.slane %v1143, 4
          %v1153 = vsel %vm1100, 0.0, %v1152
          %v1154 = vrot.slane %v1147, 4
          %v1155 = vsel %vm1100, 0.0, %v1154
          %v1156 = vsel %vm1100, %v1150, %v1131
          %v1158 = vunpack.c.l.s4 1983009808
          %v1159 = vunpack.c.0.s8 %v1158
          %v1160 = vperm.slane %v1156, %v1159
          %v1161 = vrot.slane %v1151, 4
          %v1162 = vsel %vm1100, %v1161, %v1149
          %v1164 = vunpack.c.l.s4 1983009808
          %v1165 = vunpack.c.0.s8 %v1164
          %v1166 = vperm.slane %v1162, %v1165
          %v1167 = vsel %vm1100, %v1154, %v1143
          %v1169 = vunpack.c.l.s4 1983009808
          %v1170 = vunpack.c.0.s8 %v1169
          %v1171 = vperm.slane %v1167, %v1170
          %v1172 = vrot.slane %v1155, 4
          %v1173 = vsel %vm1100, %v1172, %v1153
          %v1175 = vunpack.c.l.s4 1983009808
          %v1176 = vunpack.c.0.s8 %v1175
          %v1177 = vperm.slane %v1173, %v1176
          %v1178 = vrot.slane %v1166, 4
          %v1179 = vsel %vm1100, %v1178, %v1160
          %v1180 = vrot.slane %v1160, 4
          %v1181 = vsel %vm1100, %v1166, %v1180
          %v1183 = vunpack.c.l.s4 1934713408
          %v1184 = vunpack.c.0.s8 %v1183
          %v1185 = vperm.slane %v1179, %v1184
          %v1187 = vunpack.c.l.s4 1934713408
          %v1188 = vunpack.c.0.s8 %v1187
          %v1189 = vperm.slane %v1181, %v1188
          %v1190 = vrot.slane %v1177, 4
          %v1191 = vsel %vm1100, %v1190, %v1171
          %v1192 = vrot.slane %v1171, 4
          %v1193 = vsel %vm1100, %v1177, %v1192
          %v1195 = vunpack.c.l.s4 1934713408
          %v1196 = vunpack.c.0.s8 %v1195
          %v1197 = vperm.slane %v1191, %v1196
          %v1199 = vunpack.c.l.s4 1934713408
          %v1200 = vunpack.c.0.s8 %v1199
          %v1201 = vperm.slane %v1193, %v1200
          %v1202 = vrot.slane %v1197, 4
          %v1203 = vsel %vm1100, %v1202, %v1185
          %v1204 = vrot.slane %v1185, 4
          %v1205 = vsel %vm1100, %v1197, %v1204
          %v1206 = vrot.slane %v1201, 4
          %v1207 = vsel %vm1100, %v1206, %v1189
          %v1208 = vrot.slane %v1189, 4
          %v1209 = vsel %vm1100, %v1201, %v1208
          %v1210 = vpack.c.bf16 %v1203, %v1203
          %v1211 = vpack.c.bf16 %v1205, %v1205
          %v1212 = vpack.c.bf16 %v1207, %v1207
          %v1213 = vpack.c.bf16 %v1209, %v1209
          %vm1214 = vcmask 60416
          %1215 = vst.msk [vmem:[#allocation2] sm:$0xf] %vm1214, %v1210
          %1216 = vst.msk [vmem:[#allocation2 + $0x4] sm:$0xf] %vm1214, %v1211
          %1217 = vst.msk [vmem:[#allocation2 + $0x8] sm:$0xf] %vm1214, %v1212
          %1218 = vst.msk [vmem:[#allocation2 + $0xc] sm:$0xf] %vm1214, %v1213
          %1220 = vrot.lane.b32.xlu0 %v1086, 120
          %v1221 = vpop.permute.xlu0 %1220
          %1223 = vrot.lane.b32.xlu0 %v1086, 112
          %v1224 = vpop.permute.xlu0 %1223
          %1226 = vrot.lane.b32.xlu0 %v1086, 104
          %v1227 = vpop.permute.xlu0 %1226
          %v1229 = vrot.slane %v1224, 4
          %v1230 = vsel %vm1100, %v1229, %v1086
          %v1231 = vrot.slane %v1086, 4
          %v1232 = vsel %vm1100, %v1224, %v1231
          %v1234 = vunpack.c.l.s4 1983009808
          %v1235 = vunpack.c.0.s8 %v1234
          %v1236 = vperm.slane %v1230, %v1235
          %v1238 = vunpack.c.l.s4 1983009808
          %v1239 = vunpack.c.0.s8 %v1238
          %v1240 = vperm.slane %v1232, %v1239
          %v1241 = vrot.slane %v1227, 4
          %v1242 = vsel %vm1100, %v1241, %v1221
          %v1243 = vrot.slane %v1221, 4
          %v1244 = vsel %vm1100, %v1227, %v1243
          %v1246 = vunpack.c.l.s4 1983009808
          %v1247 = vunpack.c.0.s8 %v1246
          %v1248 = vperm.slane %v1242, %v1247
          %v1250 = vunpack.c.l.s4 1983009808
          %v1251 = vunpack.c.0.s8 %v1250
          %v1252 = vperm.slane %v1244, %v1251
          %v1253 = vrot.slane %v1248, 4
          %v1254 = vsel %vm1100, %v1253, %v1236
          %v1255 = vrot.slane %v1236, 4
          %v1256 = vsel %vm1100, %v1248, %v1255
          %v1258 = vunpack.c.l.s4 1934713408
          %v1259 = vunpack.c.0.s8 %v1258
          %v1260 = vperm.slane %v1254, %v1259
          %v1262 = vunpack.c.l.s4 1934713408
          %v1263 = vunpack.c.0.s8 %v1262
          %v1264 = vperm.slane %v1256, %v1263
          %v1265 = vrot.slane %v1252, 4
          %v1266 = vsel %vm1100, %v1265, %v1240
          %v1267 = vrot.slane %v1240, 4
          %v1268 = vsel %vm1100, %v1252, %v1267
          %v1270 = vunpack.c.l.s4 1934713408
          %v1271 = vunpack.c.0.s8 %v1270
          %v1272 = vperm.slane %v1266, %v1271
          %v1274 = vunpack.c.l.s4 1934713408
          %v1275 = vunpack.c.0.s8 %v1274
          %v1276 = vperm.slane %v1268, %v1275
          %v1277 = vrot.slane %v1260, 4
          %v1278 = vsel %vm1100, 0.0, %v1277
          %v1279 = vrot.slane %v1264, 4
          %v1280 = vsel %vm1100, 0.0, %v1279
          %v1281 = vrot.slane %v1272, 4
          %v1282 = vsel %vm1100, 0.0, %v1281
          %v1283 = vrot.slane %v1276, 4
          %v1284 = vsel %vm1100, 0.0, %v1283
          %v1285 = vsel %vm1100, %v1279, %v1260
          %v1287 = vunpack.c.l.s4 1983009808
          %v1288 = vunpack.c.0.s8 %v1287
          %v1289 = vperm.slane %v1285, %v1288
          %v1290 = vrot.slane %v1280, 4
          %v1291 = vsel %vm1100, %v1290, %v1278
          %v1293 = vunpack.c.l.s4 1983009808
          %v1294 = vunpack.c.0.s8 %v1293
          %v1295 = vperm.slane %v1291, %v1294
          %v1296 = vsel %vm1100, %v1283, %v1272
          %v1298 = vunpack.c.l.s4 1983009808
          %v1299 = vunpack.c.0.s8 %v1298
          %v1300 = vperm.slane %v1296, %v1299
          %v1301 = vrot.slane %v1284, 4
          %v1302 = vsel %vm1100, %v1301, %v1282
          %v1304 = vunpack.c.l.s4 1983009808
          %v1305 = vunpack.c.0.s8 %v1304
          %v1306 = vperm.slane %v1302, %v1305
          %v1307 = vrot.slane %v1295, 4
          %v1308 = vsel %vm1100, %v1307, %v1289
          %v1309 = vrot.slane %v1289, 4
          %v1310 = vsel %vm1100, %v1295, %v1309
          %v1312 = vunpack.c.l.s4 1934713408
          %v1313 = vunpack.c.0.s8 %v1312
          %v1314 = vperm.slane %v1308, %v1313
          %v1316 = vunpack.c.l.s4 1934713408
          %v1317 = vunpack.c.0.s8 %v1316
          %v1318 = vperm.slane %v1310, %v1317
          %v1319 = vrot.slane %v1306, 4
          %v1320 = vsel %vm1100, %v1319, %v1300
          %v1321 = vrot.slane %v1300, 4
          %v1322 = vsel %vm1100, %v1306, %v1321
          %v1324 = vunpack.c.l.s4 1934713408
          %v1325 = vunpack.c.0.s8 %v1324
          %v1326 = vperm.slane %v1320, %v1325
          %v1328 = vunpack.c.l.s4 1934713408
          %v1329 = vunpack.c.0.s8 %v1328
          %v1330 = vperm.slane %v1322, %v1329
          %v1331 = vrot.slane %v1326, 4
          %v1332 = vsel %vm1100, %v1331, %v1314
          %v1333 = vrot.slane %v1314, 4
          %v1334 = vsel %vm1100, %v1326, %v1333
          %v1335 = vrot.slane %v1330, 4
          %v1336 = vsel %vm1100, %v1335, %v1318
          %v1337 = vrot.slane %v1318, 4
          %v1338 = vsel %vm1100, %v1330, %v1337
          %v1339 = vpack.c.bf16 %v1332, %v1332
          %v1340 = vpack.c.bf16 %v1334, %v1334
          %v1341 = vpack.c.bf16 %v1336, %v1336
          %v1342 = vpack.c.bf16 %v1338, %v1338
          %1343 = vst.msk [vmem:[#allocation3] sm:$0xf] %vm1214, %v1339
          %1344 = vst.msk [vmem:[#allocation3 + $0x4] sm:$0xf] %vm1214, %v1340
          %1345 = vst.msk [vmem:[#allocation3 + $0x8] sm:$0xf] %vm1214, %v1341
          %1346 = vst.msk [vmem:[#allocation3 + $0xc] sm:$0xf] %vm1214, %v1342
        $region120: #{tpu_custom_call.1} parent=95 // pred_fallthru
          _
        %v1347 = vld [vmem:[%s959] sm:$0xff]
        %v1348 = vpack.c.bf16 %v1347, %v1347
        %v1349 = vld [vmem:[%s964] sm:$0xf]
        %v1350 = vld [vmem:[%s964 + $0x4] sm:$0xf]
        %v1351 = vld [vmem:[%s964 + $0x8] sm:$0xf]
        %v1352 = vld [vmem:[%s964 + $0xc] sm:$0xf]
        %v1353 = vld [vmem:[%s977] sm:$0x1]
        %v1355 = vperm.slane %v1353, 0
        %v1361 = vunpack.c.l.b16 %v1349
        %v1362 = vunpack.c.l.b16 %v1350
        %v1363 = vunpack.c.l.b16 %v1351
        %v1364 = vunpack.c.l.b16 %v1352
        %v1365 = vpack.c.b16 %v1362, %v1361
        %v1366 = vpack.c.b16 %v1364, %v1363
        %vm1369 = vcmask 261120
        %v1371 = vsel %vm1369, %v1348, 0
        %1373 = vmatpush.bf16.msra.mxu0 0
        %1374 = vmatpush.bf16.msra.mxu0 0
        %1375 = vmatpush.bf16.msra.mxu0 0
        %1376 = vmatpush.bf16.msra.mxu0 0
        %1377 = vmatpush.bf16.msra.mxu0 0
        %1378 = vmatpush.bf16.msra.mxu0 0
        %1379 = vmatpush.bf16.msra.mxu0 %v1366
        %1380 = vmatpush.bf16.msra.mxu0 %v1365
        %1381 = vmatmul.bf16.gmra.mxu0 %v1371
        %v1382 = vpop.f32.mrf.mxu0
        %v1383 = vadd.f32 %v1355, %v1382
        %v1384 = vpop.f32.mrf.mxu0
        %1385 = vdwg.mxu0
        %v1386 = vpack.c.bf16 %v1383, %v1383
        %1388 = vrot.lane.b32.xlu0 %v1386, 120
        %v1389 = vpop.permute.xlu0 %1388
        %1390 = vrot.lane.b32.xlu0 %v1386, 112
        %v1391 = vpop.permute.xlu0 %1390
        %1392 = vrot.lane.b32.xlu0 %v1386, 104
        %v1393 = vpop.permute.xlu0 %1392
        %v1396 = vpack.i.b16 %v1389, %v1386
        %v1397 = vshrl.u32 %v1386, 16
        %v1398 = vshrl.u32 %v1389, 16
        %v1399 = vpack.i.b16 %v1398, %v1397
        %v1402 = vpack.i.b16 %v1393, %v1391
        %v1403 = vshrl.u32 %v1391, 16
        %v1404 = vshrl.u32 %v1393, 16
        %v1405 = vpack.i.b16 %v1404, %v1403
        %v1408 = vunpack.c.l.s4 1983009808
        %v1409 = vunpack.c.0.s8 %v1408
        %v1410 = vperm.slane %v1396, %v1409
        %v1413 = vunpack.c.l.s4 1983009808
        %v1414 = vunpack.c.0.s8 %v1413
        %v1415 = vperm.slane %v1402, %v1414
        %v1416 = vrot.slane %v1415, 4
        %vm1417 = vcmask 1047556
        %v1418 = vsel %vm1417, %v1416, %v1410
        %v1419 = vrot.slane %v1410, 4
        %v1420 = vsel %vm1417, %v1415, %v1419
        %v1422 = vunpack.c.l.s4 1934713408
        %v1423 = vunpack.c.0.s8 %v1422
        %v1424 = vperm.slane %v1418, %v1423
        %v1426 = vunpack.c.l.s4 1934713408
        %v1427 = vunpack.c.0.s8 %v1426
        %v1428 = vperm.slane %v1420, %v1427
        %v1429 = vrot.slane %v1424, 4
        %v1430 = vsel %vm1417, 0, %v1429
        %v1431 = vrot.slane %v1428, 4
        %v1432 = vsel %vm1417, 0, %v1431
        %v1435 = vunpack.c.l.s4 1983009808
        %v1436 = vunpack.c.0.s8 %v1435
        %v1437 = vperm.slane %v1399, %v1436
        %v1440 = vunpack.c.l.s4 1983009808
        %v1441 = vunpack.c.0.s8 %v1440
        %v1442 = vperm.slane %v1405, %v1441
        %v1443 = vrot.slane %v1442, 4
        %v1444 = vsel %vm1417, %v1443, %v1437
        %v1445 = vrot.slane %v1437, 4
        %v1446 = vsel %vm1417, %v1442, %v1445
        %v1448 = vunpack.c.l.s4 1934713408
        %v1449 = vunpack.c.0.s8 %v1448
        %v1450 = vperm.slane %v1444, %v1449
        %v1452 = vunpack.c.l.s4 1934713408
        %v1453 = vunpack.c.0.s8 %v1452
        %v1454 = vperm.slane %v1446, %v1453
        %v1455 = vrot.slane %v1450, 4
        %v1456 = vsel %vm1417, 0, %v1455
        %v1457 = vrot.slane %v1454, 4
        %v1458 = vsel %vm1417, 0, %v1457
        %v1459 = vsel %vm1417, %v1431, %v1424
        %v1461 = vunpack.c.l.s4 1983009808
        %v1462 = vunpack.c.0.s8 %v1461
        %v1463 = vperm.slane %v1459, %v1462
        %v1464 = vrot.slane %v1432, 4
        %v1465 = vsel %vm1417, %v1464, %v1430
        %v1467 = vunpack.c.l.s4 1983009808
        %v1468 = vunpack.c.0.s8 %v1467
        %v1469 = vperm.slane %v1465, %v1468
        %v1470 = vrot.slane %v1469, 4
        %v1471 = vsel %vm1417, %v1470, %v1463
        %v1473 = vunpack.c.l.s4 1934713408
        %v1474 = vunpack.c.0.s8 %v1473
        %v1475 = vperm.slane %v1471, %v1474
        %v1476 = vrot.slane %v1475, 4
        %v1477 = vsel %vm1417, 0, %v1476
        %v1478 = vsel %vm1417, %v1457, %v1450
        %v1480 = vunpack.c.l.s4 1983009808
        %v1481 = vunpack.c.0.s8 %v1480
        %v1482 = vperm.slane %v1478, %v1481
        %v1483 = vrot.slane %v1458, 4
        %v1484 = vsel %vm1417, %v1483, %v1456
        %v1486 = vunpack.c.l.s4 1983009808
        %v1487 = vunpack.c.0.s8 %v1486
        %v1488 = vperm.slane %v1484, %v1487
        %v1489 = vrot.slane %v1488, 4
        %v1490 = vsel %vm1417, %v1489, %v1482
        %v1492 = vunpack.c.l.s4 1934713408
        %v1493 = vunpack.c.0.s8 %v1492
        %v1494 = vperm.slane %v1490, %v1493
        %v1495 = vrot.slane %v1494, 4
        %v1496 = vsel %vm1417, 0, %v1495
        %v1499 = vpack.i.b16 %v1494, %v1475
        %v1500 = vshrl.u32 %v1475, 16
        %v1501 = vshrl.u32 %v1494, 16
        %v1502 = vpack.i.b16 %v1501, %v1500
        %v1505 = vpack.i.b16 %v1496, %v1477
        %v1506 = vshrl.u32 %v1477, 16
        %v1507 = vshrl.u32 %v1496, 16
        %v1508 = vpack.i.b16 %v1507, %v1506
        %v1509 = vld [vmem:[#allocation2] sm:$0xf]
        %v1510 = vld [vmem:[#allocation2 + $0x4] sm:$0xf]
        %v1511 = vld [vmem:[#allocation2 + $0x8] sm:$0xf]
        %v1512 = vld [vmem:[#allocation2 + $0xc] sm:$0xf]
        %vm1513 = vcmask 64512
        %v1515 = vsel %vm1513, %v1499, 0
        %v1518 = vsel %vm1513, %v1509, 0
        %1520 = vmatpush.bf16.xpose.msra.mxu0 0
        %1521 = vmatpush.bf16.xpose.msra.mxu0 0
        %1522 = vmatpush.bf16.xpose.msra.mxu0 0
        %1523 = vmatpush.bf16.xpose.msra.mxu0 0
        %1524 = vmatpush.bf16.xpose.msra.mxu0 0
        %1525 = vmatpush.bf16.xpose.msra.mxu0 0
        %1526 = vmatpush.bf16.xpose.msra.mxu0 0
        %1527 = vmatpush.bf16.xpose.msra.mxu0 %v1518
        %1528 = vmatmul.bf16.gmra.mxu0 %v1515
        %v1529 = vpop.f32.mrf.mxu0
        %v1530 = vadd.f32 0.0, %v1529
        %v1531 = vpop.f32.mrf.mxu0
        %1532 = vdwg.mxu0
        %v1534 = vsel %vm1513, %v1502, 0
        %v1537 = vsel %vm1513, %v1510, 0
        %1539 = vmatpush.bf16.xpose.msra.mxu0 0
        %1540 = vmatpush.bf16.xpose.msra.mxu0 0
        %1541 = vmatpush.bf16.xpose.msra.mxu0 0
        %1542 = vmatpush.bf16.xpose.msra.mxu0 0
        %1543 = vmatpush.bf16.xpose.msra.mxu0 0
        %1544 = vmatpush.bf16.xpose.msra.mxu0 0
        %1545 = vmatpush.bf16.xpose.msra.mxu0 0
        %1546 = vmatpush.bf16.xpose.msra.mxu0 %v1537
        %1547 = vmatmul.bf16.gmra.mxu0 %v1534
        %v1548 = vpop.f32.mrf.mxu0
        %v1549 = vadd.f32 0.0, %v1548
        %v1550 = vpop.f32.mrf.mxu0
        %1551 = vdwg.mxu0
        %v1553 = vsel %vm1513, %v1505, 0
        %v1556 = vsel %vm1513, %v1511, 0
        %1558 = vmatpush.bf16.xpose.msra.mxu0 0
        %1559 = vmatpush.bf16.xpose.msra.mxu0 0
        %1560 = vmatpush.bf16.xpose.msra.mxu0 0
        %1561 = vmatpush.bf16.xpose.msra.mxu0 0
        %1562 = vmatpush.bf16.xpose.msra.mxu0 0
        %1563 = vmatpush.bf16.xpose.msra.mxu0 0
        %1564 = vmatpush.bf16.xpose.msra.mxu0 0
        %1565 = vmatpush.bf16.xpose.msra.mxu0 %v1556
        %1566 = vmatmul.bf16.gmra.mxu0 %v1553
        %v1567 = vpop.f32.mrf.mxu0
        %v1568 = vadd.f32 0.0, %v1567
        %v1569 = vpop.f32.mrf.mxu0
        %1570 = vdwg.mxu0
        %v1572 = vsel %vm1513, %v1508, 0
        %v1575 = vsel %vm1513, %v1512, 0
        %1577 = vmatpush.bf16.xpose.msra.mxu0 0
        %1578 = vmatpush.bf16.xpose.msra.mxu0 0
        %1579 = vmatpush.bf16.xpose.msra.mxu0 0
        %1580 = vmatpush.bf16.xpose.msra.mxu0 0
        %1581 = vmatpush.bf16.xpose.msra.mxu0 0
        %1582 = vmatpush.bf16.xpose.msra.mxu0 0
        %1583 = vmatpush.bf16.xpose.msra.mxu0 0
        %1584 = vmatpush.bf16.xpose.msra.mxu0 %v1575
        %1585 = vmatmul.bf16.gmra.mxu0 %v1572
        %v1586 = vpop.f32.mrf.mxu0
        %v1587 = vadd.f32 0.0, %v1586
        %v1588 = vpop.f32.mrf.mxu0
        %1589 = vdwg.mxu0
        %v1590 = vsel %vm1513, %v1530, -inf
        %1591 = vmax.xlane.f32.xlu0 %v1590
        %v1592 = vpop.xlane.xlu0 %1591
        %v1593 = vsel %vm1513, %v1549, -inf
        %1594 = vmax.xlane.f32.xlu0 %v1593
        %v1595 = vpop.xlane.xlu0 %1594
        %v1596 = vsel %vm1513, %v1568, -inf
        %1597 = vmax.xlane.f32.xlu0 %v1596
        %v1598 = vpop.xlane.xlu0 %1597
        %v1599 = vsel %vm1513, %v1587, -inf
        %1600 = vmax.xlane.f32.xlu0 %v1599
        %v1601 = vpop.xlane.xlu0 %1600
        %v1602 = vsub.f32 %v1530, %v1592
        %v1603 = vsub.f32 %v1549, %v1595
        %v1604 = vsub.f32 %v1568, %v1598
        %v1605 = vsub.f32 %v1587, %v1601
        %v1606 = vmul.f32 %v1602, 1.442695
        %v1607 = vpow.pop %v1606
        %v1608 = vmul.f32 %v1603, 1.442695
        %v1609 = vpow.pop %v1608
        %v1610 = vmul.f32 %v1604, 1.442695
        %v1611 = vpow.pop %v1610
        %v1612 = vmul.f32 %v1605, 1.442695
        %v1613 = vpow.pop %v1612
        %v1614 = vsel %vm1513, %v1607, 0.0
        %1615 = vadd.xlane.f32.xlu0 %v1614
        %v1616 = vpop.xlane.xlu0 %1615
        %v1617 = vsel %vm1513, %v1609, 0.0
        %1618 = vadd.xlane.f32.xlu0 %v1617
        %v1619 = vpop.xlane.xlu0 %1618
        %v1620 = vsel %vm1513, %v1611, 0.0
        %1621 = vadd.xlane.f32.xlu0 %v1620
        %v1622 = vpop.xlane.xlu0 %1621
        %v1623 = vsel %vm1513, %v1613, 0.0
        %1624 = vadd.xlane.f32.xlu0 %v1623
        %v1625 = vpop.xlane.xlu0 %1624
        %v1626 = vrcp.pop %v1616
        %v1627 = vrcp.pop %v1619
        %v1628 = vrcp.pop %v1622
        %v1629 = vrcp.pop %v1625
        %v1630 = vmul.f32 %v1607, %v1626
        %v1631 = vmul.f32 %v1609, %v1627
        %v1632 = vmul.f32 %v1611, %v1628
        %v1633 = vmul.f32 %v1613, %v1629
        %v1634 = vpack.c.bf16 %v1630, %v1630
        %v1635 = vpack.c.bf16 %v1631, %v1631
        %v1636 = vpack.c.bf16 %v1632, %v1632
        %v1637 = vpack.c.bf16 %v1633, %v1633
        %v1638 = vld [vmem:[#allocation3] sm:$0xf]
        %v1639 = vld [vmem:[#allocation3 + $0x4] sm:$0xf]
        %v1640 = vld [vmem:[#allocation3 + $0x8] sm:$0xf]
        %v1641 = vld [vmem:[#allocation3 + $0xc] sm:$0xf]
        %v1643 = vsel %vm1513, %v1634, 0
        %vm1645 = vcmask 1043456
        %v1647 = vsel %vm1645, %v1638, 0
        %1649 = vmatpush.bf16.msra.mxu0 0
        %1650 = vmatpush.bf16.msra.mxu0 0
        %1651 = vmatpush.bf16.msra.mxu0 0
        %1652 = vmatpush.bf16.msra.mxu0 0
        %1653 = vmatpush.bf16.msra.mxu0 0
        %1654 = vmatpush.bf16.msra.mxu0 0
        %1655 = vmatpush.bf16.msra.mxu0 0
        %1656 = vmatpush.bf16.msra.mxu0 %v1647
        %1657 = vmatmul.bf16.gmra.mxu0 %v1643
        %v1658 = vpop.f32.mrf.mxu0
        %v1659 = vadd.f32 0.0, %v1658
        %v1660 = vpop.f32.mrf.mxu0
        %1661 = vdwg.mxu0
        %v1663 = vsel %vm1513, %v1635, 0
        %v1666 = vsel %vm1645, %v1639, 0
        %1668 = vmatpush.bf16.msra.mxu0 0
        %1669 = vmatpush.bf16.msra.mxu0 0
        %1670 = vmatpush.bf16.msra.mxu0 0
        %1671 = vmatpush.bf16.msra.mxu0 0
        %1672 = vmatpush.bf16.msra.mxu0 0
        %1673 = vmatpush.bf16.msra.mxu0 0
        %1674 = vmatpush.bf16.msra.mxu0 0
        %1675 = vmatpush.bf16.msra.mxu0 %v1666
        %1676 = vmatmul.bf16.gmra.mxu0 %v1663
        %v1677 = vpop.f32.mrf.mxu0
        %v1678 = vadd.f32 0.0, %v1677
        %v1679 = vpop.f32.mrf.mxu0
        %1680 = vdwg.mxu0
        %v1682 = vsel %vm1513, %v1636, 0
        %v1685 = vsel %vm1645, %v1640, 0
        %1687 = vmatpush.bf16.msra.mxu0 0
        %1688 = vmatpush.bf16.msra.mxu0 0
        %1689 = vmatpush.bf16.msra.mxu0 0
        %1690 = vmatpush.bf16.msra.mxu0 0
        %1691 = vmatpush.bf16.msra.mxu0 0
        %1692 = vmatpush.bf16.msra.mxu0 0
        %1693 = vmatpush.bf16.msra.mxu0 0
        %1694 = vmatpush.bf16.msra.mxu0 %v1685
        %1695 = vmatmul.bf16.gmra.mxu0 %v1682
        %v1696 = vpop.f32.mrf.mxu0
        %v1697 = vadd.f32 0.0, %v1696
        %v1698 = vpop.f32.mrf.mxu0
        %1699 = vdwg.mxu0
        %v1701 = vsel %vm1513, %v1637, 0
        %v1704 = vsel %vm1645, %v1641, 0
        %1706 = vmatpush.bf16.msra.mxu0 0
        %1707 = vmatpush.bf16.msra.mxu0 0
        %1708 = vmatpush.bf16.msra.mxu0 0
        %1709 = vmatpush.bf16.msra.mxu0 0
        %1710 = vmatpush.bf16.msra.mxu0 0
        %1711 = vmatpush.bf16.msra.mxu0 0
        %1712 = vmatpush.bf16.msra.mxu0 0
        %1713 = vmatpush.bf16.msra.mxu0 %v1704
        %1714 = vmatmul.bf16.gmra.mxu0 %v1701
        %v1715 = vpop.f32.mrf.mxu0
        %v1716 = vadd.f32 0.0, %v1715
        %v1717 = vpop.f32.mrf.mxu0
        %1718 = vdwg.mxu0
        %v1719 = vrot.slane %v1697, 4
        %vm1720 = vcmask 1047556
        %v1721 = vsel %vm1720, %v1719, %v1659
        %v1722 = vrot.slane %v1659, 4
        %v1723 = vsel %vm1720, %v1697, %v1722
        %v1725 = vunpack.c.l.s4 1983009808
        %v1726 = vunpack.c.0.s8 %v1725
        %v1727 = vperm.slane %v1721, %v1726
        %v1729 = vunpack.c.l.s4 1983009808
        %v1730 = vunpack.c.0.s8 %v1729
        %v1731 = vperm.slane %v1723, %v1730
        %v1732 = vrot.slane %v1716, 4
        %v1733 = vsel %vm1720, %v1732, %v1678
        %v1734 = vrot.slane %v1678, 4
        %v1735 = vsel %vm1720, %v1716, %v1734
        %v1737 = vunpack.c.l.s4 1983009808
        %v1738 = vunpack.c.0.s8 %v1737
        %v1739 = vperm.slane %v1733, %v1738
        %v1741 = vunpack.c.l.s4 1983009808
        %v1742 = vunpack.c.0.s8 %v1741
        %v1743 = vperm.slane %v1735, %v1742
        %v1744 = vrot.slane %v1739, 4
        %v1745 = vsel %vm1720, %v1744, %v1727
        %v1746 = vrot.slane %v1727, 4
        %v1747 = vsel %vm1720, %v1739, %v1746
        %v1749 = vunpack.c.l.s4 1934713408
        %v1750 = vunpack.c.0.s8 %v1749
        %v1751 = vperm.slane %v1745, %v1750
        %v1753 = vunpack.c.l.s4 1934713408
        %v1754 = vunpack.c.0.s8 %v1753
        %v1755 = vperm.slane %v1747, %v1754
        %v1756 = vrot.slane %v1743, 4
        %v1757 = vsel %vm1720, %v1756, %v1731
        %v1758 = vrot.slane %v1731, 4
        %v1759 = vsel %vm1720, %v1743, %v1758
        %v1761 = vunpack.c.l.s4 1934713408
        %v1762 = vunpack.c.0.s8 %v1761
        %v1763 = vperm.slane %v1757, %v1762
        %v1765 = vunpack.c.l.s4 1934713408
        %v1766 = vunpack.c.0.s8 %v1765
        %v1767 = vperm.slane %v1759, %v1766
        %v1768 = vrot.slane %v1751, 4
        %v1769 = vsel %vm1720, 0.0, %v1768
        %v1770 = vrot.slane %v1755, 4
        %v1771 = vsel %vm1720, 0.0, %v1770
        %v1772 = vrot.slane %v1763, 4
        %v1773 = vsel %vm1720, 0.0, %v1772
        %v1774 = vrot.slane %v1767, 4
        %v1775 = vsel %vm1720, 0.0, %v1774
        %v1776 = vsel %vm1720, %v1770, %v1751
        %v1778 = vunpack.c.l.s4 1983009808
        %v1779 = vunpack.c.0.s8 %v1778
        %v1780 = vperm.slane %v1776, %v1779
        %v1781 = vrot.slane %v1771, 4
        %v1782 = vsel %vm1720, %v1781, %v1769
        %v1784 = vunpack.c.l.s4 1983009808
        %v1785 = vunpack.c.0.s8 %v1784
        %v1786 = vperm.slane %v1782, %v1785
        %v1787 = vsel %vm1720, %v1774, %v1763
        %v1789 = vunpack.c.l.s4 1983009808
        %v1790 = vunpack.c.0.s8 %v1789
        %v1791 = vperm.slane %v1787, %v1790
        %v1792 = vrot.slane %v1775, 4
        %v1793 = vsel %vm1720, %v1792, %v1773
        %v1795 = vunpack.c.l.s4 1983009808
        %v1796 = vunpack.c.0.s8 %v1795
        %v1797 = vperm.slane %v1793, %v1796
        %v1798 = vrot.slane %v1786, 4
        %v1799 = vsel %vm1720, %v1798, %v1780
        %v1800 = vrot.slane %v1780, 4
        %v1801 = vsel %vm1720, %v1786, %v1800
        %v1803 = vunpack.c.l.s4 1934713408
        %v1804 = vunpack.c.0.s8 %v1803
        %v1805 = vperm.slane %v1799, %v1804
        %v1807 = vunpack.c.l.s4 1934713408
        %v1808 = vunpack.c.0.s8 %v1807
        %v1809 = vperm.slane %v1801, %v1808
        %v1810 = vrot.slane %v1797, 4
        %v1811 = vsel %vm1720, %v1810, %v1791
        %v1812 = vrot.slane %v1791, 4
        %v1813 = vsel %vm1720, %v1797, %v1812
        %v1815 = vunpack.c.l.s4 1934713408
        %v1816 = vunpack.c.0.s8 %v1815
        %v1817 = vperm.slane %v1811, %v1816
        %v1819 = vunpack.c.l.s4 1934713408
        %v1820 = vunpack.c.0.s8 %v1819
        %v1821 = vperm.slane %v1813, %v1820
        %v1822 = vrot.slane %v1817, 4
        %v1823 = vsel %vm1720, %v1822, %v1805
        %v1824 = vrot.slane %v1805, 4
        %v1825 = vsel %vm1720, %v1817, %v1824
        %v1826 = vrot.slane %v1821, 4
        %v1827 = vsel %vm1720, %v1826, %v1809
        %v1828 = vrot.slane %v1809, 4
        %v1829 = vsel %vm1720, %v1821, %v1828
        %1831 = vrot.lane.b32.xlu0 %v1825, 8
        %v1832 = vpop.permute.xlu0 %1831
        %1835 = vrot.lane.b32.xlu0 %v1827, 16
        %v1836 = vpop.permute.xlu0 %1835
        %1839 = vrot.lane.b32.xlu0 %v1829, 24
        %v1840 = vpop.permute.xlu0 %1839
        %v1842 = vsel %vm1513, %v1823, %v1832
        %vm1843 = vcmask 130048
        %v1844 = vsel %vm1843, %v1842, %v1836
        %vm1845 = vcmask 195584
        %v1846 = vsel %vm1845, %v1844, %v1840
        %v1847 = vpack.c.bf16 %v1846, %v1846
        %v1848 = vld [vmem:[%s988] sm:$0xf]
        %v1849 = vld [vmem:[%s988 + $0x4] sm:$0xf]
        %v1850 = vld [vmem:[%s988 + $0x8] sm:$0xf]
        %v1851 = vld [vmem:[%s988 + $0xc] sm:$0xf]
        %v1852 = vld [vmem:[%s991] sm:$0x1]
        %v1854 = vperm.slane %v1852, 0
        %v1860 = vunpack.c.l.b16 %v1848
        %v1861 = vunpack.c.l.b16 %v1849
        %v1862 = vunpack.c.l.b16 %v1850
        %v1863 = vunpack.c.l.b16 %v1851
        %v1864 = vpack.c.b16 %v1861, %v1860
        %v1865 = vpack.c.b16 %v1863, %v1862
        %v1869 = vsel %vm1369, %v1847, 0
        %1871 = vmatpush.bf16.msra.mxu0 0
        %1872 = vmatpush.bf16.msra.mxu0 0
        %1873 = vmatpush.bf16.msra.mxu0 0
        %1874 = vmatpush.bf16.msra.mxu0 0
        %1875 = vmatpush.bf16.msra.mxu0 0
        %1876 = vmatpush.bf16.msra.mxu0 0
        %1877 = vmatpush.bf16.msra.mxu0 %v1865
        %1878 = vmatpush.bf16.msra.mxu0 %v1864
        %1879 = vmatmul.bf16.gmra.mxu0 %v1869
        %v1880 = vpop.f32.mrf.mxu0
        %v1881 = vadd.f32 %v1854, %v1880
        %v1882 = vpop.f32.mrf.mxu0
        %1883 = vdwg.mxu0
        %v1884 = vadd.f32 %v1881, %v1347
        %v1885 = vld [vmem:[#allocation9] sm:$0x1]
        %v1886 = vld [vmem:[%s994] sm:$0x1]
        %v1887 = vsel %vm1369, %v1884, 0.0
        %1888 = vadd.xlane.f32.xlu0 %v1887
        %v1889 = vpop.xlane.xlu0 %1888
        %v1890 = vrcp.pop 32.0
        %v1891 = vmul.f32 32.0, %v1890
        %v1892 = vsub.f32 1.0, %v1891
        %v1893 = vmul.f32 %v1890, %v1892
        %v1894 = vadd.f32 %v1890, %v1893
        %vm1895 = vweird.f32 %v1890
        %v1896 = vsel %vm1895, %v1890, %v1894
        %v1897 = vmul.f32 %v1889, %v1896
        %v1898 = vsub.f32 %v1884, %v1897
        %v1899 = vmul.f32 %v1898, %v1898
        %v1900 = vsel %vm1369, %v1899, 0.0
        %1901 = vadd.xlane.f32.xlu0 %v1900
        %v1902 = vpop.xlane.xlu0 %1901
        %v1903 = vmul.f32 %v1902, %v1896
        %v1904 = vadd.f32 %v1903, 1e-05
        %v1905 = vrsqrt.pop %v1904
        %v1906 = vmul.f32 %v1905, %v1904
        %v1907 = vmul.f32 %v1906, %v1905
        %v1908 = vmul.f32 0.5, %v1907
        %v1909 = vsub.f32 1.5, %v1908
        %v1910 = vmul.f32 %v1905, %v1909
        %vm1911 = vweird.f32 %v1904
        %vm1912 = vweird.f32 %v1905
        %vm1913 = vmor %vm1911, %vm1912
        %v1914 = vsel %vm1913, %v1905, %v1910
        %v1915 = vmul.f32 %v1898, %v1914
        %v1917 = vperm.slane %v1885, 0
        %v1919 = vmul.f32 %v1915, %v1917
        %v1921 = vperm.slane %v1886, 0
        %v1923 = vadd.f32 %v1919, %v1921
        %v1924 = vpack.c.bf16 %v1923, %v1923
        %v1925 = vld [vmem:[#allocation10] sm:$0xf]
        %v1926 = vld [vmem:[#allocation10 + $0x4] sm:$0xf]
        %v1927 = vld [vmem:[#allocation10 + $0x8] sm:$0xf]
        %v1928 = vld [vmem:[#allocation10 + $0xc] sm:$0xf]
        %v1929 = vld [vmem:[%s997] sm:$0x1]
        %v1931 = vperm.slane %v1929, 0
        %v1937 = vunpack.c.l.b16 %v1925
        %v1938 = vunpack.c.l.b16 %v1926
        %v1939 = vunpack.c.l.b16 %v1927
        %v1940 = vunpack.c.l.b16 %v1928
        %v1941 = vpack.c.b16 %v1938, %v1937
        %v1942 = vpack.c.b16 %v1940, %v1939
        %v1946 = vsel %vm1369, %v1924, 0
        %1948 = vmatpush.bf16.msra.mxu0 0
        %1949 = vmatpush.bf16.msra.mxu0 0
        %1950 = vmatpush.bf16.msra.mxu0 0
        %1951 = vmatpush.bf16.msra.mxu0 0
        %1952 = vmatpush.bf16.msra.mxu0 0
        %1953 = vmatpush.bf16.msra.mxu0 0
        %1954 = vmatpush.bf16.msra.mxu0 %v1942
        %1955 = vmatpush.bf16.msra.mxu0 %v1941
        %1956 = vmatmul.bf16.gmra.mxu0 %v1946
        %v1957 = vpop.f32.mrf.mxu0
        %v1958 = vadd.f32 %v1931, %v1957
        %v1959 = vpop.f32.mrf.mxu0
        %1960 = vdwg.mxu0
        %v1961 = vmax.f32 %v1958, 0.0
        %v1962 = vpack.c.bf16 %v1961, %v1961
        %v1963 = vld [vmem:[%s1002] sm:$0xf]
        %v1964 = vld [vmem:[%s1002 + $0x4] sm:$0xf]
        %v1965 = vld [vmem:[%s1002 + $0x8] sm:$0xf]
        %v1966 = vld [vmem:[%s1002 + $0xc] sm:$0xf]
        %v1967 = vld [vmem:[%s1002 + $0x10] sm:$0xf]
        %v1968 = vld [vmem:[%s1002 + $0x14] sm:$0xf]
        %v1969 = vld [vmem:[%s1002 + $0x18] sm:$0xf]
        %v1970 = vld [vmem:[%s1002 + $0x1c] sm:$0xf]
        %v1971 = vld [vmem:[%s1002 + $0x20] sm:$0xf]
        %v1972 = vld [vmem:[%s1002 + $0x24] sm:$0xf]
        %v1973 = vld [vmem:[%s1002 + $0x28] sm:$0xf]
        %v1974 = vld [vmem:[%s1002 + $0x2c] sm:$0xf]
        %v1975 = vld [vmem:[%s1002 + $0x30] sm:$0xf]
        %v1976 = vld [vmem:[%s1002 + $0x34] sm:$0xf]
        %v1977 = vld [vmem:[%s1002 + $0x38] sm:$0xf]
        %v1978 = vld [vmem:[%s1002 + $0x3c] sm:$0xf]
        %v1979 = vld [vmem:[%s1005] sm:$0x1]
        %v1981 = vperm.slane %v1979, 0
        %v1999 = vunpack.c.l.b16 %v1963
        %v2000 = vunpack.c.l.b16 %v1964
        %v2001 = vunpack.c.l.b16 %v1965
        %v2002 = vunpack.c.l.b16 %v1966
        %v2003 = vunpack.c.l.b16 %v1967
        %v2004 = vunpack.c.l.b16 %v1968
        %v2005 = vunpack.c.l.b16 %v1969
        %v2006 = vunpack.c.l.b16 %v1970
        %v2007 = vunpack.c.l.b16 %v1971
        %v2008 = vunpack.c.l.b16 %v1972
        %v2009 = vunpack.c.l.b16 %v1973
        %v2010 = vunpack.c.l.b16 %v1974
        %v2011 = vunpack.c.l.b16 %v1975
        %v2012 = vunpack.c.l.b16 %v1976
        %v2013 = vunpack.c.l.b16 %v1977
        %v2014 = vunpack.c.l.b16 %v1978
        %v2015 = vpack.c.b16 %v2000, %v1999
        %v2016 = vpack.c.b16 %v2002, %v2001
        %v2017 = vpack.c.b16 %v2004, %v2003
        %v2018 = vpack.c.b16 %v2006, %v2005
        %v2019 = vpack.c.b16 %v2008, %v2007
        %v2020 = vpack.c.b16 %v2010, %v2009
        %v2021 = vpack.c.b16 %v2012, %v2011
        %v2022 = vpack.c.b16 %v2014, %v2013
        %2031 = vmatpush.bf16.msra.mxu0 %v2022
        %2032 = vmatpush.bf16.msra.mxu0 %v2021
        %2033 = vmatpush.bf16.msra.mxu0 %v2020
        %2034 = vmatpush.bf16.msra.mxu0 %v2019
        %2035 = vmatpush.bf16.msra.mxu0 %v2018
        %2036 = vmatpush.bf16.msra.mxu0 %v2017
        %2037 = vmatpush.bf16.msra.mxu0 %v2016
        %2038 = vmatpush.bf16.msra.mxu0 %v2015
        %2039 = vmatmul.bf16.gmra.mxu0 %v1962
        %v2040 = vpop.f32.mrf.mxu0
        %v2041 = vadd.f32 %v1981, %v2040
        %v2042 = vpop.f32.mrf.mxu0
        %2043 = vdwg.mxu0
        %v2044 = vadd.f32 %v1923, %v2041
        %v2045 = vld [vmem:[#allocation12] sm:$0x1]
        %v2046 = vld [vmem:[%s1008] sm:$0x1]
        %v2047 = vsel %vm1369, %v2044, 0.0
        %2048 = vadd.xlane.f32.xlu0 %v2047
        %v2049 = vpop.xlane.xlu0 %2048
        %v2050 = vmul.f32 %v2049, %v1896
        %v2051 = vsub.f32 %v2044, %v2050
        %v2052 = vmul.f32 %v2051, %v2051
        %v2053 = vsel %vm1369, %v2052, 0.0
        %2054 = vadd.xlane.f32.xlu0 %v2053
        %v2055 = vpop.xlane.xlu0 %2054
        %v2056 = vmul.f32 %v2055, %v1896
        %v2057 = vadd.f32 %v2056, 1e-05
        %v2058 = vrsqrt.pop %v2057
        %v2059 = vmul.f32 %v2058, %v2057
        %v2060 = vmul.f32 %v2059, %v2058
        %v2061 = vmul.f32 0.5, %v2060
        %v2062 = vsub.f32 1.5, %v2061
        %v2063 = vmul.f32 %v2058, %v2062
        %vm2064 = vweird.f32 %v2057
        %vm2065 = vweird.f32 %v2058
        %vm2066 = vmor %vm2064, %vm2065
        %v2067 = vsel %vm2066, %v2058, %v2063
        %v2068 = vmul.f32 %v2051, %v2067
        %v2070 = vperm.slane %v2045, 0
        %v2072 = vmul.f32 %v2068, %v2070
        %v2074 = vperm.slane %v2046, 0
        %v2076 = vadd.f32 %v2072, %v2074
        %2077 = vst.msk [vmem:[%s948] sm:$0xff] %vm1369, %v2076
        %s2078 = sand.u32 %s573, 1
        %s2079 = scalar_lea.sflag [#allocation6], %s2078
        %s2080 = sand.u32 %s573, 1
        %s2081 = smul.addr %s2080, 8
        %s2082 = scalar_lea.vmem [#allocation13], %s2081
        // Predicated region
        $region121: #{tpu_custom_call.1} parent=95 // pred_check
          %p2083 = pneg %p583
        $region122: #{tpu_custom_call.1} parent=95 // pred_check_branch
          %2085 = sbr.rel (%p2083) target = $region124
        $region123: #{tpu_custom_call.1} parent=95 // pred_region
          %2087 = vsyncadd %s2079, 0
          %s2088 = sadd.s32 %s47, %s46
          %s2089 = smul.addr %s45, 2
          %s2090 = sadd.s32 %s2088, %s2089
          %s2091 = smul.addr %s2090, 8
          %s2092 = scalar_lea.hbm %s19, %s2091
          %s2094 = sshll.u32 %s2082, 4
          %s2095 = int_to_ptr.vmem [resolvable:$true] %s2094
          %s2096 = sshll.u32 %s2092, 4
          %s2097 = int_to_ptr.hbm [resolvable:$true] %s2096
          %2099 = dma.vmem_to_hbm [thread:$0]  %s2095, 128, %s2097, %s2079
        $region124: #{tpu_custom_call.1} parent=95 // pred_fallthru
          _
      $region96: #{tpu_custom_call.1} parent=5 // pred_fallthru
        _
      %p2100 = scmp.le.s32.totalorder 2, %s35
      // Predicated region
      $region125: #{tpu_custom_call.1} parent=5 // pred_check
        %p2101 = pneg %p2100
      $region126: #{tpu_custom_call.1} parent=5 // pred_check_branch
        %2103 = sbr.rel (%p2101) target = $region128
      $region127: #{tpu_custom_call.1} parent=5 // pred_region
        %s2104 = ssub.s32 %s35, 2
        // Predicated region
        $region129: #{tpu_custom_call.1} parent=127 // pred_check
          %p2105 = pneg %p589
        $region130: #{tpu_custom_call.1} parent=127 // pred_check_branch
          %2107 = sbr.rel (%p2105) target = $region132
        $region131: #{tpu_custom_call.1} parent=127 // pred_region
          %s2108 = sand.u32 %s574, 1
          %s2109 = scalar_lea.sflag [#allocation6], %s2108
          %s2110 = sand.u32 %s574, 1
          %s2111 = smul.addr %s2110, 8
          %s2112 = scalar_lea.vmem [#allocation13], %s2111
          %2114 = dma.done %s2109, 128
        $region132: #{tpu_custom_call.1} parent=127 // pred_fallthru
          _
      $region128: #{tpu_custom_call.1} parent=5 // pred_fallthru
        _
    $region6: #{tpu_custom_call.1} parent=1 // loop_footer
      %s39 = sadd.s32 1, %s35
    $region7: #{tpu_custom_call.1} parent=1 // loop_footer_branch
      %34 = sbr.rel target = $region3
    $region8: #{tpu_custom_call.1} parent=1 // loop_exit
      _
    %2115 = vsyncpa [#allocation5], 1
    %s2116 = scalar_lea.sflag [#allocation5], 1
    %2117 = vsyncpa %s2116, 1
    %2118 = vsyncpa [#allocation8], 1
    %s2119 = scalar_lea.sflag [#allocation8], 1
    %2120 = vsyncpa %s2119, 1
    %2121 = vsyncpa [#allocation11], 1
    %2122 = vsyncpa [#allocation6], 1
    %s2123 = scalar_lea.sflag [#allocation6], 1
    %2124 = vsyncpa %s2123, 1

// kernel: tpu_custom_call.1
$region0: #{tpu_custom_call.1}
  #allocation0 [shape = 'u32[]', space=smem, size = 0x4, offset = 0x4, fixed_abs, tag = 'smem constant byte address 0x4 - core index']
  #allocation1 [shape = 'u32[72,128]{1,0:T(1,128)}', space=vmem, size = 0x9000, scoped, tag = 'internal scratch']
  #allocation2 [shape = 'bf16[4,8,8]{2,1,0:T(8,128)(2,1)}', space=vmem, size = 0x2000, scoped, tag = 'scratch operand']
  #allocation3 [shape = 'bf16[4,8,8]{2,1,0:T(8,128)(2,1)}', space=vmem, size = 0x2000, scoped, tag = 'scratch operand']
  %s0 = inlined_call_operand.vmem [shape: f32[2,2,8,32], index: 0, kind: input, shape index: {}]
  %s1 = inlined_call_operand.hbm [shape: bf16[2,2,8,32], index: 1, kind: input, shape index: {}]
  %s2 = inlined_call_operand.hbm [shape: bf16[2,2,8,32], index: 2, kind: input, shape index: {}]
  %s3 = inlined_call_operand.vmem [shape: bf16[2,32,32], index: 3, kind: input, shape index: {}]
  %s4 = inlined_call_operand.vmem [shape: bf16[2,32,32], index: 4, kind: input, shape index: {}]
  %s5 = inlined_call_operand.vmem [shape: bf16[2,32,32], index: 5, kind: input, shape index: {}]
  %s6 = inlined_call_operand.vmem [shape: f32[2,1,32], index: 6, kind: input, shape index: {}]
  %s7 = inlined_call_operand.vmem [shape: f32[2,1,32], index: 7, kind: input, shape index: {}]
  %s8 = inlined_call_operand.vmem [shape: f32[2,1,32], index: 8, kind: input, shape index: {}]
  %s9 = inlined_call_operand.vmem [shape: bf16[2,32,32], index: 9, kind: input, shape index: {}]
  %s10 = inlined_call_operand.vmem [shape: f32[2,1,32], index: 10, kind: input, shape index: {}]
  %s11 = inlined_call_operand.hbm [shape: f32[2,1,32], index: 11, kind: input, shape index: {}]
  %s12 = inlined_call_operand.vmem [shape: f32[2,1,32], index: 12, kind: input, shape index: {}]
  %s13 = inlined_call_operand.hbm [shape: bf16[2,32,128], index: 13, kind: input, shape index: {}]
  %s14 = inlined_call_operand.vmem [shape: f32[2,1,128], index: 14, kind: input, shape index: {}]
  %s15 = inlined_call_operand.vmem [shape: bf16[2,128,32], index: 15, kind: input, shape index: {}]
  %s16 = inlined_call_operand.vmem [shape: f32[2,1,32], index: 16, kind: input, shape index: {}]
  %s17 = inlined_call_operand.hbm [shape: f32[2,1,32], index: 17, kind: input, shape index: {}]
  %s18 = inlined_call_operand.vmem [shape: f32[2,1,32], index: 18, kind: input, shape index: {}]
  %s19 = inlined_call_operand.hbm [shape: f32[2,2,8,32], index: 19, kind: output, shape index: {}]
  %s20 = sld [smem:[#allocation0]]
  $region133: #{tpu_custom_call.1} parent=0
    _
  %s22 = ssub.s32 1, %s20
  %s23 = scalar_select 0, %s22, %s20
  $region1: #{tpu_custom_call.1} parent=0
    #allocation4 [shape = 'u8[4096]{0}', space=vmem, size = 0x1000, scoped, tag = 'input window, operand 1']
    #allocation5 [shape = 's32[2]{0}', space=sflag, size = 0x8, scoped, tag = 'scoped memory for tpu_custom_call.1']
    #allocation6 [shape = 's32[2]{0}', space=sflag, size = 0x8, scoped, tag = 'scoped memory for tpu_custom_call.1']
    #allocation7 [shape = 'u8[4096]{0}', space=vmem, size = 0x1000, scoped, tag = 'input window, operand 2']
    #allocation8 [shape = 's32[2]{0}', space=sflag, size = 0x8, scoped, tag = 'scoped memory for tpu_custom_call.1']
    #allocation9 [shape = 'u8[1024]{0}', space=vmem, size = 0x400, scoped, tag = 'input window, operand 11']
    #allocation10 [shape = 'u8[16384]{0}', space=vmem, size = 0x4000, scoped, tag = 'input window, operand 13']
    #allocation11 [shape = 's32[2]{0}', space=sflag, size = 0x8, scoped, tag = 'scoped memory for tpu_custom_call.1']
    #allocation12 [shape = 'u8[1024]{0}', space=vmem, size = 0x400, scoped, tag = 'input window, operand 17']
    #allocation13 [shape = 'u8[8192]{0}', space=vmem, size = 0x2000, scoped, tag = 'output window, operand 0']
    %24 = vsyncpa [#allocation5], 0
    %s25 = scalar_lea.sflag [#allocation5], 1
    %26 = vsyncpa %s25, 0
    %27 = vsyncpa [#allocation8], 0
    %s28 = scalar_lea.sflag [#allocation8], 1
    %29 = vsyncpa %s28, 0
    %30 = vsyncpa [#allocation11], 0
    %s31 = scalar_lea.sflag [#allocation11], 1
    %32 = vsyncpa %s31, 0
    %33 = vsyncpa [#allocation6], 0
    %s34 = scalar_lea.sflag [#allocation6], 1
    %35 = vsyncpa %s34, 0
    loop: start=0, step=1, limit=6
    $region2: #{tpu_custom_call.1} parent=1 // loop_pre_header
      _
    $region3: #{tpu_custom_call.1} parent=1 // loop_header
      %s37 = sphi 0, %s41
      %p38 = scmp.ge.s32.totalorder %s37, 6
      %s44 = sphi 0, %s63
      %s45 = sphi 0, %s59
      %s46 = sphi 0, %s55
      %s47 = sphi 0, %s44
      %s48 = sphi 0, %s45
      %s49 = sphi 0, %s46
      %s50 = sphi 0, %s47
      %s51 = sphi 0, %s48
      %s52 = sphi 0, %s49
      %s70 = sphi 0, %s72
      %s73 = sphi 0, %s70
      %s74 = sphi 0, %s73
      %s90 = sphi 0, %s74
      %s98 = sphi 0, %s100
      %s101 = sphi 0, %s98
      %s102 = sphi 0, %s101
      %s118 = sphi 0, %s102
      %s126 = sphi 0, %s128
      %s129 = sphi 0, %s126
      %s130 = sphi 0, %s129
      %s146 = sphi 0, %s130
      %s152 = sphi 0, %s154
      %s155 = sphi 0, %s152
      %s156 = sphi 0, %s155
      %s172 = sphi 0, %s156
      %s178 = sphi 0, %s180
      %s181 = sphi 0, %s178
      %s182 = sphi 0, %s181
      %s198 = sphi 0, %s182
      %s204 = sphi 0, %s206
      %s207 = sphi 0, %s204
      %s208 = sphi 0, %s207
      %s224 = sphi 0, %s208
      %s230 = sphi 0, %s232
      %s233 = sphi 0, %s230
      %s234 = sphi 0, %s233
      %s250 = sphi 0, %s234
      %s256 = sphi 0, %s258
      %s259 = sphi 0, %s256
      %s260 = sphi 0, %s259
      %s276 = sphi 0, %s260
      %s282 = sphi 0, %s284
      %s285 = sphi 0, %s282
      %s286 = sphi 0, %s285
      %s302 = sphi 0, %s286
      %s308 = sphi 0, %s310
      %s311 = sphi 0, %s308
      %s312 = sphi 0, %s311
      %s328 = sphi 0, %s312
      %s334 = sphi 0, %s336
      %s337 = sphi 0, %s334
      %s338 = sphi 0, %s337
      %s354 = sphi 0, %s338
      %s360 = sphi 0, %s362
      %s363 = sphi 0, %s360
      %s364 = sphi 0, %s363
      %s380 = sphi 0, %s364
      %s386 = sphi 0, %s388
      %s389 = sphi 0, %s386
      %s390 = sphi 0, %s389
      %s406 = sphi 0, %s390
      %s412 = sphi 0, %s414
      %s415 = sphi 0, %s412
      %s416 = sphi 0, %s415
      %s432 = sphi 0, %s416
      %s438 = sphi 0, %s440
      %s441 = sphi 0, %s438
      %s442 = sphi 0, %s441
      %s458 = sphi 0, %s442
      %s464 = sphi 0, %s466
      %s467 = sphi 0, %s464
      %s468 = sphi 0, %s467
      %s484 = sphi 0, %s468
      %s490 = sphi 0, %s492
      %s493 = sphi 0, %s490
      %s494 = sphi 0, %s493
      %s510 = sphi 0, %s494
      %s516 = sphi 0, %s518
      %s519 = sphi 0, %s516
      %s520 = sphi 0, %s519
      %s536 = sphi 0, %s520
      %s542 = sphi 0, %s544
      %s545 = sphi 0, %s542
      %s546 = sphi 0, %s545
      %s562 = sphi 0, %s546
      %s572 = sphi 0, %s574
      %s575 = sphi 0, %s572
      %s576 = sphi 0, %s575
      %s592 = sphi 0, %s576
    $region4: #{tpu_custom_call.1} parent=1 // loop_header_branch
      %40 = sbr.rel (%p38) target = $region8
    $region5: #{tpu_custom_call.1} parent=1 // loop_body
      %s42 = ssub.s32 %s37, 1
      %s43 = ssub.s32 %s37, 2
      %s53 = sadd.s32 1, %s46
      %p54 = scmp.ge.s32.totalorder %s53, 1
      %s55 = scalar_select %p54, 0, %s53
      %s56 = sadd.s32 1, %s45
      %s57 = scalar_select %p54, %s56, %s45
      %p58 = scmp.ge.s32.totalorder %s57, 2
      %s59 = scalar_select %p58, 0, %s57
      %s60 = sadd.s32 1, %s44
      %s61 = scalar_select %p58, %s60, %s44
      %p62 = scmp.ge.s32.totalorder %s61, 2
      %s63 = scalar_select %p62, 0, %s61
      %s64 = ssub.s32 %s44, %s63
      %s65 = ssub.s32 %s45, %s59
      %s66 = sor.u32 %s64, %s65
      %s67 = ssub.s32 %s46, %s55
      %s68 = sor.u32 %s66, %s67
      %p69 = scmp.eq.s32.totalorder %s68, 0
      %s71 = sadd.s32 %s70, 1
      %s72 = scalar_select %p69, %s70, %s71
      %p75 = pneg %p69
      %p76 = scmp.eq.s32.totalorder %s37, 3
      %p77 = por %p75, %p76
      %p78 = scmp.ne.s32.totalorder %s70, %s73
      %p79 = scmp.eq.s32.totalorder %s37, 0
      %p80 = por %p78, %p79
      %p81 = scmp.ne.s32.totalorder %s70, %s73
      %p82 = scmp.eq.s32.totalorder %s42, 3
      %p83 = por %p81, %p82
      %p84 = scmp.ne.s32.totalorder %s73, %s74
      %p85 = scmp.eq.s32.totalorder %s42, 0
      %p86 = por %p84, %p85
      %p87 = scmp.ne.s32.totalorder %s73, %s74
      %p88 = scmp.eq.s32.totalorder %s43, 3
      %p89 = por %p87, %p88
      %p91 = scmp.ne.s32.totalorder %s74, %s90
      %p92 = scmp.eq.s32.totalorder %s43, 0
      %p93 = por %p91, %p92
      %s94 = ssub.s32 %s44, %s63
      %s95 = ssub.s32 %s45, %s59
      %s96 = sor.u32 %s94, %s95
      %p97 = scmp.eq.s32.totalorder %s96, 0
      %s99 = sadd.s32 %s98, 1
      %s100 = scalar_select %p97, %s98, %s99
      %p103 = pneg %p97
      %p104 = scmp.eq.s32.totalorder %s37, 3
      %p105 = por %p103, %p104
      %p106 = scmp.ne.s32.totalorder %s98, %s101
      %p107 = scmp.eq.s32.totalorder %s37, 0
      %p108 = por %p106, %p107
      %p109 = scmp.ne.s32.totalorder %s98, %s101
      %p110 = scmp.eq.s32.totalorder %s42, 3
      %p111 = por %p109, %p110
      %p112 = scmp.ne.s32.totalorder %s101, %s102
      %p113 = scmp.eq.s32.totalorder %s42, 0
      %p114 = por %p112, %p113
      %p115 = scmp.ne.s32.totalorder %s101, %s102
      %p116 = scmp.eq.s32.totalorder %s43, 3
      %p117 = por %p115, %p116
      %p119 = scmp.ne.s32.totalorder %s102, %s118
      %p120 = scmp.eq.s32.totalorder %s43, 0
      %p121 = por %p119, %p120
      %s122 = ssub.s32 %s44, %s63
      %s123 = ssub.s32 %s45, %s59
      %s124 = sor.u32 %s122, %s123
      %p125 = scmp.eq.s32.totalorder %s124, 0
      %s127 = sadd.s32 %s126, 1
      %s128 = scalar_select %p125, %s126, %s127
      %p131 = pneg %p125
      %p132 = scmp.eq.s32.totalorder %s37, 3
      %p133 = por %p131, %p132
      %p134 = scmp.ne.s32.totalorder %s126, %s129
      %p135 = scmp.eq.s32.totalorder %s37, 0
      %p136 = por %p134, %p135
      %p137 = scmp.ne.s32.totalorder %s126, %s129
      %p138 = scmp.eq.s32.totalorder %s42, 3
      %p139 = por %p137, %p138
      %p140 = scmp.ne.s32.totalorder %s129, %s130
      %p141 = scmp.eq.s32.totalorder %s42, 0
      %p142 = por %p140, %p141
      %p143 = scmp.ne.s32.totalorder %s129, %s130
      %p144 = scmp.eq.s32.totalorder %s43, 3
      %p145 = por %p143, %p144
      %p147 = scmp.ne.s32.totalorder %s130, %s146
      %p148 = scmp.eq.s32.totalorder %s43, 0
      %p149 = por %p147, %p148
      %s150 = ssub.s32 %s44, %s63
      %p151 = scmp.eq.s32.totalorder %s150, 0
      %s153 = sadd.s32 %s152, 1
      %s154 = scalar_select %p151, %s152, %s153
      %p157 = pneg %p151
      %p158 = scmp.eq.s32.totalorder %s37, 3
      %p159 = por %p157, %p158
      %p160 = scmp.ne.s32.totalorder %s152, %s155
      %p161 = scmp.eq.s32.totalorder %s37, 0
      %p162 = por %p160, %p161
      %p163 = scmp.ne.s32.totalorder %s152, %s155
      %p164 = scmp.eq.s32.totalorder %s42, 3
      %p165 = por %p163, %p164
      %p166 = scmp.ne.s32.totalorder %s155, %s156
      %p167 = scmp.eq.s32.totalorder %s42, 0
      %p168 = por %p166, %p167
      %p169 = scmp.ne.s32.totalorder %s155, %s156
      %p170 = scmp.eq.s32.totalorder %s43, 3
      %p171 = por %p169, %p170
      %p173 = scmp.ne.s32.totalorder %s156, %s172
      %p174 = scmp.eq.s32.totalorder %s43, 0
      %p175 = por %p173, %p174
      %s176 = ssub.s32 %s44, %s63
      %p177 = scmp.eq.s32.totalorder %s176, 0
      %s179 = sadd.s32 %s178, 1
      %s180 = scalar_select %p177, %s178, %s179
      %p183 = pneg %p177
      %p184 = scmp.eq.s32.totalorder %s37, 3
      %p185 = por %p183, %p184
      %p186 = scmp.ne.s32.totalorder %s178, %s181
      %p187 = scmp.eq.s32.totalorder %s37, 0
      %p188 = por %p186, %p187
      %p189 = scmp.ne.s32.totalorder %s178, %s181
      %p190 = scmp.eq.s32.totalorder %s42, 3
      %p191 = por %p189, %p190
      %p192 = scmp.ne.s32.totalorder %s181, %s182
      %p193 = scmp.eq.s32.totalorder %s42, 0
      %p194 = por %p192, %p193
      %p195 = scmp.ne.s32.totalorder %s181, %s182
      %p196 = scmp.eq.s32.totalorder %s43, 3
      %p197 = por %p195, %p196
      %p199 = scmp.ne.s32.totalorder %s182, %s198
      %p200 = scmp.eq.s32.totalorder %s43, 0
      %p201 = por %p199, %p200
      %s202 = ssub.s32 %s44, %s63
      %p203 = scmp.eq.s32.totalorder %s202, 0
      %s205 = sadd.s32 %s204, 1
      %s206 = scalar_select %p203, %s204, %s205
      %p209 = pneg %p203
      %p210 = scmp.eq.s32.totalorder %s37, 3
      %p211 = por %p209, %p210
      %p212 = scmp.ne.s32.totalorder %s204, %s207
      %p213 = scmp.eq.s32.totalorder %s37, 0
      %p214 = por %p212, %p213
      %p215 = scmp.ne.s32.totalorder %s204, %s207
      %p216 = scmp.eq.s32.totalorder %s42, 3
      %p217 = por %p215, %p216
      %p218 = scmp.ne.s32.totalorder %s207, %s208
      %p219 = scmp.eq.s32.totalorder %s42, 0
      %p220 = por %p218, %p219
      %p221 = scmp.ne.s32.totalorder %s207, %s208
      %p222 = scmp.eq.s32.totalorder %s43, 3
      %p223 = por %p221, %p222
      %p225 = scmp.ne.s32.totalorder %s208, %s224
      %p226 = scmp.eq.s32.totalorder %s43, 0
      %p227 = por %p225, %p226
      %s228 = ssub.s32 %s44, %s63
      %p229 = scmp.eq.s32.totalorder %s228, 0
      %s231 = sadd.s32 %s230, 1
      %s232 = scalar_select %p229, %s230, %s231
      %p235 = pneg %p229
      %p236 = scmp.eq.s32.totalorder %s37, 3
      %p237 = por %p235, %p236
      %p238 = scmp.ne.s32.totalorder %s230, %s233
      %p239 = scmp.eq.s32.totalorder %s37, 0
      %p240 = por %p238, %p239
      %p241 = scmp.ne.s32.totalorder %s230, %s233
      %p242 = scmp.eq.s32.totalorder %s42, 3
      %p243 = por %p241, %p242
      %p244 = scmp.ne.s32.totalorder %s233, %s234
      %p245 = scmp.eq.s32.totalorder %s42, 0
      %p246 = por %p244, %p245
      %p247 = scmp.ne.s32.totalorder %s233, %s234
      %p248 = scmp.eq.s32.totalorder %s43, 3
      %p249 = por %p247, %p248
      %p251 = scmp.ne.s32.totalorder %s234, %s250
      %p252 = scmp.eq.s32.totalorder %s43, 0
      %p253 = por %p251, %p252
      %s254 = ssub.s32 %s44, %s63
      %p255 = scmp.eq.s32.totalorder %s254, 0
      %s257 = sadd.s32 %s256, 1
      %s258 = scalar_select %p255, %s256, %s257
      %p261 = pneg %p255
      %p262 = scmp.eq.s32.totalorder %s37, 3
      %p263 = por %p261, %p262
      %p264 = scmp.ne.s32.totalorder %s256, %s259
      %p265 = scmp.eq.s32.totalorder %s37, 0
      %p266 = por %p264, %p265
      %p267 = scmp.ne.s32.totalorder %s256, %s259
      %p268 = scmp.eq.s32.totalorder %s42, 3
      %p269 = por %p267, %p268
      %p270 = scmp.ne.s32.totalorder %s259, %s260
      %p271 = scmp.eq.s32.totalorder %s42, 0
      %p272 = por %p270, %p271
      %p273 = scmp.ne.s32.totalorder %s259, %s260
      %p274 = scmp.eq.s32.totalorder %s43, 3
      %p275 = por %p273, %p274
      %p277 = scmp.ne.s32.totalorder %s260, %s276
      %p278 = scmp.eq.s32.totalorder %s43, 0
      %p279 = por %p277, %p278
      %s280 = ssub.s32 %s44, %s63
      %p281 = scmp.eq.s32.totalorder %s280, 0
      %s283 = sadd.s32 %s282, 1
      %s284 = scalar_select %p281, %s282, %s283
      %p287 = pneg %p281
      %p288 = scmp.eq.s32.totalorder %s37, 3
      %p289 = por %p287, %p288
      %p290 = scmp.ne.s32.totalorder %s282, %s285
      %p291 = scmp.eq.s32.totalorder %s37, 0
      %p292 = por %p290, %p291
      %p293 = scmp.ne.s32.totalorder %s282, %s285
      %p294 = scmp.eq.s32.totalorder %s42, 3
      %p295 = por %p293, %p294
      %p296 = scmp.ne.s32.totalorder %s285, %s286
      %p297 = scmp.eq.s32.totalorder %s42, 0
      %p298 = por %p296, %p297
      %p299 = scmp.ne.s32.totalorder %s285, %s286
      %p300 = scmp.eq.s32.totalorder %s43, 3
      %p301 = por %p299, %p300
      %p303 = scmp.ne.s32.totalorder %s286, %s302
      %p304 = scmp.eq.s32.totalorder %s43, 0
      %p305 = por %p303, %p304
      %s306 = ssub.s32 %s44, %s63
      %p307 = scmp.eq.s32.totalorder %s306, 0
      %s309 = sadd.s32 %s308, 1
      %s310 = scalar_select %p307, %s308, %s309
      %p313 = pneg %p307
      %p314 = scmp.eq.s32.totalorder %s37, 3
      %p315 = por %p313, %p314
      %p316 = scmp.ne.s32.totalorder %s308, %s311
      %p317 = scmp.eq.s32.totalorder %s37, 0
      %p318 = por %p316, %p317
      %p319 = scmp.ne.s32.totalorder %s308, %s311
      %p320 = scmp.eq.s32.totalorder %s42, 3
      %p321 = por %p319, %p320
      %p322 = scmp.ne.s32.totalorder %s311, %s312
      %p323 = scmp.eq.s32.totalorder %s42, 0
      %p324 = por %p322, %p323
      %p325 = scmp.ne.s32.totalorder %s311, %s312
      %p326 = scmp.eq.s32.totalorder %s43, 3
      %p327 = por %p325, %p326
      %p329 = scmp.ne.s32.totalorder %s312, %s328
      %p330 = scmp.eq.s32.totalorder %s43, 0
      %p331 = por %p329, %p330
      %s332 = ssub.s32 %s44, %s63
      %p333 = scmp.eq.s32.totalorder %s332, 0
      %s335 = sadd.s32 %s334, 1
      %s336 = scalar_select %p333, %s334, %s335
      %p339 = pneg %p333
      %p340 = scmp.eq.s32.totalorder %s37, 3
      %p341 = por %p339, %p340
      %p342 = scmp.ne.s32.totalorder %s334, %s337
      %p343 = scmp.eq.s32.totalorder %s37, 0
      %p344 = por %p342, %p343
      %p345 = scmp.ne.s32.totalorder %s334, %s337
      %p346 = scmp.eq.s32.totalorder %s42, 3
      %p347 = por %p345, %p346
      %p348 = scmp.ne.s32.totalorder %s337, %s338
      %p349 = scmp.eq.s32.totalorder %s42, 0
      %p350 = por %p348, %p349
      %p351 = scmp.ne.s32.totalorder %s337, %s338
      %p352 = scmp.eq.s32.totalorder %s43, 3
      %p353 = por %p351, %p352
      %p355 = scmp.ne.s32.totalorder %s338, %s354
      %p356 = scmp.eq.s32.totalorder %s43, 0
      %p357 = por %p355, %p356
      %s358 = ssub.s32 %s44, %s63
      %p359 = scmp.eq.s32.totalorder %s358, 0
      %s361 = sadd.s32 %s360, 1
      %s362 = scalar_select %p359, %s360, %s361
      %p365 = pneg %p359
      %p366 = scmp.eq.s32.totalorder %s37, 3
      %p367 = por %p365, %p366
      %p368 = scmp.ne.s32.totalorder %s360, %s363
      %p369 = scmp.eq.s32.totalorder %s37, 0
      %p370 = por %p368, %p369
      %p371 = scmp.ne.s32.totalorder %s360, %s363
      %p372 = scmp.eq.s32.totalorder %s42, 3
      %p373 = por %p371, %p372
      %p374 = scmp.ne.s32.totalorder %s363, %s364
      %p375 = scmp.eq.s32.totalorder %s42, 0
      %p376 = por %p374, %p375
      %p377 = scmp.ne.s32.totalorder %s363, %s364
      %p378 = scmp.eq.s32.totalorder %s43, 3
      %p379 = por %p377, %p378
      %p381 = scmp.ne.s32.totalorder %s364, %s380
      %p382 = scmp.eq.s32.totalorder %s43, 0
      %p383 = por %p381, %p382
      %s384 = ssub.s32 %s44, %s63
      %p385 = scmp.eq.s32.totalorder %s384, 0
      %s387 = sadd.s32 %s386, 1
      %s388 = scalar_select %p385, %s386, %s387
      %p391 = pneg %p385
      %p392 = scmp.eq.s32.totalorder %s37, 3
      %p393 = por %p391, %p392
      %p394 = scmp.ne.s32.totalorder %s386, %s389
      %p395 = scmp.eq.s32.totalorder %s37, 0
      %p396 = por %p394, %p395
      %p397 = scmp.ne.s32.totalorder %s386, %s389
      %p398 = scmp.eq.s32.totalorder %s42, 3
      %p399 = por %p397, %p398
      %p400 = scmp.ne.s32.totalorder %s389, %s390
      %p401 = scmp.eq.s32.totalorder %s42, 0
      %p402 = por %p400, %p401
      %p403 = scmp.ne.s32.totalorder %s389, %s390
      %p404 = scmp.eq.s32.totalorder %s43, 3
      %p405 = por %p403, %p404
      %p407 = scmp.ne.s32.totalorder %s390, %s406
      %p408 = scmp.eq.s32.totalorder %s43, 0
      %p409 = por %p407, %p408
      %s410 = ssub.s32 %s44, %s63
      %p411 = scmp.eq.s32.totalorder %s410, 0
      %s413 = sadd.s32 %s412, 1
      %s414 = scalar_select %p411, %s412, %s413
      %p417 = pneg %p411
      %p418 = scmp.eq.s32.totalorder %s37, 3
      %p419 = por %p417, %p418
      %p420 = scmp.ne.s32.totalorder %s412, %s415
      %p421 = scmp.eq.s32.totalorder %s37, 0
      %p422 = por %p420, %p421
      %p423 = scmp.ne.s32.totalorder %s412, %s415
      %p424 = scmp.eq.s32.totalorder %s42, 3
      %p425 = por %p423, %p424
      %p426 = scmp.ne.s32.totalorder %s415, %s416
      %p427 = scmp.eq.s32.totalorder %s42, 0
      %p428 = por %p426, %p427
      %p429 = scmp.ne.s32.totalorder %s415, %s416
      %p430 = scmp.eq.s32.totalorder %s43, 3
      %p431 = por %p429, %p430
      %p433 = scmp.ne.s32.totalorder %s416, %s432
      %p434 = scmp.eq.s32.totalorder %s43, 0
      %p435 = por %p433, %p434
      %s436 = ssub.s32 %s44, %s63
      %p437 = scmp.eq.s32.totalorder %s436, 0
      %s439 = sadd.s32 %s438, 1
      %s440 = scalar_select %p437, %s438, %s439
      %p443 = pneg %p437
      %p444 = scmp.eq.s32.totalorder %s37, 3
      %p445 = por %p443, %p444
      %p446 = scmp.ne.s32.totalorder %s438, %s441
      %p447 = scmp.eq.s32.totalorder %s37, 0
      %p448 = por %p446, %p447
      %p449 = scmp.ne.s32.totalorder %s438, %s441
      %p450 = scmp.eq.s32.totalorder %s42, 3
      %p451 = por %p449, %p450
      %p452 = scmp.ne.s32.totalorder %s441, %s442
      %p453 = scmp.eq.s32.totalorder %s42, 0
      %p454 = por %p452, %p453
      %p455 = scmp.ne.s32.totalorder %s441, %s442
      %p456 = scmp.eq.s32.totalorder %s43, 3
      %p457 = por %p455, %p456
      %p459 = scmp.ne.s32.totalorder %s442, %s458
      %p460 = scmp.eq.s32.totalorder %s43, 0
      %p461 = por %p459, %p460
      %s462 = ssub.s32 %s44, %s63
      %p463 = scmp.eq.s32.totalorder %s462, 0
      %s465 = sadd.s32 %s464, 1
      %s466 = scalar_select %p463, %s464, %s465
      %p469 = pneg %p463
      %p470 = scmp.eq.s32.totalorder %s37, 3
      %p471 = por %p469, %p470
      %p472 = scmp.ne.s32.totalorder %s464, %s467
      %p473 = scmp.eq.s32.totalorder %s37, 0
      %p474 = por %p472, %p473
      %p475 = scmp.ne.s32.totalorder %s464, %s467
      %p476 = scmp.eq.s32.totalorder %s42, 3
      %p477 = por %p475, %p476
      %p478 = scmp.ne.s32.totalorder %s467, %s468
      %p479 = scmp.eq.s32.totalorder %s42, 0
      %p480 = por %p478, %p479
      %p481 = scmp.ne.s32.totalorder %s467, %s468
      %p482 = scmp.eq.s32.totalorder %s43, 3
      %p483 = por %p481, %p482
      %p485 = scmp.ne.s32.totalorder %s468, %s484
      %p486 = scmp.eq.s32.totalorder %s43, 0
      %p487 = por %p485, %p486
      %s488 = ssub.s32 %s44, %s63
      %p489 = scmp.eq.s32.totalorder %s488, 0
      %s491 = sadd.s32 %s490, 1
      %s492 = scalar_select %p489, %s490, %s491
      %p495 = pneg %p489
      %p496 = scmp.eq.s32.totalorder %s37, 3
      %p497 = por %p495, %p496
      %p498 = scmp.ne.s32.totalorder %s490, %s493
      %p499 = scmp.eq.s32.totalorder %s37, 0
      %p500 = por %p498, %p499
      %p501 = scmp.ne.s32.totalorder %s490, %s493
      %p502 = scmp.eq.s32.totalorder %s42, 3
      %p503 = por %p501, %p502
      %p504 = scmp.ne.s32.totalorder %s493, %s494
      %p505 = scmp.eq.s32.totalorder %s42, 0
      %p506 = por %p504, %p505
      %p507 = scmp.ne.s32.totalorder %s493, %s494
      %p508 = scmp.eq.s32.totalorder %s43, 3
      %p509 = por %p507, %p508
      %p511 = scmp.ne.s32.totalorder %s494, %s510
      %p512 = scmp.eq.s32.totalorder %s43, 0
      %p513 = por %p511, %p512
      %s514 = ssub.s32 %s44, %s63
      %p515 = scmp.eq.s32.totalorder %s514, 0
      %s517 = sadd.s32 %s516, 1
      %s518 = scalar_select %p515, %s516, %s517
      %p521 = pneg %p515
      %p522 = scmp.eq.s32.totalorder %s37, 3
      %p523 = por %p521, %p522
      %p524 = scmp.ne.s32.totalorder %s516, %s519
      %p525 = scmp.eq.s32.totalorder %s37, 0
      %p526 = por %p524, %p525
      %p527 = scmp.ne.s32.totalorder %s516, %s519
      %p528 = scmp.eq.s32.totalorder %s42, 3
      %p529 = por %p527, %p528
      %p530 = scmp.ne.s32.totalorder %s519, %s520
      %p531 = scmp.eq.s32.totalorder %s42, 0
      %p532 = por %p530, %p531
      %p533 = scmp.ne.s32.totalorder %s519, %s520
      %p534 = scmp.eq.s32.totalorder %s43, 3
      %p535 = por %p533, %p534
      %p537 = scmp.ne.s32.totalorder %s520, %s536
      %p538 = scmp.eq.s32.totalorder %s43, 0
      %p539 = por %p537, %p538
      %s540 = ssub.s32 %s44, %s63
      %p541 = scmp.eq.s32.totalorder %s540, 0
      %s543 = sadd.s32 %s542, 1
      %s544 = scalar_select %p541, %s542, %s543
      %p547 = pneg %p541
      %p548 = scmp.eq.s32.totalorder %s37, 3
      %p549 = por %p547, %p548
      %p550 = scmp.ne.s32.totalorder %s542, %s545
      %p551 = scmp.eq.s32.totalorder %s37, 0
      %p552 = por %p550, %p551
      %p553 = scmp.ne.s32.totalorder %s542, %s545
      %p554 = scmp.eq.s32.totalorder %s42, 3
      %p555 = por %p553, %p554
      %p556 = scmp.ne.s32.totalorder %s545, %s546
      %p557 = scmp.eq.s32.totalorder %s42, 0
      %p558 = por %p556, %p557
      %p559 = scmp.ne.s32.totalorder %s545, %s546
      %p560 = scmp.eq.s32.totalorder %s43, 3
      %p561 = por %p559, %p560
      %p563 = scmp.ne.s32.totalorder %s546, %s562
      %p564 = scmp.eq.s32.totalorder %s43, 0
      %p565 = por %p563, %p564
      %s566 = ssub.s32 %s44, %s63
      %s567 = ssub.s32 %s45, %s59
      %s568 = sor.u32 %s566, %s567
      %s569 = ssub.s32 %s46, %s55
      %s570 = sor.u32 %s568, %s569
      %p571 = scmp.eq.s32.totalorder %s570, 0
      %s573 = sadd.s32 %s572, 1
      %s574 = scalar_select %p571, %s572, %s573
      %p577 = pneg %p571
      %p578 = scmp.eq.s32.totalorder %s37, 3
      %p579 = por %p577, %p578
      %p580 = scmp.ne.s32.totalorder %s572, %s575
      %p581 = scmp.eq.s32.totalorder %s37, 0
      %p582 = por %p580, %p581
      %p583 = scmp.ne.s32.totalorder %s572, %s575
      %p584 = scmp.eq.s32.totalorder %s42, 3
      %p585 = por %p583, %p584
      %p586 = scmp.ne.s32.totalorder %s575, %s576
      %p587 = scmp.eq.s32.totalorder %s42, 0
      %p588 = por %p586, %p587
      %p589 = scmp.ne.s32.totalorder %s575, %s576
      %p590 = scmp.eq.s32.totalorder %s43, 3
      %p591 = por %p589, %p590
      %p593 = scmp.ne.s32.totalorder %s576, %s592
      %p594 = scmp.eq.s32.totalorder %s43, 0
      %p595 = por %p593, %p594
      %p596 = scmp.le.s32.totalorder 1, %s37
      %p597 = scmp.lt.s32.totalorder %s37, 5
      %p598 = pnand %p596, %p597
      %p599 = pneg %p598
      // Predicated region
      $region9: #{tpu_custom_call.1} parent=5 // pred_check
        _
      $region10: #{tpu_custom_call.1} parent=5 // pred_check_branch
        %601 = sbr.rel (%p598) target = $region12
      $region11: #{tpu_custom_call.1} parent=5 // pred_region
        %s602 = ssub.s32 %s37, 1
      $region12: #{tpu_custom_call.1} parent=5 // pred_fallthru
        _
      %p603 = scmp.lt.s32.totalorder %s37, 4
      // Predicated region
      $region13: #{tpu_custom_call.1} parent=5 // pred_check
        %p604 = pneg %p603
      $region14: #{tpu_custom_call.1} parent=5 // pred_check_branch
        %606 = sbr.rel (%p604) target = $region16
      $region15: #{tpu_custom_call.1} parent=5 // pred_region
        // Predicated region
        $region17: #{tpu_custom_call.1} parent=15 // pred_check
          %p607 = pneg %p80
        $region18: #{tpu_custom_call.1} parent=15 // pred_check_branch
          %609 = sbr.rel (%p607) target = $region20
        $region19: #{tpu_custom_call.1} parent=15 // pred_region
          %p610 = scmp.lt.s32.totalorder %s44, 1
          %s611 = scalar_select %p610, %s44, 1
          %p612 = scmp.lt.s32.totalorder %s45, 1
          %s613 = scalar_select %p612, %s45, 1
          %p614 = scmp.lt.s32.totalorder %s46, 0
          %s615 = scalar_select %p614, %s46, 0
          %s616 = sadd.s32 %s615, %s613
          %s617 = smul.addr %s611, 2
          %s618 = sadd.s32 %s616, %s617
          %s619 = smul.addr %s618, 8
          %s620 = scalar_lea.vmem %s0, %s619
        $region20: #{tpu_custom_call.1} parent=15 // pred_fallthru
          _
        // Predicated region
        $region21: #{tpu_custom_call.1} parent=15 // pred_check
          %p621 = pneg %p108
        $region22: #{tpu_custom_call.1} parent=15 // pred_check_branch
          %623 = sbr.rel (%p621) target = $region24
        $region23: #{tpu_custom_call.1} parent=15 // pred_region
          %s624 = sand.u32 %s98, 1
          %s625 = scalar_lea.sflag [#allocation5], %s624
          %s626 = sand.u32 %s98, 1
          %s627 = smul.addr %s626, 4
          %s628 = scalar_lea.vmem [#allocation4], %s627
          %630 = vsyncadd %s625, 0
          %s631 = smul.addr %s44, 2
          %s632 = sadd.s32 %s45, %s631
          %s633 = smul.addr %s632, 4
          %s634 = scalar_lea.hbm %s1, %s633
          %s636 = sshll.u32 %s634, 4
          %s637 = int_to_ptr.hbm [resolvable:$true] %s636
          %s638 = sshll.u32 %s628, 4
          %s639 = int_to_ptr.vmem [resolvable:$true] %s638
          %641 = dma.hbm_to_vmem [thread:$0]  %s637, 64, %s639, %s625
        $region24: #{tpu_custom_call.1} parent=15 // pred_fallthru
          _
        // Predicated region
        $region25: #{tpu_custom_call.1} parent=15 // pred_check
          %p642 = pneg %p136
        $region26: #{tpu_custom_call.1} parent=15 // pred_check_branch
          %644 = sbr.rel (%p642) target = $region28
        $region27: #{tpu_custom_call.1} parent=15 // pred_region
          %s645 = sand.u32 %s37, 1
          %s646 = scalar_lea.sflag [#allocation8], %s645
          %s647 = sand.u32 %s126, 1
          %s648 = smul.addr %s647, 4
          %s649 = scalar_lea.vmem [#allocation7], %s648
          %651 = vsyncadd %s646, 0
          %s652 = smul.addr %s44, 2
          %s653 = sadd.s32 %s45, %s652
          %s654 = smul.addr %s653, 4
          %s655 = scalar_lea.hbm %s2, %s654
          %s657 = sshll.u32 %s655, 4
          %s658 = int_to_ptr.hbm [resolvable:$true] %s657
          %s659 = sshll.u32 %s649, 4
          %s660 = int_to_ptr.vmem [resolvable:$true] %s659
          %662 = dma.hbm_to_vmem [thread:$0]  %s658, 64, %s660, %s646
        $region28: #{tpu_custom_call.1} parent=15 // pred_fallthru
          _
        // Predicated region
        $region29: #{tpu_custom_call.1} parent=15 // pred_check
          %p663 = pneg %p162
        $region30: #{tpu_custom_call.1} parent=15 // pred_check_branch
          %665 = sbr.rel (%p663) target = $region32
        $region31: #{tpu_custom_call.1} parent=15 // pred_region
          %p666 = scmp.lt.s32.totalorder %s44, 1
          %s667 = scalar_select %p666, %s44, 1
          %s668 = smul.addr %s667, 4
          %s669 = smul.addr %s668, 4
          %s670 = scalar_lea.vmem %s3, %s669
        $region32: #{tpu_custom_call.1} parent=15 // pred_fallthru
          _
        // Predicated region
        $region33: #{tpu_custom_call.1} parent=15 // pred_check
          %p671 = pneg %p188
        $region34: #{tpu_custom_call.1} parent=15 // pred_check_branch
          %673 = sbr.rel (%p671) target = $region36
        $region35: #{tpu_custom_call.1} parent=15 // pred_region
          %p674 = scmp.lt.s32.totalorder %s44, 1
          %s675 = scalar_select %p674, %s44, 1
          %s676 = smul.addr %s675, 4
          %s677 = smul.addr %s676, 4
          %s678 = scalar_lea.vmem %s4, %s677
        $region36: #{tpu_custom_call.1} parent=15 // pred_fallthru
          _
        // Predicated region
        $region37: #{tpu_custom_call.1} parent=15 // pred_check
          %p679 = pneg %p214
        $region38: #{tpu_custom_call.1} parent=15 // pred_check_branch
          %681 = sbr.rel (%p679) target = $region40
        $region39: #{tpu_custom_call.1} parent=15 // pred_region
          %p682 = scmp.lt.s32.totalorder %s44, 1
          %s683 = scalar_select %p682, %s44, 1
          %s684 = smul.addr %s683, 4
          %s685 = smul.addr %s684, 4
          %s686 = scalar_lea.vmem %s5, %s685
        $region40: #{tpu_custom_call.1} parent=15 // pred_fallthru
          _
        // Predicated region
        $region41: #{tpu_custom_call.1} parent=15 // pred_check
          %p687 = pneg %p240
        $region42: #{tpu_custom_call.1} parent=15 // pred_check_branch
          %689 = sbr.rel (%p687) target = $region44
        $region43: #{tpu_custom_call.1} parent=15 // pred_region
          %p690 = scmp.lt.s32.totalorder %s44, 1
          %s691 = scalar_select %p690, %s44, 1
          %s692 = scalar_lea.vmem %s6, %s691
        $region44: #{tpu_custom_call.1} parent=15 // pred_fallthru
          _
        // Predicated region
        $region45: #{tpu_custom_call.1} parent=15 // pred_check
          %p693 = pneg %p266
        $region46: #{tpu_custom_call.1} parent=15 // pred_check_branch
          %695 = sbr.rel (%p693) target = $region48
        $region47: #{tpu_custom_call.1} parent=15 // pred_region
          %p696 = scmp.lt.s32.totalorder %s44, 1
          %s697 = scalar_select %p696, %s44, 1
          %s698 = scalar_lea.vmem %s7, %s697
        $region48: #{tpu_custom_call.1} parent=15 // pred_fallthru
          _
        // Predicated region
        $region49: #{tpu_custom_call.1} parent=15 // pred_check
          %p699 = pneg %p292
        $region50: #{tpu_custom_call.1} parent=15 // pred_check_branch
          %701 = sbr.rel (%p699) target = $region52
        $region51: #{tpu_custom_call.1} parent=15 // pred_region
          %p702 = scmp.lt.s32.totalorder %s44, 1
          %s703 = scalar_select %p702, %s44, 1
          %s704 = scalar_lea.vmem %s8, %s703
        $region52: #{tpu_custom_call.1} parent=15 // pred_fallthru
          _
        // Predicated region
        $region53: #{tpu_custom_call.1} parent=15 // pred_check
          %p705 = pneg %p318
        $region54: #{tpu_custom_call.1} parent=15 // pred_check_branch
          %707 = sbr.rel (%p705) target = $region56
        $region55: #{tpu_custom_call.1} parent=15 // pred_region
          %p708 = scmp.lt.s32.totalorder %s44, 1
          %s709 = scalar_select %p708, %s44, 1
          %s710 = smul.addr %s709, 4
          %s711 = smul.addr %s710, 4
          %s712 = scalar_lea.vmem %s9, %s711
        $region56: #{tpu_custom_call.1} parent=15 // pred_fallthru
          _
        // Predicated region
        $region57: #{tpu_custom_call.1} parent=15 // pred_check
          %p713 = pneg %p344
        $region58: #{tpu_custom_call.1} parent=15 // pred_check_branch
          %715 = sbr.rel (%p713) target = $region60
        $region59: #{tpu_custom_call.1} parent=15 // pred_region
          %p716 = scmp.lt.s32.totalorder %s44, 1
          %s717 = scalar_select %p716, %s44, 1
          %s718 = scalar_lea.vmem %s10, %s717
        $region60: #{tpu_custom_call.1} parent=15 // pred_fallthru
          _
        // Predicated region
        $region61: #{tpu_custom_call.1} parent=15 // pred_check
          %p719 = pneg %p370
        $region62: #{tpu_custom_call.1} parent=15 // pred_check_branch
          %721 = sbr.rel (%p719) target = $region64
        $region63: #{tpu_custom_call.1} parent=15 // pred_region
          %s722 = sand.u32 %s37, 1
          %s723 = scalar_lea.sflag [#allocation8], %s722
          %s724 = sand.u32 %s360, 1
          %s725 = scalar_lea.vmem [#allocation9], %s724
          %727 = vsyncadd %s723, 0
          %s728 = scalar_lea.hbm %s11, %s44
          %s730 = sshll.u32 %s728, 4
          %s731 = int_to_ptr.hbm [resolvable:$true] %s730
          %s732 = sshll.u32 %s725, 4
          %s733 = int_to_ptr.vmem [resolvable:$true] %s732
          %735 = dma.hbm_to_vmem [thread:$0]  %s731, 16, %s733, %s723
        $region64: #{tpu_custom_call.1} parent=15 // pred_fallthru
          _
        // Predicated region
        $region65: #{tpu_custom_call.1} parent=15 // pred_check
          %p736 = pneg %p396
        $region66: #{tpu_custom_call.1} parent=15 // pred_check_branch
          %738 = sbr.rel (%p736) target = $region68
        $region67: #{tpu_custom_call.1} parent=15 // pred_region
          %p739 = scmp.lt.s32.totalorder %s44, 1
          %s740 = scalar_select %p739, %s44, 1
          %s741 = scalar_lea.vmem %s12, %s740
        $region68: #{tpu_custom_call.1} parent=15 // pred_fallthru
          _
        // Predicated region
        $region69: #{tpu_custom_call.1} parent=15 // pred_check
          %p742 = pneg %p422
        $region70: #{tpu_custom_call.1} parent=15 // pred_check_branch
          %744 = sbr.rel (%p742) target = $region72
        $region71: #{tpu_custom_call.1} parent=15 // pred_region
          %s745 = sand.u32 %s37, 1
          %s746 = scalar_lea.sflag [#allocation11], %s745
          %s747 = sand.u32 %s412, 1
          %s748 = smul.addr %s747, 16
          %s749 = scalar_lea.vmem [#allocation10], %s748
          %751 = vsyncadd %s746, 0
          %s752 = smul.addr %s44, 4
          %s753 = smul.addr %s752, 4
          %s754 = scalar_lea.hbm %s13, %s753
          %s755 = sshll.u32 %s754, 4
          %s756 = int_to_ptr.hbm [resolvable:$true] %s755
          %s757 = sshll.u32 %s749, 4
          %s758 = int_to_ptr.vmem [resolvable:$true] %s757
          %763 = dma.hbm_to_vmem [thread:$0]  %s756, 256, %s758, %s746, 64, 64, 4
        $region72: #{tpu_custom_call.1} parent=15 // pred_fallthru
          _
        // Predicated region
        $region73: #{tpu_custom_call.1} parent=15 // pred_check
          %p764 = pneg %p448
        $region74: #{tpu_custom_call.1} parent=15 // pred_check_branch
          %766 = sbr.rel (%p764) target = $region76
        $region75: #{tpu_custom_call.1} parent=15 // pred_region
          %p767 = scmp.lt.s32.totalorder %s44, 1
          %s768 = scalar_select %p767, %s44, 1
          %s769 = scalar_lea.vmem %s14, %s768
        $region76: #{tpu_custom_call.1} parent=15 // pred_fallthru
          _
        // Predicated region
        $region77: #{tpu_custom_call.1} parent=15 // pred_check
          %p770 = pneg %p474
        $region78: #{tpu_custom_call.1} parent=15 // pred_check_branch
          %772 = sbr.rel (%p770) target = $region80
        $region79: #{tpu_custom_call.1} parent=15 // pred_region
          %p773 = scmp.lt.s32.totalorder %s44, 1
          %s774 = scalar_select %p773, %s44, 1
          %s775 = smul.addr %s774, 16
          %s776 = smul.addr %s775, 4
          %s777 = scalar_lea.vmem %s15, %s776
        $region80: #{tpu_custom_call.1} parent=15 // pred_fallthru
          _
        // Predicated region
        $region81: #{tpu_custom_call.1} parent=15 // pred_check
          %p778 = pneg %p500
        $region82: #{tpu_custom_call.1} parent=15 // pred_check_branch
          %780 = sbr.rel (%p778) target = $region84
        $region83: #{tpu_custom_call.1} parent=15 // pred_region
          %p781 = scmp.lt.s32.totalorder %s44, 1
          %s782 = scalar_select %p781, %s44, 1
          %s783 = scalar_lea.vmem %s16, %s782
        $region84: #{tpu_custom_call.1} parent=15 // pred_fallthru
          _
        // Predicated region
        $region85: #{tpu_custom_call.1} parent=15 // pred_check
          %p784 = pneg %p526
        $region86: #{tpu_custom_call.1} parent=15 // pred_check_branch
          %786 = sbr.rel (%p784) target = $region88
        $region87: #{tpu_custom_call.1} parent=15 // pred_region
          %s787 = sand.u32 %s37, 1
          %s788 = scalar_lea.sflag [#allocation11], %s787
          %s789 = sand.u32 %s516, 1
          %s790 = scalar_lea.vmem [#allocation12], %s789
          %792 = vsyncadd %s788, 0
          %s793 = scalar_lea.hbm %s17, %s44
          %s795 = sshll.u32 %s793, 4
          %s796 = int_to_ptr.hbm [resolvable:$true] %s795
          %s797 = sshll.u32 %s790, 4
          %s798 = int_to_ptr.vmem [resolvable:$true] %s797
          %800 = dma.hbm_to_vmem [thread:$0]  %s796, 16, %s798, %s788
        $region88: #{tpu_custom_call.1} parent=15 // pred_fallthru
          _
        // Predicated region
        $region89: #{tpu_custom_call.1} parent=15 // pred_check
          %p801 = pneg %p552
        $region90: #{tpu_custom_call.1} parent=15 // pred_check_branch
          %803 = sbr.rel (%p801) target = $region92
        $region91: #{tpu_custom_call.1} parent=15 // pred_region
          %p804 = scmp.lt.s32.totalorder %s44, 1
          %s805 = scalar_select %p804, %s44, 1
          %s806 = scalar_lea.vmem %s18, %s805
        $region92: #{tpu_custom_call.1} parent=15 // pred_fallthru
          _
      $region16: #{tpu_custom_call.1} parent=5 // pred_fallthru
        _
      %p807 = scmp.le.s32.totalorder 1, %s37
      %p808 = scmp.lt.s32.totalorder %s37, 5
      %p809 = pnand %p807, %p808
      %p810 = pneg %p809
      // Predicated region
      $region93: #{tpu_custom_call.1} parent=5 // pred_check
        _
      $region94: #{tpu_custom_call.1} parent=5 // pred_check_branch
        %812 = sbr.rel (%p809) target = $region96
      $region95: #{tpu_custom_call.1} parent=5 // pred_region
        %s813 = ssub.s32 %s37, 1
        %s814 = sand.u32 %s101, 1
        %s815 = scalar_lea.sflag [#allocation5], %s814
        %s816 = sand.u32 %s101, 1
        %s817 = smul.addr %s816, 4
        %s818 = scalar_lea.vmem [#allocation4], %s817
        // Predicated region
        $region97: #{tpu_custom_call.1} parent=95 // pred_check
          %p819 = pneg %p114
        $region98: #{tpu_custom_call.1} parent=95 // pred_check_branch
          %821 = sbr.rel (%p819) target = $region100
        $region99: #{tpu_custom_call.1} parent=95 // pred_region
          %823 = dma.done %s815, 64
        $region100: #{tpu_custom_call.1} parent=95 // pred_fallthru
          _
        %s824 = sand.u32 %s42, 1
        %s825 = scalar_lea.sflag [#allocation8], %s824
        %s826 = sand.u32 %s129, 1
        %s827 = smul.addr %s826, 4
        %s828 = scalar_lea.vmem [#allocation7], %s827
        // Predicated region
        $region101: #{tpu_custom_call.1} parent=95 // pred_check
          %p829 = pneg %p142
        $region102: #{tpu_custom_call.1} parent=95 // pred_check_branch
          %831 = sbr.rel (%p829) target = $region104
        $region103: #{tpu_custom_call.1} parent=95 // pred_region
          %833 = dma.done %s825, 64
        $region104: #{tpu_custom_call.1} parent=95 // pred_fallthru
          _
        %s834 = sand.u32 %s42, 1
        %s835 = scalar_lea.sflag [#allocation8], %s834
        %s836 = sand.u32 %s363, 1
        %s837 = scalar_lea.vmem [#allocation9], %s836
        // Predicated region
        $region105: #{tpu_custom_call.1} parent=95 // pred_check
          %p838 = pneg %p376
        $region106: #{tpu_custom_call.1} parent=95 // pred_check_branch
          %840 = sbr.rel (%p838) target = $region108
        $region107: #{tpu_custom_call.1} parent=95 // pred_region
          %842 = dma.done %s835, 16
        $region108: #{tpu_custom_call.1} parent=95 // pred_fallthru
          _
        %s843 = sand.u32 %s42, 1
        %s844 = scalar_lea.sflag [#allocation11], %s843
        %s845 = sand.u32 %s415, 1
        %s846 = smul.addr %s845, 16
        %s847 = scalar_lea.vmem [#allocation10], %s846
        // Predicated region
        $region109: #{tpu_custom_call.1} parent=95 // pred_check
          %p848 = pneg %p428
        $region110: #{tpu_custom_call.1} parent=95 // pred_check_branch
          %850 = sbr.rel (%p848) target = $region112
        $region111: #{tpu_custom_call.1} parent=95 // pred_region
          %852 = dma.done %s844, 256
        $region112: #{tpu_custom_call.1} parent=95 // pred_fallthru
          _
        %s853 = sand.u32 %s42, 1
        %s854 = scalar_lea.sflag [#allocation11], %s853
        %s855 = sand.u32 %s519, 1
        %s856 = scalar_lea.vmem [#allocation12], %s855
        // Predicated region
        $region113: #{tpu_custom_call.1} parent=95 // pred_check
          %p857 = pneg %p532
        $region114: #{tpu_custom_call.1} parent=95 // pred_check_branch
          %859 = sbr.rel (%p857) target = $region116
        $region115: #{tpu_custom_call.1} parent=95 // pred_region
          %861 = dma.done %s854, 16
        $region116: #{tpu_custom_call.1} parent=95 // pred_fallthru
          _
        %p862 = scmp.lt.s32.totalorder %s47, 1
        %s863 = scalar_select %p862, %s47, 1
        %p864 = scmp.lt.s32.totalorder %s48, 1
        %s865 = scalar_select %p864, %s48, 1
        %p866 = scmp.lt.s32.totalorder %s49, 0
        %s867 = scalar_select %p866, %s49, 0
        %s868 = sadd.s32 %s867, %s865
        %s869 = smul.addr %s863, 2
        %s870 = sadd.s32 %s868, %s869
        %s871 = smul.addr %s870, 8
        %s872 = scalar_lea.vmem %s0, %s871
        %p873 = pneg %p86
        %p874 = pneg %p83
        %s875 = sand.u32 %s101, 1
        %s876 = scalar_lea.sflag [#allocation5], %s875
        %s877 = sand.u32 %s101, 1
        %s878 = smul.addr %s877, 4
        %s879 = scalar_lea.vmem [#allocation4], %s878
        %p880 = pneg %p114
        %p881 = pneg %p111
        %s882 = sand.u32 %s42, 1
        %s883 = scalar_lea.sflag [#allocation8], %s882
        %s884 = sand.u32 %s129, 1
        %s885 = smul.addr %s884, 4
        %s886 = scalar_lea.vmem [#allocation7], %s885
        %p887 = pneg %p142
        %p888 = pneg %p139
        %p889 = scmp.lt.s32.totalorder %s47, 1
        %s890 = scalar_select %p889, %s47, 1
        %s891 = smul.addr %s890, 4
        %s892 = smul.addr %s891, 4
        %s893 = scalar_lea.vmem %s3, %s892
        %p894 = pneg %p168
        %p895 = pneg %p165
        %p896 = scmp.lt.s32.totalorder %s47, 1
        %s897 = scalar_select %p896, %s47, 1
        %s898 = smul.addr %s897, 4
        %s899 = smul.addr %s898, 4
        %s900 = scalar_lea.vmem %s4, %s899
        %p901 = pneg %p194
        %p902 = pneg %p191
        %p903 = scmp.lt.s32.totalorder %s47, 1
        %s904 = scalar_select %p903, %s47, 1
        %s905 = smul.addr %s904, 4
        %s906 = smul.addr %s905, 4
        %s907 = scalar_lea.vmem %s5, %s906
        %p908 = pneg %p220
        %p909 = pneg %p217
        %p910 = scmp.lt.s32.totalorder %s47, 1
        %s911 = scalar_select %p910, %s47, 1
        %s912 = scalar_lea.vmem %s6, %s911
        %p913 = pneg %p246
        %p914 = pneg %p243
        %p915 = scmp.lt.s32.totalorder %s47, 1
        %s916 = scalar_select %p915, %s47, 1
        %s917 = scalar_lea.vmem %s7, %s916
        %p918 = pneg %p272
        %p919 = pneg %p269
        %p920 = scmp.lt.s32.totalorder %s47, 1
        %s921 = scalar_select %p920, %s47, 1
        %s922 = scalar_lea.vmem %s8, %s921
        %p923 = pneg %p298
        %p924 = pneg %p295
        %p925 = scmp.lt.s32.totalorder %s47, 1
        %s926 = scalar_select %p925, %s47, 1
        %s927 = smul.addr %s926, 4
        %s928 = smul.addr %s927, 4
        %s929 = scalar_lea.vmem %s9, %s928
        %p930 = pneg %p324
        %p931 = pneg %p321
        %p932 = scmp.lt.s32.totalorder %s47, 1
        %s933 = scalar_select %p932, %s47, 1
        %s934 = scalar_lea.vmem %s10, %s933
        %p935 = pneg %p350
        %p936 = pneg %p347
        %s937 = sand.u32 %s42, 1
        %s938 = scalar_lea.sflag [#allocation8], %s937
        %s939 = sand.u32 %s363, 1
        %s940 = scalar_lea.vmem [#allocation9], %s939
        %p941 = pneg %p376
        %p942 = pneg %p373
        %p943 = scmp.lt.s32.totalorder %s47, 1
        %s944 = scalar_select %p943, %s47, 1
        %s945 = scalar_lea.vmem %s12, %s944
        %p946 = pneg %p402
        %p947 = pneg %p399
        %s948 = sand.u32 %s42, 1
        %s949 = scalar_lea.sflag [#allocation11], %s948
        %s950 = sand.u32 %s415, 1
        %s951 = smul.addr %s950, 16
        %s952 = scalar_lea.vmem [#allocation10], %s951
        %p953 = pneg %p428
        %p954 = pneg %p425
        %p955 = scmp.lt.s32.totalorder %s47, 1
        %s956 = scalar_select %p955, %s47, 1
        %s957 = scalar_lea.vmem %s14, %s956
        %p958 = pneg %p454
        %p959 = pneg %p451
        %p960 = scmp.lt.s32.totalorder %s47, 1
        %s961 = scalar_select %p960, %s47, 1
        %s962 = smul.addr %s961, 16
        %s963 = smul.addr %s962, 4
        %s964 = scalar_lea.vmem %s15, %s963
        %p965 = pneg %p480
        %p966 = pneg %p477
        %p967 = scmp.lt.s32.totalorder %s47, 1
        %s968 = scalar_select %p967, %s47, 1
        %s969 = scalar_lea.vmem %s16, %s968
        %p970 = pneg %p506
        %p971 = pneg %p503
        %s972 = sand.u32 %s42, 1
        %s973 = scalar_lea.sflag [#allocation11], %s972
        %s974 = sand.u32 %s519, 1
        %s975 = scalar_lea.vmem [#allocation12], %s974
        %p976 = pneg %p532
        %p977 = pneg %p529
        %p978 = scmp.lt.s32.totalorder %s47, 1
        %s979 = scalar_select %p978, %s47, 1
        %s980 = scalar_lea.vmem %s18, %s979
        %p981 = pneg %p558
        %p982 = pneg %p555
        %p983 = pneg %p588
        %p984 = pneg %p585
        %s985 = sand.u32 %s575, 1
        %s986 = scalar_lea.sflag [#allocation6], %s985
        %s987 = sand.u32 %s575, 1
        %s988 = smul.addr %s987, 8
        %s989 = scalar_lea.vmem [#allocation13], %s988
        %p990 = scmp.lt.s32.totalorder %s47, 1
        %s991 = scalar_select %p990, %s47, 1
        %p992 = scmp.lt.s32.totalorder %s48, 1
        %s993 = scalar_select %p992, %s48, 1
        %p994 = scmp.lt.s32.totalorder %s49, 0
        %s995 = scalar_select %p994, %s49, 0
        %s996 = sadd.s32 %s995, %s993
        %s997 = smul.addr %s991, 2
        %s998 = sadd.s32 %s996, %s997
        %s999 = smul.addr %s998, 8
        %s1000 = scalar_lea.vmem %s0, %s999
        %p1001 = scmp.lt.s32.totalorder %s47, 1
        %s1002 = scalar_select %p1001, %s47, 1
        %s1003 = smul.addr %s1002, 4
        %s1004 = smul.addr %s1003, 4
        %s1005 = scalar_lea.vmem %s3, %s1004
        %p1006 = scmp.lt.s32.totalorder %s47, 1
        %s1007 = scalar_select %p1006, %s47, 1
        %s1008 = smul.addr %s1007, 4
        %s1009 = smul.addr %s1008, 4
        %s1010 = scalar_lea.vmem %s4, %s1009
        %p1011 = scmp.lt.s32.totalorder %s47, 1
        %s1012 = scalar_select %p1011, %s47, 1
        %s1013 = smul.addr %s1012, 4
        %s1014 = smul.addr %s1013, 4
        %s1015 = scalar_lea.vmem %s5, %s1014
        %p1016 = scmp.lt.s32.totalorder %s47, 1
        %s1017 = scalar_select %p1016, %s47, 1
        %s1018 = scalar_lea.vmem %s6, %s1017
        %p1019 = scmp.lt.s32.totalorder %s47, 1
        %s1020 = scalar_select %p1019, %s47, 1
        %s1021 = scalar_lea.vmem %s7, %s1020
        %p1022 = scmp.lt.s32.totalorder %s47, 1
        %s1023 = scalar_select %p1022, %s47, 1
        %s1024 = scalar_lea.vmem %s8, %s1023
        %p1025 = scmp.lt.s32.totalorder %s47, 1
        %s1026 = scalar_select %p1025, %s47, 1
        %s1027 = smul.addr %s1026, 4
        %s1028 = smul.addr %s1027, 4
        %s1029 = scalar_lea.vmem %s9, %s1028
        %p1030 = scmp.lt.s32.totalorder %s47, 1
        %s1031 = scalar_select %p1030, %s47, 1
        %s1032 = scalar_lea.vmem %s10, %s1031
        %p1033 = scmp.lt.s32.totalorder %s47, 1
        %s1034 = scalar_select %p1033, %s47, 1
        %s1035 = scalar_lea.vmem %s12, %s1034
        %p1036 = scmp.lt.s32.totalorder %s47, 1
        %s1037 = scalar_select %p1036, %s47, 1
        %s1038 = scalar_lea.vmem %s14, %s1037
        %p1039 = scmp.lt.s32.totalorder %s47, 1
        %s1040 = scalar_select %p1039, %s47, 1
        %s1041 = smul.addr %s1040, 16
        %s1042 = smul.addr %s1041, 4
        %s1043 = scalar_lea.vmem %s15, %s1042
        %p1044 = scmp.lt.s32.totalorder %s47, 1
        %s1045 = scalar_select %p1044, %s47, 1
        %s1046 = scalar_lea.vmem %s16, %s1045
        %p1047 = scmp.lt.s32.totalorder %s47, 1
        %s1048 = scalar_select %p1047, %s47, 1
        %s1049 = scalar_lea.vmem %s18, %s1048
        %p1051 = scmp.eq.s32.totalorder %s49, 0
        // Predicated region
        $region117: #{tpu_custom_call.1} parent=95 // pred_check
          %p1052 = pneg %p1051
        $region118: #{tpu_custom_call.1} parent=95 // pred_check_branch
          %1054 = sbr.rel (%p1052) target = $region120
        $region119: #{tpu_custom_call.1} parent=95 // pred_region
          %v1055 = vld [vmem:[%s818] sm:$0xf]
          %v1056 = vld [vmem:[%s1010] sm:$0xf]
          %v1057 = vld [vmem:[%s1010 + $0x4] sm:$0xf]
          %v1058 = vld [vmem:[%s1010 + $0x8] sm:$0xf]
          %v1059 = vld [vmem:[%s1010 + $0xc] sm:$0xf]
          %v1060 = vld [vmem:[%s1021] sm:$0x1]
          %v1062 = vperm.slane %v1060, 0
          %v1068 = vunpack.c.l.b16 %v1056
          %v1069 = vunpack.c.l.b16 %v1057
          %v1070 = vunpack.c.l.b16 %v1058
          %v1071 = vunpack.c.l.b16 %v1059
          %v1072 = vpack.c.b16 %v1069, %v1068
          %v1073 = vpack.c.b16 %v1071, %v1070
          %vm1076 = vcmask 261120
          %v1078 = vsel %vm1076, %v1055, 0
          %1080 = vmatpush.bf16.msra.mxu0 0
          %1081 = vmatpush.bf16.msra.mxu0 0
          %1082 = vmatpush.bf16.msra.mxu0 0
          %1083 = vmatpush.bf16.msra.mxu0 0
          %1084 = vmatpush.bf16.msra.mxu0 0
          %1085 = vmatpush.bf16.msra.mxu0 0
          %1086 = vmatpush.bf16.msra.mxu0 %v1073
          %1087 = vmatpush.bf16.msra.mxu0 %v1072
          %1088 = vmatmul.bf16.gmra.mxu0 %v1078
          %v1089 = vpop.f32.mrf.mxu0
          %v1090 = vadd.f32 %v1062, %v1089
          %v1091 = vpop.f32.mrf.mxu0
          %1092 = vdwg.mxu0
          %v1093 = vld [vmem:[%s828] sm:$0xf]
          %v1094 = vld [vmem:[%s1015] sm:$0xf]
          %v1095 = vld [vmem:[%s1015 + $0x4] sm:$0xf]
          %v1096 = vld [vmem:[%s1015 + $0x8] sm:$0xf]
          %v1097 = vld [vmem:[%s1015 + $0xc] sm:$0xf]
          %v1098 = vld [vmem:[%s1024] sm:$0x1]
          %v1100 = vperm.slane %v1098, 0
          %v1106 = vunpack.c.l.b16 %v1094
          %v1107 = vunpack.c.l.b16 %v1095
          %v1108 = vunpack.c.l.b16 %v1096
          %v1109 = vunpack.c.l.b16 %v1097
          %v1110 = vpack.c.b16 %v1107, %v1106
          %v1111 = vpack.c.b16 %v1109, %v1108
          %v1115 = vsel %vm1076, %v1093, 0
          %1117 = vmatpush.bf16.msra.mxu0 0
          %1118 = vmatpush.bf16.msra.mxu0 0
          %1119 = vmatpush.bf16.msra.mxu0 0
          %1120 = vmatpush.bf16.msra.mxu0 0
          %1121 = vmatpush.bf16.msra.mxu0 0
          %1122 = vmatpush.bf16.msra.mxu0 0
          %1123 = vmatpush.bf16.msra.mxu0 %v1111
          %1124 = vmatpush.bf16.msra.mxu0 %v1110
          %1125 = vmatmul.bf16.gmra.mxu0 %v1115
          %v1126 = vpop.f32.mrf.mxu0
          %v1127 = vadd.f32 %v1100, %v1126
          %v1128 = vpop.f32.mrf.mxu0
          %1129 = vdwg.mxu0
          %1131 = vrot.lane.b32.xlu0 %v1090, 120
          %v1132 = vpop.permute.xlu0 %1131
          %1134 = vrot.lane.b32.xlu0 %v1090, 112
          %v1135 = vpop.permute.xlu0 %1134
          %1137 = vrot.lane.b32.xlu0 %v1090, 104
          %v1138 = vpop.permute.xlu0 %1137
          %v1140 = vrot.slane %v1135, 4
          %vm1141 = vcmask 1047556
          %v1142 = vsel %vm1141, %v1140, %v1090
          %v1143 = vrot.slane %v1090, 4
          %v1144 = vsel %vm1141, %v1135, %v1143
          %v1146 = vunpack.c.l.s4 1983009808
          %v1147 = vunpack.c.0.s8 %v1146
          %v1148 = vperm.slane %v1142, %v1147
          %v1150 = vunpack.c.l.s4 1983009808
          %v1151 = vunpack.c.0.s8 %v1150
          %v1152 = vperm.slane %v1144, %v1151
          %v1153 = vrot.slane %v1138, 4
          %v1154 = vsel %vm1141, %v1153, %v1132
          %v1155 = vrot.slane %v1132, 4
          %v1156 = vsel %vm1141, %v1138, %v1155
          %v1158 = vunpack.c.l.s4 1983009808
          %v1159 = vunpack.c.0.s8 %v1158
          %v1160 = vperm.slane %v1154, %v1159
          %v1162 = vunpack.c.l.s4 1983009808
          %v1163 = vunpack.c.0.s8 %v1162
          %v1164 = vperm.slane %v1156, %v1163
          %v1165 = vrot.slane %v1160, 4
          %v1166 = vsel %vm1141, %v1165, %v1148
          %v1167 = vrot.slane %v1148, 4
          %v1168 = vsel %vm1141, %v1160, %v1167
          %v1170 = vunpack.c.l.s4 1934713408
          %v1171 = vunpack.c.0.s8 %v1170
          %v1172 = vperm.slane %v1166, %v1171
          %v1174 = vunpack.c.l.s4 1934713408
          %v1175 = vunpack.c.0.s8 %v1174
          %v1176 = vperm.slane %v1168, %v1175
          %v1177 = vrot.slane %v1164, 4
          %v1178 = vsel %vm1141, %v1177, %v1152
          %v1179 = vrot.slane %v1152, 4
          %v1180 = vsel %vm1141, %v1164, %v1179
          %v1182 = vunpack.c.l.s4 1934713408
          %v1183 = vunpack.c.0.s8 %v1182
          %v1184 = vperm.slane %v1178, %v1183
          %v1186 = vunpack.c.l.s4 1934713408
          %v1187 = vunpack.c.0.s8 %v1186
          %v1188 = vperm.slane %v1180, %v1187
          %v1189 = vrot.slane %v1172, 4
          %v1190 = vsel %vm1141, 0.0, %v1189
          %v1191 = vrot.slane %v1176, 4
          %v1192 = vsel %vm1141, 0.0, %v1191
          %v1193 = vrot.slane %v1184, 4
          %v1194 = vsel %vm1141, 0.0, %v1193
          %v1195 = vrot.slane %v1188, 4
          %v1196 = vsel %vm1141, 0.0, %v1195
          %v1197 = vsel %vm1141, %v1191, %v1172
          %v1199 = vunpack.c.l.s4 1983009808
          %v1200 = vunpack.c.0.s8 %v1199
          %v1201 = vperm.slane %v1197, %v1200
          %v1202 = vrot.slane %v1192, 4
          %v1203 = vsel %vm1141, %v1202, %v1190
          %v1205 = vunpack.c.l.s4 1983009808
          %v1206 = vunpack.c.0.s8 %v1205
          %v1207 = vperm.slane %v1203, %v1206
          %v1208 = vsel %vm1141, %v1195, %v1184
          %v1210 = vunpack.c.l.s4 1983009808
          %v1211 = vunpack.c.0.s8 %v1210
          %v1212 = vperm.slane %v1208, %v1211
          %v1213 = vrot.slane %v1196, 4
          %v1214 = vsel %vm1141, %v1213, %v1194
          %v1216 = vunpack.c.l.s4 1983009808
          %v1217 = vunpack.c.0.s8 %v1216
          %v1218 = vperm.slane %v1214, %v1217
          %v1219 = vrot.slane %v1207, 4
          %v1220 = vsel %vm1141, %v1219, %v1201
          %v1221 = vrot.slane %v1201, 4
          %v1222 = vsel %vm1141, %v1207, %v1221
          %v1224 = vunpack.c.l.s4 1934713408
          %v1225 = vunpack.c.0.s8 %v1224
          %v1226 = vperm.slane %v1220, %v1225
          %v1228 = vunpack.c.l.s4 1934713408
          %v1229 = vunpack.c.0.s8 %v1228
          %v1230 = vperm.slane %v1222, %v1229
          %v1231 = vrot.slane %v1218, 4
          %v1232 = vsel %vm1141, %v1231, %v1212
          %v1233 = vrot.slane %v1212, 4
          %v1234 = vsel %vm1141, %v1218, %v1233
          %v1236 = vunpack.c.l.s4 1934713408
          %v1237 = vunpack.c.0.s8 %v1236
          %v1238 = vperm.slane %v1232, %v1237
          %v1240 = vunpack.c.l.s4 1934713408
          %v1241 = vunpack.c.0.s8 %v1240
          %v1242 = vperm.slane %v1234, %v1241
          %v1243 = vrot.slane %v1238, 4
          %v1244 = vsel %vm1141, %v1243, %v1226
          %v1245 = vrot.slane %v1226, 4
          %v1246 = vsel %vm1141, %v1238, %v1245
          %v1247 = vrot.slane %v1242, 4
          %v1248 = vsel %vm1141, %v1247, %v1230
          %v1249 = vrot.slane %v1230, 4
          %v1250 = vsel %vm1141, %v1242, %v1249
          %v1251 = vpack.c.bf16 %v1244, %v1244
          %v1252 = vpack.c.bf16 %v1246, %v1246
          %v1253 = vpack.c.bf16 %v1248, %v1248
          %v1254 = vpack.c.bf16 %v1250, %v1250
          %vm1255 = vcmask 60416
          %1256 = vst.msk [vmem:[#allocation2] sm:$0xf] %vm1255, %v1251
          %1257 = vst.msk [vmem:[#allocation2 + $0x4] sm:$0xf] %vm1255, %v1252
          %1258 = vst.msk [vmem:[#allocation2 + $0x8] sm:$0xf] %vm1255, %v1253
          %1259 = vst.msk [vmem:[#allocation2 + $0xc] sm:$0xf] %vm1255, %v1254
          %1261 = vrot.lane.b32.xlu0 %v1127, 120
          %v1262 = vpop.permute.xlu0 %1261
          %1264 = vrot.lane.b32.xlu0 %v1127, 112
          %v1265 = vpop.permute.xlu0 %1264
          %1267 = vrot.lane.b32.xlu0 %v1127, 104
          %v1268 = vpop.permute.xlu0 %1267
          %v1270 = vrot.slane %v1265, 4
          %v1271 = vsel %vm1141, %v1270, %v1127
          %v1272 = vrot.slane %v1127, 4
          %v1273 = vsel %vm1141, %v1265, %v1272
          %v1275 = vunpack.c.l.s4 1983009808
          %v1276 = vunpack.c.0.s8 %v1275
          %v1277 = vperm.slane %v1271, %v1276
          %v1279 = vunpack.c.l.s4 1983009808
          %v1280 = vunpack.c.0.s8 %v1279
          %v1281 = vperm.slane %v1273, %v1280
          %v1282 = vrot.slane %v1268, 4
          %v1283 = vsel %vm1141, %v1282, %v1262
          %v1284 = vrot.slane %v1262, 4
          %v1285 = vsel %vm1141, %v1268, %v1284
          %v1287 = vunpack.c.l.s4 1983009808
          %v1288 = vunpack.c.0.s8 %v1287
          %v1289 = vperm.slane %v1283, %v1288
          %v1291 = vunpack.c.l.s4 1983009808
          %v1292 = vunpack.c.0.s8 %v1291
          %v1293 = vperm.slane %v1285, %v1292
          %v1294 = vrot.slane %v1289, 4
          %v1295 = vsel %vm1141, %v1294, %v1277
          %v1296 = vrot.slane %v1277, 4
          %v1297 = vsel %vm1141, %v1289, %v1296
          %v1299 = vunpack.c.l.s4 1934713408
          %v1300 = vunpack.c.0.s8 %v1299
          %v1301 = vperm.slane %v1295, %v1300
          %v1303 = vunpack.c.l.s4 1934713408
          %v1304 = vunpack.c.0.s8 %v1303
          %v1305 = vperm.slane %v1297, %v1304
          %v1306 = vrot.slane %v1293, 4
          %v1307 = vsel %vm1141, %v1306, %v1281
          %v1308 = vrot.slane %v1281, 4
          %v1309 = vsel %vm1141, %v1293, %v1308
          %v1311 = vunpack.c.l.s4 1934713408
          %v1312 = vunpack.c.0.s8 %v1311
          %v1313 = vperm.slane %v1307, %v1312
          %v1315 = vunpack.c.l.s4 1934713408
          %v1316 = vunpack.c.0.s8 %v1315
          %v1317 = vperm.slane %v1309, %v1316
          %v1318 = vrot.slane %v1301, 4
          %v1319 = vsel %vm1141, 0.0, %v1318
          %v1320 = vrot.slane %v1305, 4
          %v1321 = vsel %vm1141, 0.0, %v1320
          %v1322 = vrot.slane %v1313, 4
          %v1323 = vsel %vm1141, 0.0, %v1322
          %v1324 = vrot.slane %v1317, 4
          %v1325 = vsel %vm1141, 0.0, %v1324
          %v1326 = vsel %vm1141, %v1320, %v1301
          %v1328 = vunpack.c.l.s4 1983009808
          %v1329 = vunpack.c.0.s8 %v1328
          %v1330 = vperm.slane %v1326, %v1329
          %v1331 = vrot.slane %v1321, 4
          %v1332 = vsel %vm1141, %v1331, %v1319
          %v1334 = vunpack.c.l.s4 1983009808
          %v1335 = vunpack.c.0.s8 %v1334
          %v1336 = vperm.slane %v1332, %v1335
          %v1337 = vsel %vm1141, %v1324, %v1313
          %v1339 = vunpack.c.l.s4 1983009808
          %v1340 = vunpack.c.0.s8 %v1339
          %v1341 = vperm.slane %v1337, %v1340
          %v1342 = vrot.slane %v1325, 4
          %v1343 = vsel %vm1141, %v1342, %v1323
          %v1345 = vunpack.c.l.s4 1983009808
          %v1346 = vunpack.c.0.s8 %v1345
          %v1347 = vperm.slane %v1343, %v1346
          %v1348 = vrot.slane %v1336, 4
          %v1349 = vsel %vm1141, %v1348, %v1330
          %v1350 = vrot.slane %v1330, 4
          %v1351 = vsel %vm1141, %v1336, %v1350
          %v1353 = vunpack.c.l.s4 1934713408
          %v1354 = vunpack.c.0.s8 %v1353
          %v1355 = vperm.slane %v1349, %v1354
          %v1357 = vunpack.c.l.s4 1934713408
          %v1358 = vunpack.c.0.s8 %v1357
          %v1359 = vperm.slane %v1351, %v1358
          %v1360 = vrot.slane %v1347, 4
          %v1361 = vsel %vm1141, %v1360, %v1341
          %v1362 = vrot.slane %v1341, 4
          %v1363 = vsel %vm1141, %v1347, %v1362
          %v1365 = vunpack.c.l.s4 1934713408
          %v1366 = vunpack.c.0.s8 %v1365
          %v1367 = vperm.slane %v1361, %v1366
          %v1369 = vunpack.c.l.s4 1934713408
          %v1370 = vunpack.c.0.s8 %v1369
          %v1371 = vperm.slane %v1363, %v1370
          %v1372 = vrot.slane %v1367, 4
          %v1373 = vsel %vm1141, %v1372, %v1355
          %v1374 = vrot.slane %v1355, 4
          %v1375 = vsel %vm1141, %v1367, %v1374
          %v1376 = vrot.slane %v1371, 4
          %v1377 = vsel %vm1141, %v1376, %v1359
          %v1378 = vrot.slane %v1359, 4
          %v1379 = vsel %vm1141, %v1371, %v1378
          %v1380 = vpack.c.bf16 %v1373, %v1373
          %v1381 = vpack.c.bf16 %v1375, %v1375
          %v1382 = vpack.c.bf16 %v1377, %v1377
          %v1383 = vpack.c.bf16 %v1379, %v1379
          %1384 = vst.msk [vmem:[#allocation3] sm:$0xf] %vm1255, %v1380
          %1385 = vst.msk [vmem:[#allocation3 + $0x4] sm:$0xf] %vm1255, %v1381
          %1386 = vst.msk [vmem:[#allocation3 + $0x8] sm:$0xf] %vm1255, %v1382
          %1387 = vst.msk [vmem:[#allocation3 + $0xc] sm:$0xf] %vm1255, %v1383
        $region120: #{tpu_custom_call.1} parent=95 // pred_fallthru
          _
        %v1388 = vld [vmem:[%s1000] sm:$0xff]
        %v1389 = vpack.c.bf16 %v1388, %v1388
        %v1390 = vld [vmem:[%s1005] sm:$0xf]
        %v1391 = vld [vmem:[%s1005 + $0x4] sm:$0xf]
        %v1392 = vld [vmem:[%s1005 + $0x8] sm:$0xf]
        %v1393 = vld [vmem:[%s1005 + $0xc] sm:$0xf]
        %v1394 = vld [vmem:[%s1018] sm:$0x1]
        %v1396 = vperm.slane %v1394, 0
        %v1402 = vunpack.c.l.b16 %v1390
        %v1403 = vunpack.c.l.b16 %v1391
        %v1404 = vunpack.c.l.b16 %v1392
        %v1405 = vunpack.c.l.b16 %v1393
        %v1406 = vpack.c.b16 %v1403, %v1402
        %v1407 = vpack.c.b16 %v1405, %v1404
        %vm1410 = vcmask 261120
        %v1412 = vsel %vm1410, %v1389, 0
        %1414 = vmatpush.bf16.msra.mxu0 0
        %1415 = vmatpush.bf16.msra.mxu0 0
        %1416 = vmatpush.bf16.msra.mxu0 0
        %1417 = vmatpush.bf16.msra.mxu0 0
        %1418 = vmatpush.bf16.msra.mxu0 0
        %1419 = vmatpush.bf16.msra.mxu0 0
        %1420 = vmatpush.bf16.msra.mxu0 %v1407
        %1421 = vmatpush.bf16.msra.mxu0 %v1406
        %1422 = vmatmul.bf16.gmra.mxu0 %v1412
        %v1423 = vpop.f32.mrf.mxu0
        %v1424 = vadd.f32 %v1396, %v1423
        %v1425 = vpop.f32.mrf.mxu0
        %1426 = vdwg.mxu0
        %v1427 = vpack.c.bf16 %v1424, %v1424
        %1429 = vrot.lane.b32.xlu0 %v1427, 120
        %v1430 = vpop.permute.xlu0 %1429
        %1431 = vrot.lane.b32.xlu0 %v1427, 112
        %v1432 = vpop.permute.xlu0 %1431
        %1433 = vrot.lane.b32.xlu0 %v1427, 104
        %v1434 = vpop.permute.xlu0 %1433
        %v1437 = vpack.i.b16 %v1430, %v1427
        %v1438 = vshrl.u32 %v1427, 16
        %v1439 = vshrl.u32 %v1430, 16
        %v1440 = vpack.i.b16 %v1439, %v1438
        %v1443 = vpack.i.b16 %v1434, %v1432
        %v1444 = vshrl.u32 %v1432, 16
        %v1445 = vshrl.u32 %v1434, 16
        %v1446 = vpack.i.b16 %v1445, %v1444
        %v1449 = vunpack.c.l.s4 1983009808
        %v1450 = vunpack.c.0.s8 %v1449
        %v1451 = vperm.slane %v1437, %v1450
        %v1454 = vunpack.c.l.s4 1983009808
        %v1455 = vunpack.c.0.s8 %v1454
        %v1456 = vperm.slane %v1443, %v1455
        %v1457 = vrot.slane %v1456, 4
        %vm1458 = vcmask 1047556
        %v1459 = vsel %vm1458, %v1457, %v1451
        %v1460 = vrot.slane %v1451, 4
        %v1461 = vsel %vm1458, %v1456, %v1460
        %v1463 = vunpack.c.l.s4 1934713408
        %v1464 = vunpack.c.0.s8 %v1463
        %v1465 = vperm.slane %v1459, %v1464
        %v1467 = vunpack.c.l.s4 1934713408
        %v1468 = vunpack.c.0.s8 %v1467
        %v1469 = vperm.slane %v1461, %v1468
        %v1470 = vrot.slane %v1465, 4
        %v1471 = vsel %vm1458, 0, %v1470
        %v1472 = vrot.slane %v1469, 4
        %v1473 = vsel %vm1458, 0, %v1472
        %v1476 = vunpack.c.l.s4 1983009808
        %v1477 = vunpack.c.0.s8 %v1476
        %v1478 = vperm.slane %v1440, %v1477
        %v1481 = vunpack.c.l.s4 1983009808
        %v1482 = vunpack.c.0.s8 %v1481
        %v1483 = vperm.slane %v1446, %v1482
        %v1484 = vrot.slane %v1483, 4
        %v1485 = vsel %vm1458, %v1484, %v1478
        %v1486 = vrot.slane %v1478, 4
        %v1487 = vsel %vm1458, %v1483, %v1486
        %v1489 = vunpack.c.l.s4 1934713408
        %v1490 = vunpack.c.0.s8 %v1489
        %v1491 = vperm.slane %v1485, %v1490
        %v1493 = vunpack.c.l.s4 1934713408
        %v1494 = vunpack.c.0.s8 %v1493
        %v1495 = vperm.slane %v1487, %v1494
        %v1496 = vrot.slane %v1491, 4
        %v1497 = vsel %vm1458, 0, %v1496
        %v1498 = vrot.slane %v1495, 4
        %v1499 = vsel %vm1458, 0, %v1498
        %v1500 = vsel %vm1458, %v1472, %v1465
        %v1502 = vunpack.c.l.s4 1983009808
        %v1503 = vunpack.c.0.s8 %v1502
        %v1504 = vperm.slane %v1500, %v1503
        %v1505 = vrot.slane %v1473, 4
        %v1506 = vsel %vm1458, %v1505, %v1471
        %v1508 = vunpack.c.l.s4 1983009808
        %v1509 = vunpack.c.0.s8 %v1508
        %v1510 = vperm.slane %v1506, %v1509
        %v1511 = vrot.slane %v1510, 4
        %v1512 = vsel %vm1458, %v1511, %v1504
        %v1514 = vunpack.c.l.s4 1934713408
        %v1515 = vunpack.c.0.s8 %v1514
        %v1516 = vperm.slane %v1512, %v1515
        %v1517 = vrot.slane %v1516, 4
        %v1518 = vsel %vm1458, 0, %v1517
        %v1519 = vsel %vm1458, %v1498, %v1491
        %v1521 = vunpack.c.l.s4 1983009808
        %v1522 = vunpack.c.0.s8 %v1521
        %v1523 = vperm.slane %v1519, %v1522
        %v1524 = vrot.slane %v1499, 4
        %v1525 = vsel %vm1458, %v1524, %v1497
        %v1527 = vunpack.c.l.s4 1983009808
        %v1528 = vunpack.c.0.s8 %v1527
        %v1529 = vperm.slane %v1525, %v1528
        %v1530 = vrot.slane %v1529, 4
        %v1531 = vsel %vm1458, %v1530, %v1523
        %v1533 = vunpack.c.l.s4 1934713408
        %v1534 = vunpack.c.0.s8 %v1533
        %v1535 = vperm.slane %v1531, %v1534
        %v1536 = vrot.slane %v1535, 4
        %v1537 = vsel %vm1458, 0, %v1536
        %v1540 = vpack.i.b16 %v1535, %v1516
        %v1541 = vshrl.u32 %v1516, 16
        %v1542 = vshrl.u32 %v1535, 16
        %v1543 = vpack.i.b16 %v1542, %v1541
        %v1546 = vpack.i.b16 %v1537, %v1518
        %v1547 = vshrl.u32 %v1518, 16
        %v1548 = vshrl.u32 %v1537, 16
        %v1549 = vpack.i.b16 %v1548, %v1547
        %v1550 = vld [vmem:[#allocation2] sm:$0xf]
        %v1551 = vld [vmem:[#allocation2 + $0x4] sm:$0xf]
        %v1552 = vld [vmem:[#allocation2 + $0x8] sm:$0xf]
        %v1553 = vld [vmem:[#allocation2 + $0xc] sm:$0xf]
        %vm1554 = vcmask 64512
        %v1556 = vsel %vm1554, %v1540, 0
        %v1559 = vsel %vm1554, %v1550, 0
        %1561 = vmatpush.bf16.xpose.msra.mxu0 0
        %1562 = vmatpush.bf16.xpose.msra.mxu0 0
        %1563 = vmatpush.bf16.xpose.msra.mxu0 0
        %1564 = vmatpush.bf16.xpose.msra.mxu0 0
        %1565 = vmatpush.bf16.xpose.msra.mxu0 0
        %1566 = vmatpush.bf16.xpose.msra.mxu0 0
        %1567 = vmatpush.bf16.xpose.msra.mxu0 0
        %1568 = vmatpush.bf16.xpose.msra.mxu0 %v1559
        %1569 = vmatmul.bf16.gmra.mxu0 %v1556
        %v1570 = vpop.f32.mrf.mxu0
        %v1571 = vadd.f32 0.0, %v1570
        %v1572 = vpop.f32.mrf.mxu0
        %1573 = vdwg.mxu0
        %v1575 = vsel %vm1554, %v1543, 0
        %v1578 = vsel %vm1554, %v1551, 0
        %1580 = vmatpush.bf16.xpose.msra.mxu0 0
        %1581 = vmatpush.bf16.xpose.msra.mxu0 0
        %1582 = vmatpush.bf16.xpose.msra.mxu0 0
        %1583 = vmatpush.bf16.xpose.msra.mxu0 0
        %1584 = vmatpush.bf16.xpose.msra.mxu0 0
        %1585 = vmatpush.bf16.xpose.msra.mxu0 0
        %1586 = vmatpush.bf16.xpose.msra.mxu0 0
        %1587 = vmatpush.bf16.xpose.msra.mxu0 %v1578
        %1588 = vmatmul.bf16.gmra.mxu0 %v1575
        %v1589 = vpop.f32.mrf.mxu0
        %v1590 = vadd.f32 0.0, %v1589
        %v1591 = vpop.f32.mrf.mxu0
        %1592 = vdwg.mxu0
        %v1594 = vsel %vm1554, %v1546, 0
        %v1597 = vsel %vm1554, %v1552, 0
        %1599 = vmatpush.bf16.xpose.msra.mxu0 0
        %1600 = vmatpush.bf16.xpose.msra.mxu0 0
        %1601 = vmatpush.bf16.xpose.msra.mxu0 0
        %1602 = vmatpush.bf16.xpose.msra.mxu0 0
        %1603 = vmatpush.bf16.xpose.msra.mxu0 0
        %1604 = vmatpush.bf16.xpose.msra.mxu0 0
        %1605 = vmatpush.bf16.xpose.msra.mxu0 0
        %1606 = vmatpush.bf16.xpose.msra.mxu0 %v1597
        %1607 = vmatmul.bf16.gmra.mxu0 %v1594
        %v1608 = vpop.f32.mrf.mxu0
        %v1609 = vadd.f32 0.0, %v1608
        %v1610 = vpop.f32.mrf.mxu0
        %1611 = vdwg.mxu0
        %v1613 = vsel %vm1554, %v1549, 0
        %v1616 = vsel %vm1554, %v1553, 0
        %1618 = vmatpush.bf16.xpose.msra.mxu0 0
        %1619 = vmatpush.bf16.xpose.msra.mxu0 0
        %1620 = vmatpush.bf16.xpose.msra.mxu0 0
        %1621 = vmatpush.bf16.xpose.msra.mxu0 0
        %1622 = vmatpush.bf16.xpose.msra.mxu0 0
        %1623 = vmatpush.bf16.xpose.msra.mxu0 0
        %1624 = vmatpush.bf16.xpose.msra.mxu0 0
        %1625 = vmatpush.bf16.xpose.msra.mxu0 %v1616
        %1626 = vmatmul.bf16.gmra.mxu0 %v1613
        %v1627 = vpop.f32.mrf.mxu0
        %v1628 = vadd.f32 0.0, %v1627
        %v1629 = vpop.f32.mrf.mxu0
        %1630 = vdwg.mxu0
        %v1631 = vsel %vm1554, %v1571, -inf
        %1632 = vmax.xlane.f32.xlu0 %v1631
        %v1633 = vpop.xlane.xlu0 %1632
        %v1634 = vsel %vm1554, %v1590, -inf
        %1635 = vmax.xlane.f32.xlu0 %v1634
        %v1636 = vpop.xlane.xlu0 %1635
        %v1637 = vsel %vm1554, %v1609, -inf
        %1638 = vmax.xlane.f32.xlu0 %v1637
        %v1639 = vpop.xlane.xlu0 %1638
        %v1640 = vsel %vm1554, %v1628, -inf
        %1641 = vmax.xlane.f32.xlu0 %v1640
        %v1642 = vpop.xlane.xlu0 %1641
        %v1643 = vsub.f32 %v1571, %v1633
        %v1644 = vsub.f32 %v1590, %v1636
        %v1645 = vsub.f32 %v1609, %v1639
        %v1646 = vsub.f32 %v1628, %v1642
        %v1647 = vmul.f32 %v1643, 1.442695
        %v1648 = vpow.pop %v1647
        %v1649 = vmul.f32 %v1644, 1.442695
        %v1650 = vpow.pop %v1649
        %v1651 = vmul.f32 %v1645, 1.442695
        %v1652 = vpow.pop %v1651
        %v1653 = vmul.f32 %v1646, 1.442695
        %v1654 = vpow.pop %v1653
        %v1655 = vsel %vm1554, %v1648, 0.0
        %1656 = vadd.xlane.f32.xlu0 %v1655
        %v1657 = vpop.xlane.xlu0 %1656
        %v1658 = vsel %vm1554, %v1650, 0.0
        %1659 = vadd.xlane.f32.xlu0 %v1658
        %v1660 = vpop.xlane.xlu0 %1659
        %v1661 = vsel %vm1554, %v1652, 0.0
        %1662 = vadd.xlane.f32.xlu0 %v1661
        %v1663 = vpop.xlane.xlu0 %1662
        %v1664 = vsel %vm1554, %v1654, 0.0
        %1665 = vadd.xlane.f32.xlu0 %v1664
        %v1666 = vpop.xlane.xlu0 %1665
        %v1667 = vrcp.pop %v1657
        %v1668 = vrcp.pop %v1660
        %v1669 = vrcp.pop %v1663
        %v1670 = vrcp.pop %v1666
        %v1671 = vmul.f32 %v1648, %v1667
        %v1672 = vmul.f32 %v1650, %v1668
        %v1673 = vmul.f32 %v1652, %v1669
        %v1674 = vmul.f32 %v1654, %v1670
        %v1675 = vpack.c.bf16 %v1671, %v1671
        %v1676 = vpack.c.bf16 %v1672, %v1672
        %v1677 = vpack.c.bf16 %v1673, %v1673
        %v1678 = vpack.c.bf16 %v1674, %v1674
        %v1679 = vld [vmem:[#allocation3] sm:$0xf]
        %v1680 = vld [vmem:[#allocation3 + $0x4] sm:$0xf]
        %v1681 = vld [vmem:[#allocation3 + $0x8] sm:$0xf]
        %v1682 = vld [vmem:[#allocation3 + $0xc] sm:$0xf]
        %v1684 = vsel %vm1554, %v1675, 0
        %vm1686 = vcmask 1043456
        %v1688 = vsel %vm1686, %v1679, 0
        %1690 = vmatpush.bf16.msra.mxu0 0
        %1691 = vmatpush.bf16.msra.mxu0 0
        %1692 = vmatpush.bf16.msra.mxu0 0
        %1693 = vmatpush.bf16.msra.mxu0 0
        %1694 = vmatpush.bf16.msra.mxu0 0
        %1695 = vmatpush.bf16.msra.mxu0 0
        %1696 = vmatpush.bf16.msra.mxu0 0
        %1697 = vmatpush.bf16.msra.mxu0 %v1688
        %1698 = vmatmul.bf16.gmra.mxu0 %v1684
        %v1699 = vpop.f32.mrf.mxu0
        %v1700 = vadd.f32 0.0, %v1699
        %v1701 = vpop.f32.mrf.mxu0
        %1702 = vdwg.mxu0
        %v1704 = vsel %vm1554, %v1676, 0
        %v1707 = vsel %vm1686, %v1680, 0
        %1709 = vmatpush.bf16.msra.mxu0 0
        %1710 = vmatpush.bf16.msra.mxu0 0
        %1711 = vmatpush.bf16.msra.mxu0 0
        %1712 = vmatpush.bf16.msra.mxu0 0
        %1713 = vmatpush.bf16.msra.mxu0 0
        %1714 = vmatpush.bf16.msra.mxu0 0
        %1715 = vmatpush.bf16.msra.mxu0 0
        %1716 = vmatpush.bf16.msra.mxu0 %v1707
        %1717 = vmatmul.bf16.gmra.mxu0 %v1704
        %v1718 = vpop.f32.mrf.mxu0
        %v1719 = vadd.f32 0.0, %v1718
        %v1720 = vpop.f32.mrf.mxu0
        %1721 = vdwg.mxu0
        %v1723 = vsel %vm1554, %v1677, 0
        %v1726 = vsel %vm1686, %v1681, 0
        %1728 = vmatpush.bf16.msra.mxu0 0
        %1729 = vmatpush.bf16.msra.mxu0 0
        %1730 = vmatpush.bf16.msra.mxu0 0
        %1731 = vmatpush.bf16.msra.mxu0 0
        %1732 = vmatpush.bf16.msra.mxu0 0
        %1733 = vmatpush.bf16.msra.mxu0 0
        %1734 = vmatpush.bf16.msra.mxu0 0
        %1735 = vmatpush.bf16.msra.mxu0 %v1726
        %1736 = vmatmul.bf16.gmra.mxu0 %v1723
        %v1737 = vpop.f32.mrf.mxu0
        %v1738 = vadd.f32 0.0, %v1737
        %v1739 = vpop.f32.mrf.mxu0
        %1740 = vdwg.mxu0
        %v1742 = vsel %vm1554, %v1678, 0
        %v1745 = vsel %vm1686, %v1682, 0
        %1747 = vmatpush.bf16.msra.mxu0 0
        %1748 = vmatpush.bf16.msra.mxu0 0
        %1749 = vmatpush.bf16.msra.mxu0 0
        %1750 = vmatpush.bf16.msra.mxu0 0
        %1751 = vmatpush.bf16.msra.mxu0 0
        %1752 = vmatpush.bf16.msra.mxu0 0
        %1753 = vmatpush.bf16.msra.mxu0 0
        %1754 = vmatpush.bf16.msra.mxu0 %v1745
        %1755 = vmatmul.bf16.gmra.mxu0 %v1742
        %v1756 = vpop.f32.mrf.mxu0
        %v1757 = vadd.f32 0.0, %v1756
        %v1758 = vpop.f32.mrf.mxu0
        %1759 = vdwg.mxu0
        %v1760 = vrot.slane %v1738, 4
        %vm1761 = vcmask 1047556
        %v1762 = vsel %vm1761, %v1760, %v1700
        %v1763 = vrot.slane %v1700, 4
        %v1764 = vsel %vm1761, %v1738, %v1763
        %v1766 = vunpack.c.l.s4 1983009808
        %v1767 = vunpack.c.0.s8 %v1766
        %v1768 = vperm.slane %v1762, %v1767
        %v1770 = vunpack.c.l.s4 1983009808
        %v1771 = vunpack.c.0.s8 %v1770
        %v1772 = vperm.slane %v1764, %v1771
        %v1773 = vrot.slane %v1757, 4
        %v1774 = vsel %vm1761, %v1773, %v1719
        %v1775 = vrot.slane %v1719, 4
        %v1776 = vsel %vm1761, %v1757, %v1775
        %v1778 = vunpack.c.l.s4 1983009808
        %v1779 = vunpack.c.0.s8 %v1778
        %v1780 = vperm.slane %v1774, %v1779
        %v1782 = vunpack.c.l.s4 1983009808
        %v1783 = vunpack.c.0.s8 %v1782
        %v1784 = vperm.slane %v1776, %v1783
        %v1785 = vrot.slane %v1780, 4
        %v1786 = vsel %vm1761, %v1785, %v1768
        %v1787 = vrot.slane %v1768, 4
        %v1788 = vsel %vm1761, %v1780, %v1787
        %v1790 = vunpack.c.l.s4 1934713408
        %v1791 = vunpack.c.0.s8 %v1790
        %v1792 = vperm.slane %v1786, %v1791
        %v1794 = vunpack.c.l.s4 1934713408
        %v1795 = vunpack.c.0.s8 %v1794
        %v1796 = vperm.slane %v1788, %v1795
        %v1797 = vrot.slane %v1784, 4
        %v1798 = vsel %vm1761, %v1797, %v1772
        %v1799 = vrot.slane %v1772, 4
        %v1800 = vsel %vm1761, %v1784, %v1799
        %v1802 = vunpack.c.l.s4 1934713408
        %v1803 = vunpack.c.0.s8 %v1802
        %v1804 = vperm.slane %v1798, %v1803
        %v1806 = vunpack.c.l.s4 1934713408
        %v1807 = vunpack.c.0.s8 %v1806
        %v1808 = vperm.slane %v1800, %v1807
        %v1809 = vrot.slane %v1792, 4
        %v1810 = vsel %vm1761, 0.0, %v1809
        %v1811 = vrot.slane %v1796, 4
        %v1812 = vsel %vm1761, 0.0, %v1811
        %v1813 = vrot.slane %v1804, 4
        %v1814 = vsel %vm1761, 0.0, %v1813
        %v1815 = vrot.slane %v1808, 4
        %v1816 = vsel %vm1761, 0.0, %v1815
        %v1817 = vsel %vm1761, %v1811, %v1792
        %v1819 = vunpack.c.l.s4 1983009808
        %v1820 = vunpack.c.0.s8 %v1819
        %v1821 = vperm.slane %v1817, %v1820
        %v1822 = vrot.slane %v1812, 4
        %v1823 = vsel %vm1761, %v1822, %v1810
        %v1825 = vunpack.c.l.s4 1983009808
        %v1826 = vunpack.c.0.s8 %v1825
        %v1827 = vperm.slane %v1823, %v1826
        %v1828 = vsel %vm1761, %v1815, %v1804
        %v1830 = vunpack.c.l.s4 1983009808
        %v1831 = vunpack.c.0.s8 %v1830
        %v1832 = vperm.slane %v1828, %v1831
        %v1833 = vrot.slane %v1816, 4
        %v1834 = vsel %vm1761, %v1833, %v1814
        %v1836 = vunpack.c.l.s4 1983009808
        %v1837 = vunpack.c.0.s8 %v1836
        %v1838 = vperm.slane %v1834, %v1837
        %v1839 = vrot.slane %v1827, 4
        %v1840 = vsel %vm1761, %v1839, %v1821
        %v1841 = vrot.slane %v1821, 4
        %v1842 = vsel %vm1761, %v1827, %v1841
        %v1844 = vunpack.c.l.s4 1934713408
        %v1845 = vunpack.c.0.s8 %v1844
        %v1846 = vperm.slane %v1840, %v1845
        %v1848 = vunpack.c.l.s4 1934713408
        %v1849 = vunpack.c.0.s8 %v1848
        %v1850 = vperm.slane %v1842, %v1849
        %v1851 = vrot.slane %v1838, 4
        %v1852 = vsel %vm1761, %v1851, %v1832
        %v1853 = vrot.slane %v1832, 4
        %v1854 = vsel %vm1761, %v1838, %v1853
        %v1856 = vunpack.c.l.s4 1934713408
        %v1857 = vunpack.c.0.s8 %v1856
        %v1858 = vperm.slane %v1852, %v1857
        %v1860 = vunpack.c.l.s4 1934713408
        %v1861 = vunpack.c.0.s8 %v1860
        %v1862 = vperm.slane %v1854, %v1861
        %v1863 = vrot.slane %v1858, 4
        %v1864 = vsel %vm1761, %v1863, %v1846
        %v1865 = vrot.slane %v1846, 4
        %v1866 = vsel %vm1761, %v1858, %v1865
        %v1867 = vrot.slane %v1862, 4
        %v1868 = vsel %vm1761, %v1867, %v1850
        %v1869 = vrot.slane %v1850, 4
        %v1870 = vsel %vm1761, %v1862, %v1869
        %1872 = vrot.lane.b32.xlu0 %v1866, 8
        %v1873 = vpop.permute.xlu0 %1872
        %1876 = vrot.lane.b32.xlu0 %v1868, 16
        %v1877 = vpop.permute.xlu0 %1876
        %1880 = vrot.lane.b32.xlu0 %v1870, 24
        %v1881 = vpop.permute.xlu0 %1880
        %v1883 = vsel %vm1554, %v1864, %v1873
        %vm1884 = vcmask 130048
        %v1885 = vsel %vm1884, %v1883, %v1877
        %vm1886 = vcmask 195584
        %v1887 = vsel %vm1886, %v1885, %v1881
        %v1888 = vpack.c.bf16 %v1887, %v1887
        %v1889 = vld [vmem:[%s1029] sm:$0xf]
        %v1890 = vld [vmem:[%s1029 + $0x4] sm:$0xf]
        %v1891 = vld [vmem:[%s1029 + $0x8] sm:$0xf]
        %v1892 = vld [vmem:[%s1029 + $0xc] sm:$0xf]
        %v1893 = vld [vmem:[%s1032] sm:$0x1]
        %v1895 = vperm.slane %v1893, 0
        %v1901 = vunpack.c.l.b16 %v1889
        %v1902 = vunpack.c.l.b16 %v1890
        %v1903 = vunpack.c.l.b16 %v1891
        %v1904 = vunpack.c.l.b16 %v1892
        %v1905 = vpack.c.b16 %v1902, %v1901
        %v1906 = vpack.c.b16 %v1904, %v1903
        %v1910 = vsel %vm1410, %v1888, 0
        %1912 = vmatpush.bf16.msra.mxu0 0
        %1913 = vmatpush.bf16.msra.mxu0 0
        %1914 = vmatpush.bf16.msra.mxu0 0
        %1915 = vmatpush.bf16.msra.mxu0 0
        %1916 = vmatpush.bf16.msra.mxu0 0
        %1917 = vmatpush.bf16.msra.mxu0 0
        %1918 = vmatpush.bf16.msra.mxu0 %v1906
        %1919 = vmatpush.bf16.msra.mxu0 %v1905
        %1920 = vmatmul.bf16.gmra.mxu0 %v1910
        %v1921 = vpop.f32.mrf.mxu0
        %v1922 = vadd.f32 %v1895, %v1921
        %v1923 = vpop.f32.mrf.mxu0
        %1924 = vdwg.mxu0
        %v1925 = vadd.f32 %v1922, %v1388
        %v1926 = vld [vmem:[%s837] sm:$0x1]
        %v1927 = vld [vmem:[%s1035] sm:$0x1]
        %v1928 = vsel %vm1410, %v1925, 0.0
        %1929 = vadd.xlane.f32.xlu0 %v1928
        %v1930 = vpop.xlane.xlu0 %1929
        %v1931 = vrcp.pop 32.0
        %v1932 = vmul.f32 32.0, %v1931
        %v1933 = vsub.f32 1.0, %v1932
        %v1934 = vmul.f32 %v1931, %v1933
        %v1935 = vadd.f32 %v1931, %v1934
        %vm1936 = vweird.f32 %v1931
        %v1937 = vsel %vm1936, %v1931, %v1935
        %v1938 = vmul.f32 %v1930, %v1937
        %v1939 = vsub.f32 %v1925, %v1938
        %v1940 = vmul.f32 %v1939, %v1939
        %v1941 = vsel %vm1410, %v1940, 0.0
        %1942 = vadd.xlane.f32.xlu0 %v1941
        %v1943 = vpop.xlane.xlu0 %1942
        %v1944 = vmul.f32 %v1943, %v1937
        %v1945 = vadd.f32 %v1944, 1e-05
        %v1946 = vrsqrt.pop %v1945
        %v1947 = vmul.f32 %v1946, %v1945
        %v1948 = vmul.f32 %v1947, %v1946
        %v1949 = vmul.f32 0.5, %v1948
        %v1950 = vsub.f32 1.5, %v1949
        %v1951 = vmul.f32 %v1946, %v1950
        %vm1952 = vweird.f32 %v1945
        %vm1953 = vweird.f32 %v1946
        %vm1954 = vmor %vm1952, %vm1953
        %v1955 = vsel %vm1954, %v1946, %v1951
        %v1956 = vmul.f32 %v1939, %v1955
        %v1958 = vperm.slane %v1926, 0
        %v1960 = vmul.f32 %v1956, %v1958
        %v1962 = vperm.slane %v1927, 0
        %v1964 = vadd.f32 %v1960, %v1962
        %v1965 = vpack.c.bf16 %v1964, %v1964
        %v1966 = vld [vmem:[%s847] sm:$0xf]
        %v1967 = vld [vmem:[%s847 + $0x4] sm:$0xf]
        %v1968 = vld [vmem:[%s847 + $0x8] sm:$0xf]
        %v1969 = vld [vmem:[%s847 + $0xc] sm:$0xf]
        %v1970 = vld [vmem:[%s1038] sm:$0x1]
        %v1972 = vperm.slane %v1970, 0
        %v1978 = vunpack.c.l.b16 %v1966
        %v1979 = vunpack.c.l.b16 %v1967
        %v1980 = vunpack.c.l.b16 %v1968
        %v1981 = vunpack.c.l.b16 %v1969
        %v1982 = vpack.c.b16 %v1979, %v1978
        %v1983 = vpack.c.b16 %v1981, %v1980
        %v1987 = vsel %vm1410, %v1965, 0
        %1989 = vmatpush.bf16.msra.mxu0 0
        %1990 = vmatpush.bf16.msra.mxu0 0
        %1991 = vmatpush.bf16.msra.mxu0 0
        %1992 = vmatpush.bf16.msra.mxu0 0
        %1993 = vmatpush.bf16.msra.mxu0 0
        %1994 = vmatpush.bf16.msra.mxu0 0
        %1995 = vmatpush.bf16.msra.mxu0 %v1983
        %1996 = vmatpush.bf16.msra.mxu0 %v1982
        %1997 = vmatmul.bf16.gmra.mxu0 %v1987
        %v1998 = vpop.f32.mrf.mxu0
        %v1999 = vadd.f32 %v1972, %v1998
        %v2000 = vpop.f32.mrf.mxu0
        %2001 = vdwg.mxu0
        %v2002 = vmax.f32 %v1999, 0.0
        %v2003 = vpack.c.bf16 %v2002, %v2002
        %v2004 = vld [vmem:[%s1043] sm:$0xf]
        %v2005 = vld [vmem:[%s1043 + $0x4] sm:$0xf]
        %v2006 = vld [vmem:[%s1043 + $0x8] sm:$0xf]
        %v2007 = vld [vmem:[%s1043 + $0xc] sm:$0xf]
        %v2008 = vld [vmem:[%s1043 + $0x10] sm:$0xf]
        %v2009 = vld [vmem:[%s1043 + $0x14] sm:$0xf]
        %v2010 = vld [vmem:[%s1043 + $0x18] sm:$0xf]
        %v2011 = vld [vmem:[%s1043 + $0x1c] sm:$0xf]
        %v2012 = vld [vmem:[%s1043 + $0x20] sm:$0xf]
        %v2013 = vld [vmem:[%s1043 + $0x24] sm:$0xf]
        %v2014 = vld [vmem:[%s1043 + $0x28] sm:$0xf]
        %v2015 = vld [vmem:[%s1043 + $0x2c] sm:$0xf]
        %v2016 = vld [vmem:[%s1043 + $0x30] sm:$0xf]
        %v2017 = vld [vmem:[%s1043 + $0x34] sm:$0xf]
        %v2018 = vld [vmem:[%s1043 + $0x38] sm:$0xf]
        %v2019 = vld [vmem:[%s1043 + $0x3c] sm:$0xf]
        %v2020 = vld [vmem:[%s1046] sm:$0x1]
        %v2022 = vperm.slane %v2020, 0
        %v2040 = vunpack.c.l.b16 %v2004
        %v2041 = vunpack.c.l.b16 %v2005
        %v2042 = vunpack.c.l.b16 %v2006
        %v2043 = vunpack.c.l.b16 %v2007
        %v2044 = vunpack.c.l.b16 %v2008
        %v2045 = vunpack.c.l.b16 %v2009
        %v2046 = vunpack.c.l.b16 %v2010
        %v2047 = vunpack.c.l.b16 %v2011
        %v2048 = vunpack.c.l.b16 %v2012
        %v2049 = vunpack.c.l.b16 %v2013
        %v2050 = vunpack.c.l.b16 %v2014
        %v2051 = vunpack.c.l.b16 %v2015
        %v2052 = vunpack.c.l.b16 %v2016
        %v2053 = vunpack.c.l.b16 %v2017
        %v2054 = vunpack.c.l.b16 %v2018
        %v2055 = vunpack.c.l.b16 %v2019
        %v2056 = vpack.c.b16 %v2041, %v2040
        %v2057 = vpack.c.b16 %v2043, %v2042
        %v2058 = vpack.c.b16 %v2045, %v2044
        %v2059 = vpack.c.b16 %v2047, %v2046
        %v2060 = vpack.c.b16 %v2049, %v2048
        %v2061 = vpack.c.b16 %v2051, %v2050
        %v2062 = vpack.c.b16 %v2053, %v2052
        %v2063 = vpack.c.b16 %v2055, %v2054
        %2072 = vmatpush.bf16.msra.mxu0 %v2063
        %2073 = vmatpush.bf16.msra.mxu0 %v2062
        %2074 = vmatpush.bf16.msra.mxu0 %v2061
        %2075 = vmatpush.bf16.msra.mxu0 %v2060
        %2076 = vmatpush.bf16.msra.mxu0 %v2059
        %2077 = vmatpush.bf16.msra.mxu0 %v2058
        %2078 = vmatpush.bf16.msra.mxu0 %v2057
        %2079 = vmatpush.bf16.msra.mxu0 %v2056
        %2080 = vmatmul.bf16.gmra.mxu0 %v2003
        %v2081 = vpop.f32.mrf.mxu0
        %v2082 = vadd.f32 %v2022, %v2081
        %v2083 = vpop.f32.mrf.mxu0
        %2084 = vdwg.mxu0
        %v2085 = vadd.f32 %v1964, %v2082
        %v2086 = vld [vmem:[%s856] sm:$0x1]
        %v2087 = vld [vmem:[%s1049] sm:$0x1]
        %v2088 = vsel %vm1410, %v2085, 0.0
        %2089 = vadd.xlane.f32.xlu0 %v2088
        %v2090 = vpop.xlane.xlu0 %2089
        %v2091 = vmul.f32 %v2090, %v1937
        %v2092 = vsub.f32 %v2085, %v2091
        %v2093 = vmul.f32 %v2092, %v2092
        %v2094 = vsel %vm1410, %v2093, 0.0
        %2095 = vadd.xlane.f32.xlu0 %v2094
        %v2096 = vpop.xlane.xlu0 %2095
        %v2097 = vmul.f32 %v2096, %v1937
        %v2098 = vadd.f32 %v2097, 1e-05
        %v2099 = vrsqrt.pop %v2098
        %v2100 = vmul.f32 %v2099, %v2098
        %v2101 = vmul.f32 %v2100, %v2099
        %v2102 = vmul.f32 0.5, %v2101
        %v2103 = vsub.f32 1.5, %v2102
        %v2104 = vmul.f32 %v2099, %v2103
        %vm2105 = vweird.f32 %v2098
        %vm2106 = vweird.f32 %v2099
        %vm2107 = vmor %vm2105, %vm2106
        %v2108 = vsel %vm2107, %v2099, %v2104
        %v2109 = vmul.f32 %v2092, %v2108
        %v2111 = vperm.slane %v2086, 0
        %v2113 = vmul.f32 %v2109, %v2111
        %v2115 = vperm.slane %v2087, 0
        %v2117 = vadd.f32 %v2113, %v2115
        %2118 = vst.msk [vmem:[%s989] sm:$0xff] %vm1410, %v2117
        %s2119 = sand.u32 %s575, 1
        %s2120 = scalar_lea.sflag [#allocation6], %s2119
        %s2121 = sand.u32 %s575, 1
        %s2122 = smul.addr %s2121, 8
        %s2123 = scalar_lea.vmem [#allocation13], %s2122
        // Predicated region
        $region121: #{tpu_custom_call.1} parent=95 // pred_check
          %p2124 = pneg %p585
        $region122: #{tpu_custom_call.1} parent=95 // pred_check_branch
          %2126 = sbr.rel (%p2124) target = $region124
        $region123: #{tpu_custom_call.1} parent=95 // pred_region
          %2128 = vsyncadd %s2120, 0
          %s2129 = sadd.s32 %s49, %s48
          %s2130 = smul.addr %s47, 2
          %s2131 = sadd.s32 %s2129, %s2130
          %s2132 = smul.addr %s2131, 8
          %s2133 = scalar_lea.hbm %s19, %s2132
          %s2135 = sshll.u32 %s2123, 4
          %s2136 = int_to_ptr.vmem [resolvable:$true] %s2135
          %s2137 = sshll.u32 %s2133, 4
          %s2138 = int_to_ptr.hbm [resolvable:$true] %s2137
          %2140 = dma.vmem_to_hbm [thread:$0]  %s2136, 128, %s2138, %s2120
        $region124: #{tpu_custom_call.1} parent=95 // pred_fallthru
          _
      $region96: #{tpu_custom_call.1} parent=5 // pred_fallthru
        _
      %p2141 = scmp.le.s32.totalorder 2, %s37
      // Predicated region
      $region125: #{tpu_custom_call.1} parent=5 // pred_check
        %p2142 = pneg %p2141
      $region126: #{tpu_custom_call.1} parent=5 // pred_check_branch
        %2144 = sbr.rel (%p2142) target = $region128
      $region127: #{tpu_custom_call.1} parent=5 // pred_region
        %s2145 = ssub.s32 %s37, 2
        // Predicated region
        $region129: #{tpu_custom_call.1} parent=127 // pred_check
          %p2146 = pneg %p591
        $region130: #{tpu_custom_call.1} parent=127 // pred_check_branch
          %2148 = sbr.rel (%p2146) target = $region132
        $region131: #{tpu_custom_call.1} parent=127 // pred_region
          %s2149 = sand.u32 %s576, 1
          %s2150 = scalar_lea.sflag [#allocation6], %s2149
          %s2151 = sand.u32 %s576, 1
          %s2152 = smul.addr %s2151, 8
          %s2153 = scalar_lea.vmem [#allocation13], %s2152
          %2155 = dma.done %s2150, 128
        $region132: #{tpu_custom_call.1} parent=127 // pred_fallthru
          _
      $region128: #{tpu_custom_call.1} parent=5 // pred_fallthru
        _
    $region6: #{tpu_custom_call.1} parent=1 // loop_footer
      %s41 = sadd.s32 1, %s37
    $region7: #{tpu_custom_call.1} parent=1 // loop_footer_branch
      %36 = sbr.rel target = $region3
    $region8: #{tpu_custom_call.1} parent=1 // loop_exit
      _
    %2156 = vsyncpa [#allocation5], 1
    %s2157 = scalar_lea.sflag [#allocation5], 1
    %2158 = vsyncpa %s2157, 1
    %2159 = vsyncpa [#allocation8], 1
    %s2160 = scalar_lea.sflag [#allocation8], 1
    %2161 = vsyncpa %s2160, 1
    %2162 = vsyncpa [#allocation11], 1
    %s2163 = scalar_lea.sflag [#allocation11], 1
    %2164 = vsyncpa %s2163, 1
    %2165 = vsyncpa [#allocation6], 1
    %s2166 = scalar_lea.sflag [#allocation6], 1
    %2167 = vsyncpa %s2166, 1

</llo_original>
